<compile_context>
chip_gen: v7x
topology: tpu7x:2x2x1
jax: 0.10.0
libtpu: 0.0.40
codegen_flags: <defaults>
</compile_context>

<pallas_src>
import functools

import jax
import jax.numpy as jnp
from jax.experimental import pallas as pl
from jax.experimental.pallas import tpu as pltpu

LANE = 128
SUBLANE = 8


def _round_up(v, m):
    return (v + m - 1) // m * m


def _vmem_limit_bytes():
    """Generation-aware VMEM budget: ~85% of physical, capped at 100 MiB
    (~54 MiB on v7x's 64 MiB, 100 MiB on v5e/v6e's 128 MiB)."""
    cap = 128 << 20
    try:
        cap = int(getattr(pltpu.get_tpu_info(), "vmem_capacity_bytes", cap))
    except Exception:
        pass
    return min(int(cap * 0.85), 100 << 20)


# ----------------------------------------------------------------------------
# Fused kernel: diffusion power chain + GCN + node projector + pool partials.
# grid = (node row-tiles [parallel], scales [arbitrary, carries recurrence]).
# ----------------------------------------------------------------------------
def _fused_kernel(a_ref, xw_ref, p_ref, benc_ref,
                  w1a_ref, b1a_ref, w1b_ref, b1b_ref,
                  h1_ref, gpool_ref,
                  pow_ref, *, eps):
    i = pl.program_id(0)            # node row-tile index
    s = pl.program_id(1)            # diffusion scale index
    tm = pow_ref.shape[0]           # row-tile height
    row0 = pl.multiple_of(i * tm, tm)

    def scale_step(t_raw):
        # eps sparsification of the *applied* filter (entries are non-negative,
        # so >= eps matches |t| >= eps); the recurrence stays un-thresholded.
        t = jnp.where(t_raw >= eps, t_raw, 0).astype(jnp.bfloat16)

        # 1-layer GCN encoder: z = relu(T_s[rows] @ (X @ Wenc) + b)
        z = jnp.dot(t, xw_ref[...], preferred_element_type=jnp.float32)
        z = jnp.maximum(z + benc_ref[...], 0.0)
        zb = z.astype(jnp.bfloat16)

        # node projector mlp1 (output lane-padded; bf16 writeback)
        h = jnp.dot(zb, w1a_ref[...], preferred_element_type=jnp.float32) + b1a_ref[...]
        h = jnp.maximum(h, 0.0).astype(jnp.bfloat16)
        h1_ref[0] = (jnp.dot(h, w1b_ref[...], preferred_element_type=jnp.float32)
                     + b1b_ref[...]).astype(h1_ref.dtype)

        # privatized per-(row-tile, scale) mean-pool partial sum; reduced in the
        # wrapper so the row-tile axis can be "parallel" (v7x two TensorCores).
        gpool_ref[0, 0] = jnp.dot(p_ref[...], zb, preferred_element_type=jnp.float32)

    # wavelet-style diffusion power chain (bf16 state, f32 MXU accumulation):
    #   T_s = thresh(A_hat^(s+1), eps) applied to this row tile.
    @pl.when(s == 0)
    def _():
        a_rows = a_ref[pl.ds(row0, tm), :]
        pow_ref[...] = a_rows            # seed A_hat^1 for the recurrence
        scale_step(a_rows)               # s==0 consumes the slab directly

    @pl.when(s > 0)
    def _():
        pw = jnp.dot(pow_ref[...], a_ref[...],
                     preferred_element_type=jnp.float32).astype(jnp.bfloat16)
        pow_ref[...] = pw
        scale_step(pw)


def _build_call(a_bf16, xw_bf16, p_pad, kparams, nm_scales, eps, tm, single_buffer):
    NPAD = a_bf16.shape[0]
    HID = xw_bf16.shape[1]
    GPAD = p_pad.shape[0]
    DPAD = kparams["w1b"].shape[1]
    S = nm_scales
    R = NPAD // tm

    def resident(arr):
        # Grid-invariant input: never re-fetched, so single-buffer it to halve
        # its VMEM footprint (A_hat is the dominant resident).
        shape = arr.shape
        idx = lambda i, s: (0,) * len(shape)
        if single_buffer:
            return pl.BlockSpec(shape, idx, pipeline_mode=pl.Buffered(buffer_count=1))
        return pl.BlockSpec(shape, idx)

    grid_spec = pltpu.PrefetchScalarGridSpec(
        num_scalar_prefetch=0,
        grid=(R, S),                                          # scale axis innermost
        in_specs=[
            resident(a_bf16),                                 # A_hat (bf16, resident)
            resident(xw_bf16),                                # hoisted X @ Wenc
            pl.BlockSpec((GPAD, tm), lambda i, s: (0, i)),    # pooling rows (tiny)
            resident(kparams["benc"]),
            resident(kparams["w1a"]), resident(kparams["b1a"]),
            resident(kparams["w1b"]), resident(kparams["b1b"]),
        ],
        out_specs=[
            pl.BlockSpec((1, tm, DPAD), lambda i, s: (s, i, 0)),          # h1 (bf16)
            pl.BlockSpec((1, 1, GPAD, HID), lambda i, s: (i, s, 0, 0)),   # pool partials
        ],
        scratch_shapes=[
            pltpu.VMEM((tm, NPAD), jnp.bfloat16),   # power-chain state (bf16)
        ],
    )

    return pl.pallas_call(
        functools.partial(_fused_kernel, eps=eps),
        out_shape=(
            jax.ShapeDtypeStruct((S, NPAD, DPAD), jnp.bfloat16),
            jax.ShapeDtypeStruct((R, S, GPAD, HID), jnp.float32),
        ),
        grid_spec=grid_spec,
        compiler_params=pltpu.CompilerParams(
            # Row-tile axis is independent (pool privatized, X@Wenc hoisted) ->
            # "parallel" lets v7x shard it across its two TensorCores; the
            # scale axis carries the power recurrence -> "arbitrary".
            dimension_semantics=("parallel", "arbitrary"),
            vmem_limit_bytes=_vmem_limit_bytes(),
        ),
    )(a_bf16, xw_bf16, p_pad,
      kparams["benc"], kparams["w1a"], kparams["b1a"],
      kparams["w1b"], kparams["b1b"])


def encode_project_fused(a_bf16, xw_bf16, p_pad, kparams, nm_scales, eps, tm):
    try:
        return _build_call(a_bf16, xw_bf16, p_pad, kparams, nm_scales, eps, tm,
                           single_buffer=True)
    except Exception:
        # Fallback for JAX builds that reject single-buffered (Buffered(1)) specs.
        return _build_call(a_bf16, xw_bf16, p_pad, kparams, nm_scales, eps, tm,
                           single_buffer=False)


# ----------------------------------------------------------------------------
# Wrapper (glue: adjacency build/normalization, pooling matrix, param prep).
# ----------------------------------------------------------------------------
def prepare_kernel_params(params):
    """Cast kernel-side matmul weights to bf16; pad mlp1 output to a lane multiple."""
    out_dim = params["w1b"].shape[1]
    dpad = _round_up(out_dim, LANE)

    def pad_cols(w):
        return jnp.pad(w, ((0, 0), (0, dpad - w.shape[1])))

    return {
        "benc": params["benc"].astype(jnp.float32),
        "w1a": params["w1a"].astype(jnp.bfloat16),
        "b1a": params["b1a"].astype(jnp.float32),
        "w1b": pad_cols(params["w1b"]).astype(jnp.bfloat16),
        "b1b": pad_cols(params["b1b"]).astype(jnp.float32),
    }


def encoder_forward(x, edge_index, batch, num_graphs, params,
                    nm_scales=8, eps=1e-4):
    N = x.shape[0]
    out_dim = params["w1b"].shape[1]

    # Node-dimension padding / row-tile choice: tiles are 256-aligned (tm=512)
    # for the 2x256x256 MXUs on v6e/v7x; small graphs stay one 128-aligned tile.
    if N <= 512:
        tm = _round_up(N, LANE)
        NPAD = tm
    else:
        tm = 512
        NPAD = _round_up(N, tm)
    # TODO(synk): for N beyond the resident-A VMEM budget (~5k on v7x, ~7.5k on
    #             v5e/v6e with bf16 + single buffering), stream A in K-tiles
    #             (inner grid axis / pltpu.emit_pipeline) instead of residency.

    # Dense symmetric-normalized adjacency with self loops, zero-padded to NPAD
    # (padded rows/cols stay zero so they never contribute to real outputs).
    A = jnp.zeros((NPAD, NPAD), jnp.float32)
    A = A.at[edge_index[0], edge_index[1]].set(1.0)
    A = jnp.maximum(A, A.T)
    eye = jnp.pad(jnp.eye(N, dtype=jnp.float32), ((0, NPAD - N), (0, NPAD - N)))
    A = jnp.maximum(A, eye)
    dinv = 1.0 / jnp.sqrt(jnp.maximum(A.sum(-1), 1.0))
    a_bf16 = (A * dinv[:, None] * dinv[None, :]).astype(jnp.bfloat16)

    # Hoisted scale-invariant X @ Wenc (tiny plain-XLA GEMM), padded rows = 0.
    x_pad = jnp.pad(x.astype(jnp.float32), ((0, NPAD - N), (0, 0)))
    xw_bf16 = (x_pad @ params["wenc"].astype(jnp.float32)).astype(jnp.bfloat16)

    # Mean-pool matrix P [G, N] -> zero-padded [GPAD, NPAD] (bf16 MXU operand).
    G = num_graphs
    GPAD = _round_up(max(G, 1), SUBLANE)
    onehot = (batch[None, :] == jnp.arange(G)[:, None]).astype(jnp.float32)
    P = onehot / jnp.maximum(onehot.sum(-1, keepdims=True), 1.0)
    p_pad = jnp.zeros((GPAD, NPAD), jnp.float32).at[:G, :N].set(P).astype(jnp.bfloat16)

    kparams = prepare_kernel_params(params)
    h1_pad, gpool = encode_project_fused(a_bf16, xw_bf16, p_pad, kparams,
                                         nm_scales, eps, tm)

    # Node projections: strip lane padding, back to f32.
    h1_s = h1_pad[:, :N, :out_dim].astype(jnp.float32)           # [S, N, Dout]

    # Graph projections: reduce privatized pool partials, then the tiny graph
    # MLP (mlp2) runs as exact f32 plain-XLA (negligible work).
    g = gpool.sum(axis=0)[:, :G, :]                              # [S, G, HID]
    gq = jax.nn.relu(jnp.einsum("sgh,hp->sgp", g, params["w2a"]) + params["b2a"])
    g1_s = jnp.einsum("sgp,po->sgo", gq, params["w2b"]) + params["b2b"]
    return h1_s, g1_s


def init_params(key, in_dim, hid_dim, proj_dim, out_dim):
    ks = jax.random.split(key, 6)

    def lin(k, fan_in, fan_out):
        return jax.random.normal(k, (fan_in, fan_out), jnp.float32) / jnp.sqrt(fan_in)

    return {
        "wenc": lin(ks[0], in_dim, hid_dim),   "benc": jnp.zeros((1, hid_dim), jnp.float32),
        "w1a":  lin(ks[1], hid_dim, proj_dim), "b1a": jnp.zeros((1, proj_dim), jnp.float32),
        "w1b":  lin(ks[2], proj_dim, out_dim), "b1b": jnp.zeros((1, out_dim), jnp.float32),
        "w2a":  lin(ks[3], hid_dim, proj_dim), "b2a": jnp.zeros((1, proj_dim), jnp.float32),
        "w2b":  lin(ks[4], proj_dim, out_dim), "b2b": jnp.zeros((1, out_dim), jnp.float32),
    }


if __name__ == "__main__":
    key = jax.random.PRNGKey(0)
    k_x, k_e, k_p = jax.random.split(key, 3)

    N, F = 128, 32          # nodes, input features
    HID, PROJ, OUT = 32, 32, 32
    G = 4                   # graphs in the batch
    E = 512                 # directed edges
    S = 4                   # nm_scales (small for the example)

    x = jax.random.normal(k_x, (N, F), jnp.float32)
    edge_index = jax.random.randint(k_e, (2, E), 0, N, dtype=jnp.int32)
    batch = jnp.repeat(jnp.arange(G, dtype=jnp.int32), N // G)

    params = init_params(k_p, F, HID, PROJ, OUT)

    h1_s, g1_s = encoder_forward(x, edge_index, batch, G, params,
                                 nm_scales=S, eps=1e-4)
    jax.block_until_ready((h1_s, g1_s))

    assert h1_s.shape == (S, N, OUT)
    assert g1_s.shape == (S, G, OUT)
    assert bool(jnp.all(jnp.isfinite(h1_s))) and bool(jnp.all(jnp.isfinite(g1_s)))
    print("KERNEL_OK")
</pallas_src>

<mosaic_0001>
module attributes {stable_mosaic.version = 11 : i64} {
  func.func @_fused_kernel(%arg0: i32, %arg1: i32, %arg2: memref<128x128xbf16, #tpu.memory_space<vmem>>, %arg3: memref<128x32xbf16, #tpu.memory_space<vmem>>, %arg4: memref<8x128xbf16, #tpu.memory_space<vmem>>, %arg5: memref<1x32xf32, #tpu.memory_space<vmem>>, %arg6: memref<32x32xbf16, #tpu.memory_space<vmem>>, %arg7: memref<1x32xf32, #tpu.memory_space<vmem>>, %arg8: memref<32x128xbf16, #tpu.memory_space<vmem>>, %arg9: memref<1x128xf32, #tpu.memory_space<vmem>>, %arg10: memref<1x128x128xbf16, #tpu.memory_space<vmem>>, %arg11: memref<1x1x8x32xf32, #tpu.memory_space<vmem>>, %arg12: memref<128x128xbf16, #tpu.memory_space<vmem>>) attributes {dimension_semantics = [#tpu.dimension_semantics<parallel>, #tpu.dimension_semantics<arbitrary>], iteration_bounds = array<i64: 1, 4>, scalar_prefetch = 0 : i64, scratch_operands = 1 : i64, tpu.core_type = #tpu.core_type<tc>, window_params = [{pipeline_mode = #tpu.pipeline_mode<synchronous>, transform_indices = @transform_0, window_bounds = array<i64: 128, 128>}, {pipeline_mode = #tpu.pipeline_mode<synchronous>, transform_indices = @transform_1, window_bounds = array<i64: 128, 32>}, {transform_indices = @transform_2, window_bounds = array<i64: 8, 128>}, {pipeline_mode = #tpu.pipeline_mode<synchronous>, transform_indices = @transform_3, window_bounds = array<i64: 1, 32>}, {pipeline_mode = #tpu.pipeline_mode<synchronous>, transform_indices = @transform_4, window_bounds = array<i64: 32, 32>}, {pipeline_mode = #tpu.pipeline_mode<synchronous>, transform_indices = @transform_5, window_bounds = array<i64: 1, 32>}, {pipeline_mode = #tpu.pipeline_mode<synchronous>, transform_indices = @transform_6, window_bounds = array<i64: 32, 128>}, {pipeline_mode = #tpu.pipeline_mode<synchronous>, transform_indices = @transform_7, window_bounds = array<i64: 1, 128>}, {transform_indices = @transform_8, window_bounds = array<i64: 1, 128, 128>}, {transform_indices = @transform_9, window_bounds = array<i64: 1, 1, 8, 32>}]} {
    %c128_i32 = arith.constant 128 : i32
    %0 = arith.muli %arg0, %c128_i32 : i32
    %1 = tpu.assume_multiple %0, 128 : i32
    %c0_i32 = arith.constant 0 : i32
    %2 = arith.cmpi eq, %arg1, %c0_i32 : i32
    %3 = arith.extui %2 : i1 to i32
    %c0_i32_0 = arith.constant 0 : i32
    %4 = arith.cmpi ne, %3, %c0_i32_0 : i32
    scf.if %4 {
      %8 = arith.index_cast %1 : i32 to index
      %c0 = arith.constant 0 : index
      %9 = vector.load %arg2[%8, %c0] : memref<128x128xbf16, #tpu.memory_space<vmem>>, vector<128x128xbf16>
      %c0_3 = arith.constant 0 : index
      %c0_4 = arith.constant 0 : index
      %10 = vector.load %arg12[%c0_3, %c0_4] : memref<128x128xbf16, #tpu.memory_space<vmem>>, vector<128x128xbf16>
      tpu.vector_store %arg12[%c0_3, %c0_4], %9 {strides = array<i32>} : memref<128x128xbf16, #tpu.memory_space<vmem>>, vector<128x128xbf16>,
      %cst = arith.constant 1.001360e-04 : bf16
      %11 = vector.broadcast %cst : bf16 to vector<128x128xbf16>
      %12 = arith.cmpf oge, %9, %11 : vector<128x128xbf16>
      %c0_i32_5 = arith.constant 0 : i32
      %13 = arith.sitofp %c0_i32_5 : i32 to bf16
      %14 = vector.broadcast %13 : bf16 to vector<128x128xbf16>
      %15 = arith.select %12, %9, %14 : vector<128x128xi1>, vector<128x128xbf16>
      %c0_6 = arith.constant 0 : index
      %c0_7 = arith.constant 0 : index
      %16 = vector.load %arg3[%c0_6, %c0_7] : memref<128x32xbf16, #tpu.memory_space<vmem>>, vector<128x32xbf16>
      %cst_8 = arith.constant dense<0.000000e+00> : vector<128x32xf32>
      %17 = tpu.matmul %15, %16, %cst_8 {dimension_numbers = #tpu.dot_dimension_numbers<[1], [0], [0], [1], [0, 0, 1, 1], [], []>} : vector<128x128xbf16>, vector<128x32xbf16>, vector<128x32xf32> -> vector<128x32xf32>
      %c0_9 = arith.constant 0 : index
      %c0_10 = arith.constant 0 : index
      %18 = vector.load %arg5[%c0_9, %c0_10] : memref<1x32xf32, #tpu.memory_space<vmem>>, vector<1x32xf32>
      %19 = vector.broadcast %18 : vector<1x32xf32> to vector<128x32xf32>
      %20 = arith.addf %17, %19 : vector<128x32xf32>
      %cst_11 = arith.constant 0.000000e+00 : f32
      %21 = vector.broadcast %cst_11 : f32 to vector<128x32xf32>
      %22 = arith.maximumf %20, %21 : vector<128x32xf32>
      %23 = arith.truncf %22 : vector<128x32xf32> to vector<128x32xbf16>
      %c0_12 = arith.constant 0 : index
      %c0_13 = arith.constant 0 : index
      %24 = vector.load %arg6[%c0_12, %c0_13] : memref<32x32xbf16, #tpu.memory_space<vmem>>, vector<32x32xbf16>
      %cst_14 = arith.constant dense<0.000000e+00> : vector<128x32xf32>
      %25 = tpu.matmul %23, %24, %cst_14 {dimension_numbers = #tpu.dot_dimension_numbers<[1], [0], [0], [1], [0, 0, 1, 1], [], []>} : vector<128x32xbf16>, vector<32x32xbf16>, vector<128x32xf32> -> vector<128x32xf32>
      %c0_15 = arith.constant 0 : index
      %c0_16 = arith.constant 0 : index
      %26 = vector.load %arg7[%c0_15, %c0_16] : memref<1x32xf32, #tpu.memory_space<vmem>>, vector<1x32xf32>
      %27 = vector.broadcast %26 : vector<1x32xf32> to vector<128x32xf32>
      %28 = arith.addf %25, %27 : vector<128x32xf32>
      %cst_17 = arith.constant 0.000000e+00 : f32
      %29 = vector.broadcast %cst_17 : f32 to vector<128x32xf32>
      %30 = arith.maximumf %28, %29 : vector<128x32xf32>
      %31 = arith.truncf %30 : vector<128x32xf32> to vector<128x32xbf16>
      %c0_18 = arith.constant 0 : index
      %c0_19 = arith.constant 0 : index
      %32 = vector.load %arg8[%c0_18, %c0_19] : memref<32x128xbf16, #tpu.memory_space<vmem>>, vector<32x128xbf16>
      %cst_20 = arith.constant dense<0.000000e+00> : vector<128x128xf32>
      %33 = tpu.matmul %31, %32, %cst_20 {dimension_numbers = #tpu.dot_dimension_numbers<[1], [0], [0], [1], [0, 0, 1, 1], [], []>} : vector<128x32xbf16>, vector<32x128xbf16>, vector<128x128xf32> -> vector<128x128xf32>
      %c0_21 = arith.constant 0 : index
      %c0_22 = arith.constant 0 : index
      %34 = vector.load %arg9[%c0_21, %c0_22] : memref<1x128xf32, #tpu.memory_space<vmem>>, vector<1x128xf32>
      %35 = vector.broadcast %34 : vector<1x128xf32> to vector<128x128xf32>
      %36 = arith.addf %33, %35 : vector<128x128xf32>
      %37 = arith.truncf %36 : vector<128x128xf32> to vector<128x128xbf16>
      %c0_23 = arith.constant 0 : index
      %c0_24 = arith.constant 0 : index
      %c0_25 = arith.constant 0 : index
      %38 = vector.load %arg10[%c0_23, %c0_24, %c0_25] : memref<1x128x128xbf16, #tpu.memory_space<vmem>>, vector<1x128x128xbf16>
      %39 = vector.shape_cast %38 : vector<1x128x128xbf16> to vector<128x128xbf16>
      %40 = vector.shape_cast %37 : vector<128x128xbf16> to vector<1x128x128xbf16>
      tpu.vector_store %arg10[%c0_23, %c0_24, %c0_25], %40 {strides = array<i32>} : memref<1x128x128xbf16, #tpu.memory_space<vmem>>, vector<1x128x128xbf16>,
      %c0_26 = arith.constant 0 : index
      %c0_27 = arith.constant 0 : index
      %41 = vector.load %arg4[%c0_26, %c0_27] : memref<8x128xbf16, #tpu.memory_space<vmem>>, vector<8x128xbf16>
      %cst_28 = arith.constant dense<0.000000e+00> : vector<8x32xf32>
      %42 = tpu.matmul %41, %23, %cst_28 {dimension_numbers = #tpu.dot_dimension_numbers<[1], [0], [0], [1], [0, 0, 1, 1], [], []>} : vector<8x128xbf16>, vector<128x32xbf16>, vector<8x32xf32> -> vector<8x32xf32>
      %c0_29 = arith.constant 0 : index
      %c0_30 = arith.constant 0 : index
      %c0_31 = arith.constant 0 : index
      %c0_32 = arith.constant 0 : index
      %43 = vector.load %arg11[%c0_29, %c0_30, %c0_31, %c0_32] : memref<1x1x8x32xf32, #tpu.memory_space<vmem>>, vector<1x1x8x32xf32>
      %44 = vector.shape_cast %43 : vector<1x1x8x32xf32> to vector<8x32xf32>
      %45 = vector.shape_cast %42 : vector<8x32xf32> to vector<1x1x8x32xf32>
      tpu.vector_store %arg11[%c0_29, %c0_30, %c0_31, %c0_32], %45 {strides = array<i32>} : memref<1x1x8x32xf32, #tpu.memory_space<vmem>>, vector<1x1x8x32xf32>,
    } else {
    }
    %c0_i32_1 = arith.constant 0 : i32
    %5 = arith.cmpi sgt, %arg1, %c0_i32_1 : i32
    %6 = arith.extui %5 : i1 to i32
    %c0_i32_2 = arith.constant 0 : i32
    %7 = arith.cmpi ne, %6, %c0_i32_2 : i32
    scf.if %7 {
      %c0 = arith.constant 0 : index
      %c0_3 = arith.constant 0 : index
      %8 = vector.load %arg12[%c0, %c0_3] : memref<128x128xbf16, #tpu.memory_space<vmem>>, vector<128x128xbf16>
      %c0_4 = arith.constant 0 : index
      %c0_5 = arith.constant 0 : index
      %9 = vector.load %arg2[%c0_4, %c0_5] : memref<128x128xbf16, #tpu.memory_space<vmem>>, vector<128x128xbf16>
      %cst = arith.constant dense<0.000000e+00> : vector<128x128xf32>
      %10 = tpu.matmul %8, %9, %cst {dimension_numbers = #tpu.dot_dimension_numbers<[1], [0], [0], [1], [0, 0, 1, 1], [], []>} : vector<128x128xbf16>, vector<128x128xbf16>, vector<128x128xf32> -> vector<128x128xf32>
      %11 = arith.truncf %10 : vector<128x128xf32> to vector<128x128xbf16>
      %c0_6 = arith.constant 0 : index
      %c0_7 = arith.constant 0 : index
      %12 = vector.load %arg12[%c0_6, %c0_7] : memref<128x128xbf16, #tpu.memory_space<vmem>>, vector<128x128xbf16>
      tpu.vector_store %arg12[%c0_6, %c0_7], %11 {strides = array<i32>} : memref<128x128xbf16, #tpu.memory_space<vmem>>, vector<128x128xbf16>,
      %cst_8 = arith.constant 1.001360e-04 : bf16
      %13 = vector.broadcast %cst_8 : bf16 to vector<128x128xbf16>
      %14 = arith.cmpf oge, %11, %13 : vector<128x128xbf16>
      %c0_i32_9 = arith.constant 0 : i32
      %15 = arith.sitofp %c0_i32_9 : i32 to bf16
      %16 = vector.broadcast %15 : bf16 to vector<128x128xbf16>
      %17 = arith.select %14, %11, %16 : vector<128x128xi1>, vector<128x128xbf16>
      %c0_10 = arith.constant 0 : index
      %c0_11 = arith.constant 0 : index
      %18 = vector.load %arg3[%c0_10, %c0_11] : memref<128x32xbf16, #tpu.memory_space<vmem>>, vector<128x32xbf16>
      %cst_12 = arith.constant dense<0.000000e+00> : vector<128x32xf32>
      %19 = tpu.matmul %17, %18, %cst_12 {dimension_numbers = #tpu.dot_dimension_numbers<[1], [0], [0], [1], [0, 0, 1, 1], [], []>} : vector<128x128xbf16>, vector<128x32xbf16>, vector<128x32xf32> -> vector<128x32xf32>
      %c0_13 = arith.constant 0 : index
      %c0_14 = arith.constant 0 : index
      %20 = vector.load %arg5[%c0_13, %c0_14] : memref<1x32xf32, #tpu.memory_space<vmem>>, vector<1x32xf32>
      %21 = vector.broadcast %20 : vector<1x32xf32> to vector<128x32xf32>
      %22 = arith.addf %19, %21 : vector<128x32xf32>
      %cst_15 = arith.constant 0.000000e+00 : f32
      %23 = vector.broadcast %cst_15 : f32 to vector<128x32xf32>
      %24 = arith.maximumf %22, %23 : vector<128x32xf32>
      %25 = arith.truncf %24 : vector<128x32xf32> to vector<128x32xbf16>
      %c0_16 = arith.constant 0 : index
      %c0_17 = arith.constant 0 : index
      %26 = vector.load %arg6[%c0_16, %c0_17] : memref<32x32xbf16, #tpu.memory_space<vmem>>, vector<32x32xbf16>
      %cst_18 = arith.constant dense<0.000000e+00> : vector<128x32xf32>
      %27 = tpu.matmul %25, %26, %cst_18 {dimension_numbers = #tpu.dot_dimension_numbers<[1], [0], [0], [1], [0, 0, 1, 1], [], []>} : vector<128x32xbf16>, vector<32x32xbf16>, vector<128x32xf32> -> vector<128x32xf32>
      %c0_19 = arith.constant 0 : index
      %c0_20 = arith.constant 0 : index
      %28 = vector.load %arg7[%c0_19, %c0_20] : memref<1x32xf32, #tpu.memory_space<vmem>>, vector<1x32xf32>
      %29 = vector.broadcast %28 : vector<1x32xf32> to vector<128x32xf32>
      %30 = arith.addf %27, %29 : vector<128x32xf32>
      %cst_21 = arith.constant 0.000000e+00 : f32
      %31 = vector.broadcast %cst_21 : f32 to vector<128x32xf32>
      %32 = arith.maximumf %30, %31 : vector<128x32xf32>
      %33 = arith.truncf %32 : vector<128x32xf32> to vector<128x32xbf16>
      %c0_22 = arith.constant 0 : index
      %c0_23 = arith.constant 0 : index
      %34 = vector.load %arg8[%c0_22, %c0_23] : memref<32x128xbf16, #tpu.memory_space<vmem>>, vector<32x128xbf16>
      %cst_24 = arith.constant dense<0.000000e+00> : vector<128x128xf32>
      %35 = tpu.matmul %33, %34, %cst_24 {dimension_numbers = #tpu.dot_dimension_numbers<[1], [0], [0], [1], [0, 0, 1, 1], [], []>} : vector<128x32xbf16>, vector<32x128xbf16>, vector<128x128xf32> -> vector<128x128xf32>
      %c0_25 = arith.constant 0 : index
      %c0_26 = arith.constant 0 : index
      %36 = vector.load %arg9[%c0_25, %c0_26] : memref<1x128xf32, #tpu.memory_space<vmem>>, vector<1x128xf32>
      %37 = vector.broadcast %36 : vector<1x128xf32> to vector<128x128xf32>
      %38 = arith.addf %35, %37 : vector<128x128xf32>
      %39 = arith.truncf %38 : vector<128x128xf32> to vector<128x128xbf16>
      %c0_27 = arith.constant 0 : index
      %c0_28 = arith.constant 0 : index
      %c0_29 = arith.constant 0 : index
      %40 = vector.load %arg10[%c0_27, %c0_28, %c0_29] : memref<1x128x128xbf16, #tpu.memory_space<vmem>>, vector<1x128x128xbf16>
      %41 = vector.shape_cast %40 : vector<1x128x128xbf16> to vector<128x128xbf16>
      %42 = vector.shape_cast %39 : vector<128x128xbf16> to vector<1x128x128xbf16>
      tpu.vector_store %arg10[%c0_27, %c0_28, %c0_29], %42 {strides = array<i32>} : memref<1x128x128xbf16, #tpu.memory_space<vmem>>, vector<1x128x128xbf16>,
      %c0_30 = arith.constant 0 : index
      %c0_31 = arith.constant 0 : index
      %43 = vector.load %arg4[%c0_30, %c0_31] : memref<8x128xbf16, #tpu.memory_space<vmem>>, vector<8x128xbf16>
      %cst_32 = arith.constant dense<0.000000e+00> : vector<8x32xf32>
      %44 = tpu.matmul %43, %25, %cst_32 {dimension_numbers = #tpu.dot_dimension_numbers<[1], [0], [0], [1], [0, 0, 1, 1], [], []>} : vector<8x128xbf16>, vector<128x32xbf16>, vector<8x32xf32> -> vector<8x32xf32>
      %c0_33 = arith.constant 0 : index
      %c0_34 = arith.constant 0 : index
      %c0_35 = arith.constant 0 : index
      %c0_36 = arith.constant 0 : index
      %45 = vector.load %arg11[%c0_33, %c0_34, %c0_35, %c0_36] : memref<1x1x8x32xf32, #tpu.memory_space<vmem>>, vector<1x1x8x32xf32>
      %46 = vector.shape_cast %45 : vector<1x1x8x32xf32> to vector<8x32xf32>
      %47 = vector.shape_cast %44 : vector<8x32xf32> to vector<1x1x8x32xf32>
      tpu.vector_store %arg11[%c0_33, %c0_34, %c0_35, %c0_36], %47 {strides = array<i32>} : memref<1x1x8x32xf32, #tpu.memory_space<vmem>>, vector<1x1x8x32xf32>,
    } else {
    }
    return
  }
  func.func @transform_0(%arg0: i32, %arg1: i32) -> (i32, i32) {
    %c0_i32 = arith.constant 0 : i32
    %c0_i32_0 = arith.constant 0 : i32
    %c0_i32_1 = arith.constant 0 : i32
    return %c0_i32, %c0_i32_0 : i32, i32
  }
  func.func @transform_1(%arg0: i32, %arg1: i32) -> (i32, i32) {
    %c0_i32 = arith.constant 0 : i32
    %c0_i32_0 = arith.constant 0 : i32
    %c0_i32_1 = arith.constant 0 : i32
    return %c0_i32, %c0_i32_0 : i32, i32
  }
  func.func @transform_2(%arg0: i32, %arg1: i32) -> (i32, i32) {
    %c0_i32 = arith.constant 0 : i32
    %c0_i32_0 = arith.constant 0 : i32
    return %c0_i32, %arg0 : i32, i32
  }
  func.func @transform_3(%arg0: i32, %arg1: i32) -> (i32, i32) {
    %c0_i32 = arith.constant 0 : i32
    %c0_i32_0 = arith.constant 0 : i32
    %c0_i32_1 = arith.constant 0 : i32
    return %c0_i32, %c0_i32_0 : i32, i32
  }
  func.func @transform_4(%arg0: i32, %arg1: i32) -> (i32, i32) {
    %c0_i32 = arith.constant 0 : i32
    %c0_i32_0 = arith.constant 0 : i32
    %c0_i32_1 = arith.constant 0 : i32
    return %c0_i32, %c0_i32_0 : i32, i32
  }
  func.func @transform_5(%arg0: i32, %arg1: i32) -> (i32, i32) {
    %c0_i32 = arith.constant 0 : i32
    %c0_i32_0 = arith.constant 0 : i32
    %c0_i32_1 = arith.constant 0 : i32
    return %c0_i32, %c0_i32_0 : i32, i32
  }
  func.func @transform_6(%arg0: i32, %arg1: i32) -> (i32, i32) {
    %c0_i32 = arith.constant 0 : i32
    %c0_i32_0 = arith.constant 0 : i32
    %c0_i32_1 = arith.constant 0 : i32
    return %c0_i32, %c0_i32_0 : i32, i32
  }
  func.func @transform_7(%arg0: i32, %arg1: i32) -> (i32, i32) {
    %c0_i32 = arith.constant 0 : i32
    %c0_i32_0 = arith.constant 0 : i32
    %c0_i32_1 = arith.constant 0 : i32
    return %c0_i32, %c0_i32_0 : i32, i32
  }
  func.func @transform_8(%arg0: i32, %arg1: i32) -> (i32, i32, i32) {
    %c0_i32 = arith.constant 0 : i32
    %c0_i32_0 = arith.constant 0 : i32
    return %arg1, %arg0, %c0_i32 : i32, i32, i32
  }
  func.func @transform_9(%arg0: i32, %arg1: i32) -> (i32, i32, i32, i32) {
    %c0_i32 = arith.constant 0 : i32
    %c0_i32_0 = arith.constant 0 : i32
    %c0_i32_1 = arith.constant 0 : i32
    return %arg0, %arg1, %c0_i32, %c0_i32_0 : i32, i32, i32, i32
  }
}

module attributes {stable_mosaic.version = 11 : i64} {
  func.func @_fused_kernel(%arg0: i32, %arg1: i32, %arg2: memref<128x128xbf16, #tpu.memory_space<vmem>>, %arg3: memref<128x32xbf16, #tpu.memory_space<vmem>>, %arg4: memref<8x128xbf16, #tpu.memory_space<vmem>>, %arg5: memref<1x32xf32, #tpu.memory_space<vmem>>, %arg6: memref<32x32xbf16, #tpu.memory_space<vmem>>, %arg7: memref<1x32xf32, #tpu.memory_space<vmem>>, %arg8: memref<32x128xbf16, #tpu.memory_space<vmem>>, %arg9: memref<1x128xf32, #tpu.memory_space<vmem>>, %arg10: memref<1x128x128xbf16, #tpu.memory_space<vmem>>, %arg11: memref<1x1x8x32xf32, #tpu.memory_space<vmem>>, %arg12: memref<128x128xbf16, #tpu.memory_space<vmem>>) attributes {dimension_semantics = [#tpu.dimension_semantics<parallel>, #tpu.dimension_semantics<arbitrary>], iteration_bounds = array<i64: 1, 4>, scalar_prefetch = 0 : i64, scratch_operands = 1 : i64, tpu.core_type = #tpu.core_type<tc>, window_params = [{pipeline_mode = #tpu.pipeline_mode<synchronous>, transform_indices = @transform_0, window_bounds = array<i64: 128, 128>}, {pipeline_mode = #tpu.pipeline_mode<synchronous>, transform_indices = @transform_1, window_bounds = array<i64: 128, 32>}, {transform_indices = @transform_2, window_bounds = array<i64: 8, 128>}, {pipeline_mode = #tpu.pipeline_mode<synchronous>, transform_indices = @transform_3, window_bounds = array<i64: 1, 32>}, {pipeline_mode = #tpu.pipeline_mode<synchronous>, transform_indices = @transform_4, window_bounds = array<i64: 32, 32>}, {pipeline_mode = #tpu.pipeline_mode<synchronous>, transform_indices = @transform_5, window_bounds = array<i64: 1, 32>}, {pipeline_mode = #tpu.pipeline_mode<synchronous>, transform_indices = @transform_6, window_bounds = array<i64: 32, 128>}, {pipeline_mode = #tpu.pipeline_mode<synchronous>, transform_indices = @transform_7, window_bounds = array<i64: 1, 128>}, {transform_indices = @transform_8, window_bounds = array<i64: 1, 128, 128>}, {transform_indices = @transform_9, window_bounds = array<i64: 1, 1, 8, 32>}]} {
    %c128_i32 = arith.constant 128 : i32
    %0 = arith.muli %arg0, %c128_i32 : i32
    %1 = tpu.assume_multiple %0, 128 : i32
    %c0_i32 = arith.constant 0 : i32
    %2 = arith.cmpi eq, %arg1, %c0_i32 : i32
    %3 = arith.extui %2 : i1 to i32
    %c0_i32_0 = arith.constant 0 : i32
    %4 = arith.cmpi ne, %3, %c0_i32_0 : i32
    scf.if %4 {
      %8 = arith.index_cast %1 : i32 to index
      %c0 = arith.constant 0 : index
      %9 = vector.load %arg2[%8, %c0] : memref<128x128xbf16, #tpu.memory_space<vmem>>, vector<128x128xbf16>
      %c0_3 = arith.constant 0 : index
      %c0_4 = arith.constant 0 : index
      %10 = vector.load %arg12[%c0_3, %c0_4] : memref<128x128xbf16, #tpu.memory_space<vmem>>, vector<128x128xbf16>
      tpu.vector_store %arg12[%c0_3, %c0_4], %9 {strides = array<i32>} : memref<128x128xbf16, #tpu.memory_space<vmem>>, vector<128x128xbf16>,
      %cst = arith.constant 1.001360e-04 : bf16
      %11 = vector.broadcast %cst : bf16 to vector<128x128xbf16>
      %12 = arith.cmpf oge, %9, %11 : vector<128x128xbf16>
      %c0_i32_5 = arith.constant 0 : i32
      %13 = arith.sitofp %c0_i32_5 : i32 to bf16
      %14 = vector.broadcast %13 : bf16 to vector<128x128xbf16>
      %15 = arith.select %12, %9, %14 : vector<128x128xi1>, vector<128x128xbf16>
      %c0_6 = arith.constant 0 : index
      %c0_7 = arith.constant 0 : index
      %16 = vector.load %arg3[%c0_6, %c0_7] : memref<128x32xbf16, #tpu.memory_space<vmem>>, vector<128x32xbf16>
      %cst_8 = arith.constant dense<0.000000e+00> : vector<128x32xf32>
      %17 = tpu.matmul %15, %16, %cst_8 {dimension_numbers = #tpu.dot_dimension_numbers<[1], [0], [0], [1], [0, 0, 1, 1], [], []>} : vector<128x128xbf16>, vector<128x32xbf16>, vector<128x32xf32> -> vector<128x32xf32>
      %c0_9 = arith.constant 0 : index
      %c0_10 = arith.constant 0 : index
      %18 = vector.load %arg5[%c0_9, %c0_10] : memref<1x32xf32, #tpu.memory_space<vmem>>, vector<1x32xf32>
      %19 = vector.broadcast %18 : vector<1x32xf32> to vector<128x32xf32>
      %20 = arith.addf %17, %19 : vector<128x32xf32>
      %cst_11 = arith.constant 0.000000e+00 : f32
      %21 = vector.broadcast %cst_11 : f32 to vector<128x32xf32>
      %22 = arith.maximumf %20, %21 : vector<128x32xf32>
      %23 = arith.truncf %22 : vector<128x32xf32> to vector<128x32xbf16>
      %c0_12 = arith.constant 0 : index
      %c0_13 = arith.constant 0 : index
      %24 = vector.load %arg6[%c0_12, %c0_13] : memref<32x32xbf16, #tpu.memory_space<vmem>>, vector<32x32xbf16>
      %cst_14 = arith.constant dense<0.000000e+00> : vector<128x32xf32>
      %25 = tpu.matmul %23, %24, %cst_14 {dimension_numbers = #tpu.dot_dimension_numbers<[1], [0], [0], [1], [0, 0, 1, 1], [], []>} : vector<128x32xbf16>, vector<32x32xbf16>, vector<128x32xf32> -> vector<128x32xf32>
      %c0_15 = arith.constant 0 : index
      %c0_16 = arith.constant 0 : index
      %26 = vector.load %arg7[%c0_15, %c0_16] : memref<1x32xf32, #tpu.memory_space<vmem>>, vector<1x32xf32>
      %27 = vector.broadcast %26 : vector<1x32xf32> to vector<128x32xf32>
      %28 = arith.addf %25, %27 : vector<128x32xf32>
      %cst_17 = arith.constant 0.000000e+00 : f32
      %29 = vector.broadcast %cst_17 : f32 to vector<128x32xf32>
      %30 = arith.maximumf %28, %29 : vector<128x32xf32>
      %31 = arith.truncf %30 : vector<128x32xf32> to vector<128x32xbf16>
      %c0_18 = arith.constant 0 : index
      %c0_19 = arith.constant 0 : index
      %32 = vector.load %arg8[%c0_18, %c0_19] : memref<32x128xbf16, #tpu.memory_space<vmem>>, vector<32x128xbf16>
      %cst_20 = arith.constant dense<0.000000e+00> : vector<128x128xf32>
      %33 = tpu.matmul %31, %32, %cst_20 {dimension_numbers = #tpu.dot_dimension_numbers<[1], [0], [0], [1], [0, 0, 1, 1], [], []>} : vector<128x32xbf16>, vector<32x128xbf16>, vector<128x128xf32> -> vector<128x128xf32>
      %c0_21 = arith.constant 0 : index
      %c0_22 = arith.constant 0 : index
      %34 = vector.load %arg9[%c0_21, %c0_22] : memref<1x128xf32, #tpu.memory_space<vmem>>, vector<1x128xf32>
      %35 = vector.broadcast %34 : vector<1x128xf32> to vector<128x128xf32>
      %36 = arith.addf %33, %35 : vector<128x128xf32>
      %37 = arith.truncf %36 : vector<128x128xf32> to vector<128x128xbf16>
      %c0_23 = arith.constant 0 : index
      %c0_24 = arith.constant 0 : index
      %c0_25 = arith.constant 0 : index
      %38 = vector.load %arg10[%c0_23, %c0_24, %c0_25] : memref<1x128x128xbf16, #tpu.memory_space<vmem>>, vector<1x128x128xbf16>
      %39 = vector.shape_cast %38 : vector<1x128x128xbf16> to vector<128x128xbf16>
      %40 = vector.shape_cast %37 : vector<128x128xbf16> to vector<1x128x128xbf16>
      tpu.vector_store %arg10[%c0_23, %c0_24, %c0_25], %40 {strides = array<i32>} : memref<1x128x128xbf16, #tpu.memory_space<vmem>>, vector<1x128x128xbf16>,
      %c0_26 = arith.constant 0 : index
      %c0_27 = arith.constant 0 : index
      %41 = vector.load %arg4[%c0_26, %c0_27] : memref<8x128xbf16, #tpu.memory_space<vmem>>, vector<8x128xbf16>
      %cst_28 = arith.constant dense<0.000000e+00> : vector<8x32xf32>
      %42 = tpu.matmul %41, %23, %cst_28 {dimension_numbers = #tpu.dot_dimension_numbers<[1], [0], [0], [1], [0, 0, 1, 1], [], []>} : vector<8x128xbf16>, vector<128x32xbf16>, vector<8x32xf32> -> vector<8x32xf32>
      %c0_29 = arith.constant 0 : index
      %c0_30 = arith.constant 0 : index
      %c0_31 = arith.constant 0 : index
      %c0_32 = arith.constant 0 : index
      %43 = vector.load %arg11[%c0_29, %c0_30, %c0_31, %c0_32] : memref<1x1x8x32xf32, #tpu.memory_space<vmem>>, vector<1x1x8x32xf32>
      %44 = vector.shape_cast %43 : vector<1x1x8x32xf32> to vector<8x32xf32>
      %45 = vector.shape_cast %42 : vector<8x32xf32> to vector<1x1x8x32xf32>
      tpu.vector_store %arg11[%c0_29, %c0_30, %c0_31, %c0_32], %45 {strides = array<i32>} : memref<1x1x8x32xf32, #tpu.memory_space<vmem>>, vector<1x1x8x32xf32>,
    } else {
    }
    %c0_i32_1 = arith.constant 0 : i32
    %5 = arith.cmpi sgt, %arg1, %c0_i32_1 : i32
    %6 = arith.extui %5 : i1 to i32
    %c0_i32_2 = arith.constant 0 : i32
    %7 = arith.cmpi ne, %6, %c0_i32_2 : i32
    scf.if %7 {
      %c0 = arith.constant 0 : index
      %c0_3 = arith.constant 0 : index
      %8 = vector.load %arg12[%c0, %c0_3] : memref<128x128xbf16, #tpu.memory_space<vmem>>, vector<128x128xbf16>
      %c0_4 = arith.constant 0 : index
      %c0_5 = arith.constant 0 : index
      %9 = vector.load %arg2[%c0_4, %c0_5] : memref<128x128xbf16, #tpu.memory_space<vmem>>, vector<128x128xbf16>
      %cst = arith.constant dense<0.000000e+00> : vector<128x128xf32>
      %10 = tpu.matmul %8, %9, %cst {dimension_numbers = #tpu.dot_dimension_numbers<[1], [0], [0], [1], [0, 0, 1, 1], [], []>} : vector<128x128xbf16>, vector<128x128xbf16>, vector<128x128xf32> -> vector<128x128xf32>
      %11 = arith.truncf %10 : vector<128x128xf32> to vector<128x128xbf16>
      %c0_6 = arith.constant 0 : index
      %c0_7 = arith.constant 0 : index
      %12 = vector.load %arg12[%c0_6, %c0_7] : memref<128x128xbf16, #tpu.memory_space<vmem>>, vector<128x128xbf16>
      tpu.vector_store %arg12[%c0_6, %c0_7], %11 {strides = array<i32>} : memref<128x128xbf16, #tpu.memory_space<vmem>>, vector<128x128xbf16>,
      %cst_8 = arith.constant 1.001360e-04 : bf16
      %13 = vector.broadcast %cst_8 : bf16 to vector<128x128xbf16>
      %14 = arith.cmpf oge, %11, %13 : vector<128x128xbf16>
      %c0_i32_9 = arith.constant 0 : i32
      %15 = arith.sitofp %c0_i32_9 : i32 to bf16
      %16 = vector.broadcast %15 : bf16 to vector<128x128xbf16>
      %17 = arith.select %14, %11, %16 : vector<128x128xi1>, vector<128x128xbf16>
      %c0_10 = arith.constant 0 : index
      %c0_11 = arith.constant 0 : index
      %18 = vector.load %arg3[%c0_10, %c0_11] : memref<128x32xbf16, #tpu.memory_space<vmem>>, vector<128x32xbf16>
      %cst_12 = arith.constant dense<0.000000e+00> : vector<128x32xf32>
      %19 = tpu.matmul %17, %18, %cst_12 {dimension_numbers = #tpu.dot_dimension_numbers<[1], [0], [0], [1], [0, 0, 1, 1], [], []>} : vector<128x128xbf16>, vector<128x32xbf16>, vector<128x32xf32> -> vector<128x32xf32>
      %c0_13 = arith.constant 0 : index
      %c0_14 = arith.constant 0 : index
      %20 = vector.load %arg5[%c0_13, %c0_14] : memref<1x32xf32, #tpu.memory_space<vmem>>, vector<1x32xf32>
      %21 = vector.broadcast %20 : vector<1x32xf32> to vector<128x32xf32>
      %22 = arith.addf %19, %21 : vector<128x32xf32>
      %cst_15 = arith.constant 0.000000e+00 : f32
      %23 = vector.broadcast %cst_15 : f32 to vector<128x32xf32>
      %24 = arith.maximumf %22, %23 : vector<128x32xf32>
      %25 = arith.truncf %24 : vector<128x32xf32> to vector<128x32xbf16>
      %c0_16 = arith.constant 0 : index
      %c0_17 = arith.constant 0 : index
      %26 = vector.load %arg6[%c0_16, %c0_17] : memref<32x32xbf16, #tpu.memory_space<vmem>>, vector<32x32xbf16>
      %cst_18 = arith.constant dense<0.000000e+00> : vector<128x32xf32>
      %27 = tpu.matmul %25, %26, %cst_18 {dimension_numbers = #tpu.dot_dimension_numbers<[1], [0], [0], [1], [0, 0, 1, 1], [], []>} : vector<128x32xbf16>, vector<32x32xbf16>, vector<128x32xf32> -> vector<128x32xf32>
      %c0_19 = arith.constant 0 : index
      %c0_20 = arith.constant 0 : index
      %28 = vector.load %arg7[%c0_19, %c0_20] : memref<1x32xf32, #tpu.memory_space<vmem>>, vector<1x32xf32>
      %29 = vector.broadcast %28 : vector<1x32xf32> to vector<128x32xf32>
      %30 = arith.addf %27, %29 : vector<128x32xf32>
      %cst_21 = arith.constant 0.000000e+00 : f32
      %31 = vector.broadcast %cst_21 : f32 to vector<128x32xf32>
      %32 = arith.maximumf %30, %31 : vector<128x32xf32>
      %33 = arith.truncf %32 : vector<128x32xf32> to vector<128x32xbf16>
      %c0_22 = arith.constant 0 : index
      %c0_23 = arith.constant 0 : index
      %34 = vector.load %arg8[%c0_22, %c0_23] : memref<32x128xbf16, #tpu.memory_space<vmem>>, vector<32x128xbf16>
      %cst_24 = arith.constant dense<0.000000e+00> : vector<128x128xf32>
      %35 = tpu.matmul %33, %34, %cst_24 {dimension_numbers = #tpu.dot_dimension_numbers<[1], [0], [0], [1], [0, 0, 1, 1], [], []>} : vector<128x32xbf16>, vector<32x128xbf16>, vector<128x128xf32> -> vector<128x128xf32>
      %c0_25 = arith.constant 0 : index
      %c0_26 = arith.constant 0 : index
      %36 = vector.load %arg9[%c0_25, %c0_26] : memref<1x128xf32, #tpu.memory_space<vmem>>, vector<1x128xf32>
      %37 = vector.broadcast %36 : vector<1x128xf32> to vector<128x128xf32>
      %38 = arith.addf %35, %37 : vector<128x128xf32>
      %39 = arith.truncf %38 : vector<128x128xf32> to vector<128x128xbf16>
      %c0_27 = arith.constant 0 : index
      %c0_28 = arith.constant 0 : index
      %c0_29 = arith.constant 0 : index
      %40 = vector.load %arg10[%c0_27, %c0_28, %c0_29] : memref<1x128x128xbf16, #tpu.memory_space<vmem>>, vector<1x128x128xbf16>
      %41 = vector.shape_cast %40 : vector<1x128x128xbf16> to vector<128x128xbf16>
      %42 = vector.shape_cast %39 : vector<128x128xbf16> to vector<1x128x128xbf16>
      tpu.vector_store %arg10[%c0_27, %c0_28, %c0_29], %42 {strides = array<i32>} : memref<1x128x128xbf16, #tpu.memory_space<vmem>>, vector<1x128x128xbf16>,
      %c0_30 = arith.constant 0 : index
      %c0_31 = arith.constant 0 : index
      %43 = vector.load %arg4[%c0_30, %c0_31] : memref<8x128xbf16, #tpu.memory_space<vmem>>, vector<8x128xbf16>
      %cst_32 = arith.constant dense<0.000000e+00> : vector<8x32xf32>
      %44 = tpu.matmul %43, %25, %cst_32 {dimension_numbers = #tpu.dot_dimension_numbers<[1], [0], [0], [1], [0, 0, 1, 1], [], []>} : vector<8x128xbf16>, vector<128x32xbf16>, vector<8x32xf32> -> vector<8x32xf32>
      %c0_33 = arith.constant 0 : index
      %c0_34 = arith.constant 0 : index
      %c0_35 = arith.constant 0 : index
      %c0_36 = arith.constant 0 : index
      %45 = vector.load %arg11[%c0_33, %c0_34, %c0_35, %c0_36] : memref<1x1x8x32xf32, #tpu.memory_space<vmem>>, vector<1x1x8x32xf32>
      %46 = vector.shape_cast %45 : vector<1x1x8x32xf32> to vector<8x32xf32>
      %47 = vector.shape_cast %44 : vector<8x32xf32> to vector<1x1x8x32xf32>
      tpu.vector_store %arg11[%c0_33, %c0_34, %c0_35, %c0_36], %47 {strides = array<i32>} : memref<1x1x8x32xf32, #tpu.memory_space<vmem>>, vector<1x1x8x32xf32>,
    } else {
    }
    return
  }
  func.func @transform_0(%arg0: i32, %arg1: i32) -> (i32, i32) {
    %c0_i32 = arith.constant 0 : i32
    %c0_i32_0 = arith.constant 0 : i32
    %c0_i32_1 = arith.constant 0 : i32
    return %c0_i32, %c0_i32_0 : i32, i32
  }
  func.func @transform_1(%arg0: i32, %arg1: i32) -> (i32, i32) {
    %c0_i32 = arith.constant 0 : i32
    %c0_i32_0 = arith.constant 0 : i32
    %c0_i32_1 = arith.constant 0 : i32
    return %c0_i32, %c0_i32_0 : i32, i32
  }
  func.func @transform_2(%arg0: i32, %arg1: i32) -> (i32, i32) {
    %c0_i32 = arith.constant 0 : i32
    %c0_i32_0 = arith.constant 0 : i32
    return %c0_i32, %arg0 : i32, i32
  }
  func.func @transform_3(%arg0: i32, %arg1: i32) -> (i32, i32) {
    %c0_i32 = arith.constant 0 : i32
    %c0_i32_0 = arith.constant 0 : i32
    %c0_i32_1 = arith.constant 0 : i32
    return %c0_i32, %c0_i32_0 : i32, i32
  }
  func.func @transform_4(%arg0: i32, %arg1: i32) -> (i32, i32) {
    %c0_i32 = arith.constant 0 : i32
    %c0_i32_0 = arith.constant 0 : i32
    %c0_i32_1 = arith.constant 0 : i32
    return %c0_i32, %c0_i32_0 : i32, i32
  }
  func.func @transform_5(%arg0: i32, %arg1: i32) -> (i32, i32) {
    %c0_i32 = arith.constant 0 : i32
    %c0_i32_0 = arith.constant 0 : i32
    %c0_i32_1 = arith.constant 0 : i32
    return %c0_i32, %c0_i32_0 : i32, i32
  }
  func.func @transform_6(%arg0: i32, %arg1: i32) -> (i32, i32) {
    %c0_i32 = arith.constant 0 : i32
    %c0_i32_0 = arith.constant 0 : i32
    %c0_i32_1 = arith.constant 0 : i32
    return %c0_i32, %c0_i32_0 : i32, i32
  }
  func.func @transform_7(%arg0: i32, %arg1: i32) -> (i32, i32) {
    %c0_i32 = arith.constant 0 : i32
    %c0_i32_0 = arith.constant 0 : i32
    %c0_i32_1 = arith.constant 0 : i32
    return %c0_i32, %c0_i32_0 : i32, i32
  }
  func.func @transform_8(%arg0: i32, %arg1: i32) -> (i32, i32, i32) {
    %c0_i32 = arith.constant 0 : i32
    %c0_i32_0 = arith.constant 0 : i32
    return %arg1, %arg0, %c0_i32 : i32, i32, i32
  }
  func.func @transform_9(%arg0: i32, %arg1: i32) -> (i32, i32, i32, i32) {
    %c0_i32 = arith.constant 0 : i32
    %c0_i32_0 = arith.constant 0 : i32
    %c0_i32_1 = arith.constant 0 : i32
    return %arg0, %arg1, %c0_i32, %c0_i32_0 : i32, i32, i32, i32
  }
}

</mosaic_0001>

<llo_original>
// kernel: tpu_custom_call.1
$region0: #{tpu_custom_call.1}
  #allocation0 [shape = 'u32[]', space=smem, size = 0x4, offset = 0x4, fixed_abs, tag = 'smem constant byte address 0x4 - core index']
  #allocation1 [shape = 'u32[144,128]{1,0:T(1,128)}', space=vmem, size = 0x12000, scoped, tag = 'internal scratch']
  #allocation2 [shape = 'bf16[128,128]{1,0:T(16,128)(2,1)}', space=vmem, size = 0x8000, scoped, tag = 'scratch operand']
  %s0 = inlined_call_operand.hbm [shape: bf16[128,128], index: 0, kind: input, shape index: {}]
  %s1 = inlined_call_operand.hbm [shape: bf16[128,32], index: 1, kind: input, shape index: {}]
  %s2 = inlined_call_operand.hbm [shape: bf16[8,128], index: 2, kind: input, shape index: {}]
  %s3 = inlined_call_operand.hbm [shape: f32[1,32], index: 3, kind: input, shape index: {}]
  %s4 = inlined_call_operand.hbm [shape: bf16[32,32], index: 4, kind: input, shape index: {}]
  %s5 = inlined_call_operand.hbm [shape: f32[1,32], index: 5, kind: input, shape index: {}]
  %s6 = inlined_call_operand.hbm [shape: bf16[32,128], index: 6, kind: input, shape index: {}]
  %s7 = inlined_call_operand.hbm [shape: f32[1,128], index: 7, kind: input, shape index: {}]
  %s8 = inlined_call_operand.hbm [shape: bf16[4,128,128], index: 8, kind: output, shape index: {0}]
  %s9 = inlined_call_operand.hbm [shape: f32[1,4,8,32], index: 9, kind: output, shape index: {1}]
  %10 = xla_tuple %s8, %s9
  %s11 = sld [smem:[#allocation0]]
  $region113: #{tpu_custom_call.1} parent=0
    _
  %s13 = ssub.s32 1, %s11
  %s14 = scalar_select 0, %s13, %s11
  $region1: #{tpu_custom_call.1} parent=0
    #allocation3 [shape = 'u8[32768]{0}', space=vmem, size = 0x8000, scoped, tag = 'input window, operand 0, single buffered']
    #allocation4 [shape = 's32[2]{0}', space=sflag, size = 0x8, scoped, tag = 'scoped memory for tpu_custom_call.1']
    #allocation5 [shape = 's32[2]{0}', space=sflag, size = 0x8, scoped, tag = 'scoped memory for tpu_custom_call.1']
    #allocation6 [shape = 'u8[32768]{0}', space=vmem, size = 0x8000, scoped, tag = 'input window, operand 1, single buffered']
    #allocation7 [shape = 's32[1]{0}', space=sflag, size = 0x4, scoped, tag = 'scoped memory for tpu_custom_call.1']
    #allocation8 [shape = 'u8[2048]{0}', space=vmem, size = 0x800, scoped, tag = 'input window, operand 2, single buffered']
    #allocation9 [shape = 'u8[512]{0}', space=vmem, size = 0x400, scoped, tag = 'input window, operand 3, single buffered']
    #allocation10 [shape = 's32[1]{0}', space=sflag, size = 0x4, scoped, tag = 'scoped memory for tpu_custom_call.1']
    #allocation11 [shape = 'u8[8192]{0}', space=vmem, size = 0x2000, scoped, tag = 'input window, operand 4, single buffered']
    #allocation12 [shape = 'u8[512]{0}', space=vmem, size = 0x400, scoped, tag = 'input window, operand 5, single buffered']
    #allocation13 [shape = 's32[1]{0}', space=sflag, size = 0x4, scoped, tag = 'scoped memory for tpu_custom_call.1']
    #allocation14 [shape = 'u8[8192]{0}', space=vmem, size = 0x2000, scoped, tag = 'input window, operand 6, single buffered']
    #allocation15 [shape = 'u8[512]{0}', space=vmem, size = 0x400, scoped, tag = 'input window, operand 7, single buffered']
    #allocation16 [shape = 's32[1]{0}', space=sflag, size = 0x4, scoped, tag = 'scoped memory for tpu_custom_call.1']
    #allocation17 [shape = 'u8[65536]{0}', space=vmem, size = 0x10000, scoped, tag = 'output window, operand 0']
    #allocation18 [shape = 'u8[8192]{0}', space=vmem, size = 0x2000, scoped, tag = 'output window, operand 1']
    #allocation19 [shape = 's32[2]{0}', space=sflag, size = 0x8, scoped, tag = 'scoped memory for tpu_custom_call.1']
    %15 = vsyncpa [#allocation4], 0
    %16 = vsyncpa [#allocation7], 0
    %17 = vsyncpa [#allocation10], 0
    %18 = vsyncpa [#allocation13], 0
    %19 = vsyncpa [#allocation16], 0
    %20 = vsyncpa [#allocation5], 0
    %s21 = scalar_lea.sflag [#allocation5], 1
    %22 = vsyncpa %s21, 0
    %23 = vsyncpa [#allocation19], 0
    %s24 = scalar_lea.sflag [#allocation19], 1
    %25 = vsyncpa %s24, 0
    loop: start=0, step=1, limit=6
    $region2: #{tpu_custom_call.1} parent=1 // loop_pre_header
      _
    $region3: #{tpu_custom_call.1} parent=1 // loop_header
      %s27 = sphi 0, %s31
      %p28 = scmp.ge.s32.totalorder %s27, 6
      %s34 = sphi 0, %s46
      %s35 = sphi 0, %s42
      %s36 = sphi 0, %s34
      %s37 = sphi 0, %s35
      %s38 = sphi 0, %s36
      %s39 = sphi 0, %s37
      %s47 = sphi 0, %s47
      %s49 = sphi 0, %s47
      %s50 = sphi 0, %s49
      %s64 = sphi 0, %s50
      %s68 = sphi 0, %s68
      %s70 = sphi 0, %s68
      %s71 = sphi 0, %s70
      %s85 = sphi 0, %s71
      %s91 = sphi 0, %s93
      %s94 = sphi 0, %s91
      %s95 = sphi 0, %s94
      %s111 = sphi 0, %s95
      %s115 = sphi 0, %s115
      %s117 = sphi 0, %s115
      %s118 = sphi 0, %s117
      %s132 = sphi 0, %s118
      %s136 = sphi 0, %s136
      %s138 = sphi 0, %s136
      %s139 = sphi 0, %s138
      %s153 = sphi 0, %s139
      %s157 = sphi 0, %s157
      %s159 = sphi 0, %s157
      %s160 = sphi 0, %s159
      %s174 = sphi 0, %s160
      %s178 = sphi 0, %s178
      %s180 = sphi 0, %s178
      %s181 = sphi 0, %s180
      %s195 = sphi 0, %s181
      %s199 = sphi 0, %s199
      %s201 = sphi 0, %s199
      %s202 = sphi 0, %s201
      %s216 = sphi 0, %s202
      %s224 = sphi 0, %s226
      %s227 = sphi 0, %s224
      %s228 = sphi 0, %s227
      %s244 = sphi 0, %s228
      %s252 = sphi 0, %s254
      %s255 = sphi 0, %s252
      %s256 = sphi 0, %s255
      %s272 = sphi 0, %s256
    $region4: #{tpu_custom_call.1} parent=1 // loop_header_branch
      %30 = sbr.rel (%p28) target = $region8
    $region5: #{tpu_custom_call.1} parent=1 // loop_body
      %s32 = ssub.s32 %s27, 1
      %s33 = ssub.s32 %s27, 2
      %s40 = sadd.s32 1, %s35
      %p41 = scmp.ge.s32.totalorder %s40, 4
      %s42 = scalar_select %p41, 0, %s40
      %s43 = sadd.s32 1, %s34
      %s44 = scalar_select %p41, %s43, %s34
      %p45 = scmp.ge.s32.totalorder %s44, 1
      %s46 = scalar_select %p45, 0, %s44
      %s48 = sadd.s32 %s47, 1
      %p51 = scmp.eq.s32.totalorder %s27, 3
      %p52 = scmp.ne.s32.totalorder %s47, %s49
      %p53 = scmp.eq.s32.totalorder %s27, 0
      %p54 = por %p52, %p53
      %p55 = scmp.ne.s32.totalorder %s47, %s49
      %p56 = scmp.eq.s32.totalorder %s32, 3
      %p57 = por %p55, %p56
      %p58 = scmp.ne.s32.totalorder %s49, %s50
      %p59 = scmp.eq.s32.totalorder %s32, 0
      %p60 = por %p58, %p59
      %p61 = scmp.ne.s32.totalorder %s49, %s50
      %p62 = scmp.eq.s32.totalorder %s33, 3
      %p63 = por %p61, %p62
      %p65 = scmp.ne.s32.totalorder %s50, %s64
      %p66 = scmp.eq.s32.totalorder %s33, 0
      %p67 = por %p65, %p66
      %s69 = sadd.s32 %s68, 1
      %p72 = scmp.eq.s32.totalorder %s27, 3
      %p73 = scmp.ne.s32.totalorder %s68, %s70
      %p74 = scmp.eq.s32.totalorder %s27, 0
      %p75 = por %p73, %p74
      %p76 = scmp.ne.s32.totalorder %s68, %s70
      %p77 = scmp.eq.s32.totalorder %s32, 3
      %p78 = por %p76, %p77
      %p79 = scmp.ne.s32.totalorder %s70, %s71
      %p80 = scmp.eq.s32.totalorder %s32, 0
      %p81 = por %p79, %p80
      %p82 = scmp.ne.s32.totalorder %s70, %s71
      %p83 = scmp.eq.s32.totalorder %s33, 3
      %p84 = por %p82, %p83
      %p86 = scmp.ne.s32.totalorder %s71, %s85
      %p87 = scmp.eq.s32.totalorder %s33, 0
      %p88 = por %p86, %p87
      %s89 = ssub.s32 %s34, %s46
      %p90 = scmp.eq.s32.totalorder %s89, 0
      %s92 = sadd.s32 %s91, 1
      %s93 = scalar_select %p90, %s91, %s92
      %p96 = pneg %p90
      %p97 = scmp.eq.s32.totalorder %s27, 3
      %p98 = por %p96, %p97
      %p99 = scmp.ne.s32.totalorder %s91, %s94
      %p100 = scmp.eq.s32.totalorder %s27, 0
      %p101 = por %p99, %p100
      %p102 = scmp.ne.s32.totalorder %s91, %s94
      %p103 = scmp.eq.s32.totalorder %s32, 3
      %p104 = por %p102, %p103
      %p105 = scmp.ne.s32.totalorder %s94, %s95
      %p106 = scmp.eq.s32.totalorder %s32, 0
      %p107 = por %p105, %p106
      %p108 = scmp.ne.s32.totalorder %s94, %s95
      %p109 = scmp.eq.s32.totalorder %s33, 3
      %p110 = por %p108, %p109
      %p112 = scmp.ne.s32.totalorder %s95, %s111
      %p113 = scmp.eq.s32.totalorder %s33, 0
      %p114 = por %p112, %p113
      %s116 = sadd.s32 %s115, 1
      %p119 = scmp.eq.s32.totalorder %s27, 3
      %p120 = scmp.ne.s32.totalorder %s115, %s117
      %p121 = scmp.eq.s32.totalorder %s27, 0
      %p122 = por %p120, %p121
      %p123 = scmp.ne.s32.totalorder %s115, %s117
      %p124 = scmp.eq.s32.totalorder %s32, 3
      %p125 = por %p123, %p124
      %p126 = scmp.ne.s32.totalorder %s117, %s118
      %p127 = scmp.eq.s32.totalorder %s32, 0
      %p128 = por %p126, %p127
      %p129 = scmp.ne.s32.totalorder %s117, %s118
      %p130 = scmp.eq.s32.totalorder %s33, 3
      %p131 = por %p129, %p130
      %p133 = scmp.ne.s32.totalorder %s118, %s132
      %p134 = scmp.eq.s32.totalorder %s33, 0
      %p135 = por %p133, %p134
      %s137 = sadd.s32 %s136, 1
      %p140 = scmp.eq.s32.totalorder %s27, 3
      %p141 = scmp.ne.s32.totalorder %s136, %s138
      %p142 = scmp.eq.s32.totalorder %s27, 0
      %p143 = por %p141, %p142
      %p144 = scmp.ne.s32.totalorder %s136, %s138
      %p145 = scmp.eq.s32.totalorder %s32, 3
      %p146 = por %p144, %p145
      %p147 = scmp.ne.s32.totalorder %s138, %s139
      %p148 = scmp.eq.s32.totalorder %s32, 0
      %p149 = por %p147, %p148
      %p150 = scmp.ne.s32.totalorder %s138, %s139
      %p151 = scmp.eq.s32.totalorder %s33, 3
      %p152 = por %p150, %p151
      %p154 = scmp.ne.s32.totalorder %s139, %s153
      %p155 = scmp.eq.s32.totalorder %s33, 0
      %p156 = por %p154, %p155
      %s158 = sadd.s32 %s157, 1
      %p161 = scmp.eq.s32.totalorder %s27, 3
      %p162 = scmp.ne.s32.totalorder %s157, %s159
      %p163 = scmp.eq.s32.totalorder %s27, 0
      %p164 = por %p162, %p163
      %p165 = scmp.ne.s32.totalorder %s157, %s159
      %p166 = scmp.eq.s32.totalorder %s32, 3
      %p167 = por %p165, %p166
      %p168 = scmp.ne.s32.totalorder %s159, %s160
      %p169 = scmp.eq.s32.totalorder %s32, 0
      %p170 = por %p168, %p169
      %p171 = scmp.ne.s32.totalorder %s159, %s160
      %p172 = scmp.eq.s32.totalorder %s33, 3
      %p173 = por %p171, %p172
      %p175 = scmp.ne.s32.totalorder %s160, %s174
      %p176 = scmp.eq.s32.totalorder %s33, 0
      %p177 = por %p175, %p176
      %s179 = sadd.s32 %s178, 1
      %p182 = scmp.eq.s32.totalorder %s27, 3
      %p183 = scmp.ne.s32.totalorder %s178, %s180
      %p184 = scmp.eq.s32.totalorder %s27, 0
      %p185 = por %p183, %p184
      %p186 = scmp.ne.s32.totalorder %s178, %s180
      %p187 = scmp.eq.s32.totalorder %s32, 3
      %p188 = por %p186, %p187
      %p189 = scmp.ne.s32.totalorder %s180, %s181
      %p190 = scmp.eq.s32.totalorder %s32, 0
      %p191 = por %p189, %p190
      %p192 = scmp.ne.s32.totalorder %s180, %s181
      %p193 = scmp.eq.s32.totalorder %s33, 3
      %p194 = por %p192, %p193
      %p196 = scmp.ne.s32.totalorder %s181, %s195
      %p197 = scmp.eq.s32.totalorder %s33, 0
      %p198 = por %p196, %p197
      %s200 = sadd.s32 %s199, 1
      %p203 = scmp.eq.s32.totalorder %s27, 3
      %p204 = scmp.ne.s32.totalorder %s199, %s201
      %p205 = scmp.eq.s32.totalorder %s27, 0
      %p206 = por %p204, %p205
      %p207 = scmp.ne.s32.totalorder %s199, %s201
      %p208 = scmp.eq.s32.totalorder %s32, 3
      %p209 = por %p207, %p208
      %p210 = scmp.ne.s32.totalorder %s201, %s202
      %p211 = scmp.eq.s32.totalorder %s32, 0
      %p212 = por %p210, %p211
      %p213 = scmp.ne.s32.totalorder %s201, %s202
      %p214 = scmp.eq.s32.totalorder %s33, 3
      %p215 = por %p213, %p214
      %p217 = scmp.ne.s32.totalorder %s202, %s216
      %p218 = scmp.eq.s32.totalorder %s33, 0
      %p219 = por %p217, %p218
      %s220 = ssub.s32 %s35, %s42
      %s221 = ssub.s32 %s34, %s46
      %s222 = sor.u32 %s220, %s221
      %p223 = scmp.eq.s32.totalorder %s222, 0
      %s225 = sadd.s32 %s224, 1
      %s226 = scalar_select %p223, %s224, %s225
      %p229 = pneg %p223
      %p230 = scmp.eq.s32.totalorder %s27, 3
      %p231 = por %p229, %p230
      %p232 = scmp.ne.s32.totalorder %s224, %s227
      %p233 = scmp.eq.s32.totalorder %s27, 0
      %p234 = por %p232, %p233
      %p235 = scmp.ne.s32.totalorder %s224, %s227
      %p236 = scmp.eq.s32.totalorder %s32, 3
      %p237 = por %p235, %p236
      %p238 = scmp.ne.s32.totalorder %s227, %s228
      %p239 = scmp.eq.s32.totalorder %s32, 0
      %p240 = por %p238, %p239
      %p241 = scmp.ne.s32.totalorder %s227, %s228
      %p242 = scmp.eq.s32.totalorder %s33, 3
      %p243 = por %p241, %p242
      %p245 = scmp.ne.s32.totalorder %s228, %s244
      %p246 = scmp.eq.s32.totalorder %s33, 0
      %p247 = por %p245, %p246
      %s248 = ssub.s32 %s34, %s46
      %s249 = ssub.s32 %s35, %s42
      %s250 = sor.u32 %s248, %s249
      %p251 = scmp.eq.s32.totalorder %s250, 0
      %s253 = sadd.s32 %s252, 1
      %s254 = scalar_select %p251, %s252, %s253
      %p257 = pneg %p251
      %p258 = scmp.eq.s32.totalorder %s27, 3
      %p259 = por %p257, %p258
      %p260 = scmp.ne.s32.totalorder %s252, %s255
      %p261 = scmp.eq.s32.totalorder %s27, 0
      %p262 = por %p260, %p261
      %p263 = scmp.ne.s32.totalorder %s252, %s255
      %p264 = scmp.eq.s32.totalorder %s32, 3
      %p265 = por %p263, %p264
      %p266 = scmp.ne.s32.totalorder %s255, %s256
      %p267 = scmp.eq.s32.totalorder %s32, 0
      %p268 = por %p266, %p267
      %p269 = scmp.ne.s32.totalorder %s255, %s256
      %p270 = scmp.eq.s32.totalorder %s33, 3
      %p271 = por %p269, %p270
      %p273 = scmp.ne.s32.totalorder %s256, %s272
      %p274 = scmp.eq.s32.totalorder %s33, 0
      %p275 = por %p273, %p274
      %p276 = scmp.le.s32.totalorder 1, %s27
      %p277 = scmp.lt.s32.totalorder %s27, 5
      %p278 = pnand %p276, %p277
      %p279 = pneg %p278
      // Predicated region
      $region9: #{tpu_custom_call.1} parent=5 // pred_check
        _
      $region10: #{tpu_custom_call.1} parent=5 // pred_check_branch
        %281 = sbr.rel (%p278) target = $region12
      $region11: #{tpu_custom_call.1} parent=5 // pred_region
        %s282 = ssub.s32 %s27, 1
        // Predicated region
        $region13: #{tpu_custom_call.1} parent=11 // pred_check
          %p283 = pneg %p60
        $region14: #{tpu_custom_call.1} parent=11 // pred_check_branch
          %285 = sbr.rel (%p283) target = $region16
        $region15: #{tpu_custom_call.1} parent=11 // pred_region
          %s287 = ssub.s32 1024, 1024
          %288 = vsyncadd [#allocation4], %s287
          %s289 = sshll.u32 [#allocation3], 4
          %s290 = int_to_ptr.vmem [resolvable:$true] %s289
          %295 = dma.hbm_to_vmem [thread:$0]  %s0, 1024, %s290, [#allocation4], 64, 64, 4
        $region16: #{tpu_custom_call.1} parent=11 // pred_fallthru
          _
        // Predicated region
        $region17: #{tpu_custom_call.1} parent=11 // pred_check
          %p296 = pneg %p81
        $region18: #{tpu_custom_call.1} parent=11 // pred_check_branch
          %298 = sbr.rel (%p296) target = $region20
        $region19: #{tpu_custom_call.1} parent=11 // pred_region
          %s300 = ssub.s32 1024, 1024
          %301 = vsyncadd [#allocation7], %s300
          %s302 = sshll.u32 [#allocation6], 4
          %s303 = int_to_ptr.vmem [resolvable:$true] %s302
          %308 = dma.hbm_to_vmem [thread:$0]  %s1, 1024, %s303, [#allocation7], 64, 64, 4
        $region20: #{tpu_custom_call.1} parent=11 // pred_fallthru
          _
        // Predicated region
        $region21: #{tpu_custom_call.1} parent=11 // pred_check
          %p309 = pneg %p107
        $region22: #{tpu_custom_call.1} parent=11 // pred_check_branch
          %311 = sbr.rel (%p309) target = $region24
        $region23: #{tpu_custom_call.1} parent=11 // pred_region
          %s313 = ssub.s32 64, 64
          %314 = vsyncadd [#allocation7], %s313
          %s315 = smul.addr %s36, 64
          %s316 = scalar_lea.hbm %s2, %s315
          %s318 = sshll.u32 [#allocation8], 4
          %s319 = int_to_ptr.vmem [resolvable:$true] %s318
          %321 = dma.hbm_to_vmem [thread:$0]  %s316, 64, %s319, [#allocation7]
        $region24: #{tpu_custom_call.1} parent=11 // pred_fallthru
          _
        // Predicated region
        $region25: #{tpu_custom_call.1} parent=11 // pred_check
          %p322 = pneg %p128
        $region26: #{tpu_custom_call.1} parent=11 // pred_check_branch
          %324 = sbr.rel (%p322) target = $region28
        $region27: #{tpu_custom_call.1} parent=11 // pred_region
          %s326 = ssub.s32 16, 16
          %327 = vsyncadd [#allocation10], %s326
          %s329 = sshll.u32 [#allocation9], 4
          %s330 = int_to_ptr.vmem [resolvable:$true] %s329
          %332 = dma.hbm_to_vmem [thread:$0]  %s3, 16, %s330, [#allocation10]
        $region28: #{tpu_custom_call.1} parent=11 // pred_fallthru
          _
        // Predicated region
        $region29: #{tpu_custom_call.1} parent=11 // pred_check
          %p333 = pneg %p149
        $region30: #{tpu_custom_call.1} parent=11 // pred_check_branch
          %335 = sbr.rel (%p333) target = $region32
        $region31: #{tpu_custom_call.1} parent=11 // pred_region
          %s337 = ssub.s32 256, 256
          %338 = vsyncadd [#allocation10], %s337
          %s339 = sshll.u32 [#allocation11], 4
          %s340 = int_to_ptr.vmem [resolvable:$true] %s339
          %345 = dma.hbm_to_vmem [thread:$0]  %s4, 256, %s340, [#allocation10], 64, 64, 4
        $region32: #{tpu_custom_call.1} parent=11 // pred_fallthru
          _
        // Predicated region
        $region33: #{tpu_custom_call.1} parent=11 // pred_check
          %p346 = pneg %p170
        $region34: #{tpu_custom_call.1} parent=11 // pred_check_branch
          %348 = sbr.rel (%p346) target = $region36
        $region35: #{tpu_custom_call.1} parent=11 // pred_region
          %s350 = ssub.s32 16, 16
          %351 = vsyncadd [#allocation13], %s350
          %s353 = sshll.u32 [#allocation12], 4
          %s354 = int_to_ptr.vmem [resolvable:$true] %s353
          %356 = dma.hbm_to_vmem [thread:$0]  %s5, 16, %s354, [#allocation13]
        $region36: #{tpu_custom_call.1} parent=11 // pred_fallthru
          _
        // Predicated region
        $region37: #{tpu_custom_call.1} parent=11 // pred_check
          %p357 = pneg %p191
        $region38: #{tpu_custom_call.1} parent=11 // pred_check_branch
          %359 = sbr.rel (%p357) target = $region40
        $region39: #{tpu_custom_call.1} parent=11 // pred_region
          %s361 = ssub.s32 256, 256
          %362 = vsyncadd [#allocation13], %s361
          %s363 = sshll.u32 [#allocation14], 4
          %s364 = int_to_ptr.vmem [resolvable:$true] %s363
          %369 = dma.hbm_to_vmem [thread:$0]  %s6, 256, %s364, [#allocation13], 64, 64, 4
        $region40: #{tpu_custom_call.1} parent=11 // pred_fallthru
          _
        // Predicated region
        $region41: #{tpu_custom_call.1} parent=11 // pred_check
          %p370 = pneg %p212
        $region42: #{tpu_custom_call.1} parent=11 // pred_check_branch
          %372 = sbr.rel (%p370) target = $region44
        $region43: #{tpu_custom_call.1} parent=11 // pred_region
          %s374 = ssub.s32 16, 16
          %375 = vsyncadd [#allocation16], %s374
          %s377 = sshll.u32 [#allocation15], 4
          %s378 = int_to_ptr.vmem [resolvable:$true] %s377
          %380 = dma.hbm_to_vmem [thread:$0]  %s7, 16, %s378, [#allocation16]
        $region44: #{tpu_custom_call.1} parent=11 // pred_fallthru
          _
      $region12: #{tpu_custom_call.1} parent=5 // pred_fallthru
        _
      %p381 = scmp.lt.s32.totalorder %s27, 4
      // Predicated region
      $region45: #{tpu_custom_call.1} parent=5 // pred_check
        %p382 = pneg %p381
      $region46: #{tpu_custom_call.1} parent=5 // pred_check_branch
        %384 = sbr.rel (%p382) target = $region48
      $region47: #{tpu_custom_call.1} parent=5 // pred_region
        _
      $region48: #{tpu_custom_call.1} parent=5 // pred_fallthru
        _
      %p385 = scmp.le.s32.totalorder 1, %s27
      %p386 = scmp.lt.s32.totalorder %s27, 5
      %p387 = pnand %p385, %p386
      %p388 = pneg %p387
      // Predicated region
      $region49: #{tpu_custom_call.1} parent=5 // pred_check
        _
      $region50: #{tpu_custom_call.1} parent=5 // pred_check_branch
        %390 = sbr.rel (%p387) target = $region52
      $region51: #{tpu_custom_call.1} parent=5 // pred_region
        %s391 = ssub.s32 %s27, 1
        // Predicated region
        $region53: #{tpu_custom_call.1} parent=51 // pred_check
          %p392 = pneg %p60
        $region54: #{tpu_custom_call.1} parent=51 // pred_check_branch
          %394 = sbr.rel (%p392) target = $region56
        $region55: #{tpu_custom_call.1} parent=51 // pred_region
          %395 = dma.done [#allocation4], 1024
        $region56: #{tpu_custom_call.1} parent=51 // pred_fallthru
          _
        // Predicated region
        $region57: #{tpu_custom_call.1} parent=51 // pred_check
          %p396 = pneg %p81
        $region58: #{tpu_custom_call.1} parent=51 // pred_check_branch
          %398 = sbr.rel (%p396) target = $region60
        $region59: #{tpu_custom_call.1} parent=51 // pred_region
          %399 = dma.done [#allocation7], 1024
        $region60: #{tpu_custom_call.1} parent=51 // pred_fallthru
          _
        // Predicated region
        $region61: #{tpu_custom_call.1} parent=51 // pred_check
          %p400 = pneg %p107
        $region62: #{tpu_custom_call.1} parent=51 // pred_check_branch
          %402 = sbr.rel (%p400) target = $region64
        $region63: #{tpu_custom_call.1} parent=51 // pred_region
          %403 = dma.done [#allocation7], 64
        $region64: #{tpu_custom_call.1} parent=51 // pred_fallthru
          _
        // Predicated region
        $region65: #{tpu_custom_call.1} parent=51 // pred_check
          %p404 = pneg %p128
        $region66: #{tpu_custom_call.1} parent=51 // pred_check_branch
          %406 = sbr.rel (%p404) target = $region68
        $region67: #{tpu_custom_call.1} parent=51 // pred_region
          %407 = dma.done [#allocation10], 16
        $region68: #{tpu_custom_call.1} parent=51 // pred_fallthru
          _
        // Predicated region
        $region69: #{tpu_custom_call.1} parent=51 // pred_check
          %p408 = pneg %p149
        $region70: #{tpu_custom_call.1} parent=51 // pred_check_branch
          %410 = sbr.rel (%p408) target = $region72
        $region71: #{tpu_custom_call.1} parent=51 // pred_region
          %411 = dma.done [#allocation10], 256
        $region72: #{tpu_custom_call.1} parent=51 // pred_fallthru
          _
        // Predicated region
        $region73: #{tpu_custom_call.1} parent=51 // pred_check
          %p412 = pneg %p170
        $region74: #{tpu_custom_call.1} parent=51 // pred_check_branch
          %414 = sbr.rel (%p412) target = $region76
        $region75: #{tpu_custom_call.1} parent=51 // pred_region
          %415 = dma.done [#allocation13], 16
        $region76: #{tpu_custom_call.1} parent=51 // pred_fallthru
          _
        // Predicated region
        $region77: #{tpu_custom_call.1} parent=51 // pred_check
          %p416 = pneg %p191
        $region78: #{tpu_custom_call.1} parent=51 // pred_check_branch
          %418 = sbr.rel (%p416) target = $region80
        $region79: #{tpu_custom_call.1} parent=51 // pred_region
          %419 = dma.done [#allocation13], 256
        $region80: #{tpu_custom_call.1} parent=51 // pred_fallthru
          _
        // Predicated region
        $region81: #{tpu_custom_call.1} parent=51 // pred_check
          %p420 = pneg %p212
        $region82: #{tpu_custom_call.1} parent=51 // pred_check_branch
          %422 = sbr.rel (%p420) target = $region84
        $region83: #{tpu_custom_call.1} parent=51 // pred_region
          %423 = dma.done [#allocation16], 16
        $region84: #{tpu_custom_call.1} parent=51 // pred_fallthru
          _
        %p424 = pneg %p60
        %p425 = pneg %p57
        %p426 = pneg %p81
        %p427 = pneg %p78
        %p428 = pneg %p107
        %p429 = pneg %p104
        %p430 = pneg %p128
        %p431 = pneg %p125
        %p432 = pneg %p149
        %p433 = pneg %p146
        %p434 = pneg %p170
        %p435 = pneg %p167
        %p436 = pneg %p191
        %p437 = pneg %p188
        %p438 = pneg %p212
        %p439 = pneg %p209
        %p440 = pneg %p240
        %p441 = pneg %p237
        %s442 = sand.u32 %s227, 1
        %s443 = scalar_lea.sflag [#allocation5], %s442
        %s444 = sand.u32 %s227, 1
        %s445 = smul.addr %s444, 64
        %s446 = scalar_lea.vmem [#allocation17], %s445
        %p447 = pneg %p268
        %p448 = pneg %p265
        %s449 = sand.u32 %s255, 1
        %s450 = scalar_lea.sflag [#allocation19], %s449
        %s451 = sand.u32 %s255, 1
        %s452 = smul.addr %s451, 8
        %s453 = scalar_lea.vmem [#allocation18], %s452
        %s454 = smul.u32 16, %s36
        %s457 = smul.u32 %s36, 128
        %p458 = scmp.eq.s32.totalorder %s37, 0
        // Predicated region
        $region85: #{tpu_custom_call.1} parent=51 // pred_check
          %p459 = pneg %p458
        $region86: #{tpu_custom_call.1} parent=51 // pred_check_branch
          %461 = sbr.rel (%p459) target = $region88
        $region87: #{tpu_custom_call.1} parent=51 // pred_region
          %s462 = sshra.s32 %s457, 3
          %s463 = sand.u32 %s457, 7
          %s464 = smul.addr %s462, 4
          %s465 = scalar_lea.vmem [#allocation3], %s464
          %v466 = vld [vmem:[%s465] sm:$0xf]
          %v467 = vld [vmem:[%s465 + $0x4] sm:$0xf]
          %v468 = vld [vmem:[%s465 + $0x8] sm:$0xf]
          %v469 = vld [vmem:[%s465 + $0xc] sm:$0xf]
          %v470 = vld [vmem:[%s465 + $0x10] sm:$0xf]
          %v471 = vld [vmem:[%s465 + $0x14] sm:$0xf]
          %v472 = vld [vmem:[%s465 + $0x18] sm:$0xf]
          %v473 = vld [vmem:[%s465 + $0x1c] sm:$0xf]
          %v474 = vld [vmem:[%s465 + $0x20] sm:$0xf]
          %v475 = vld [vmem:[%s465 + $0x24] sm:$0xf]
          %v476 = vld [vmem:[%s465 + $0x28] sm:$0xf]
          %v477 = vld [vmem:[%s465 + $0x2c] sm:$0xf]
          %v478 = vld [vmem:[%s465 + $0x30] sm:$0xf]
          %v479 = vld [vmem:[%s465 + $0x34] sm:$0xf]
          %v480 = vld [vmem:[%s465 + $0x38] sm:$0xf]
          %v481 = vld [vmem:[%s465 + $0x3c] sm:$0xf]
          %v498 = vunpack.c.l.b16 %v466
          %v499 = vunpack.c.l.b16 %v467
          %v500 = vunpack.c.l.b16 %v468
          %v501 = vunpack.c.l.b16 %v469
          %v502 = vunpack.c.l.b16 %v470
          %v503 = vunpack.c.l.b16 %v471
          %v504 = vunpack.c.l.b16 %v472
          %v505 = vunpack.c.l.b16 %v473
          %v506 = vunpack.c.l.b16 %v474
          %v507 = vunpack.c.l.b16 %v475
          %v508 = vunpack.c.l.b16 %v476
          %v509 = vunpack.c.l.b16 %v477
          %v510 = vunpack.c.l.b16 %v478
          %v511 = vunpack.c.l.b16 %v479
          %v512 = vunpack.c.l.b16 %v480
          %v513 = vunpack.c.l.b16 %v481
          %v514 = vpack.c.b16 %v499, %v498
          %v515 = vpack.c.b16 %v501, %v500
          %v516 = vpack.c.b16 %v503, %v502
          %v517 = vpack.c.b16 %v505, %v504
          %v518 = vpack.c.b16 %v507, %v506
          %v519 = vpack.c.b16 %v509, %v508
          %v520 = vpack.c.b16 %v511, %v510
          %v521 = vpack.c.b16 %v513, %v512
          %530 = vst [vmem:[#allocation2] sm:$0xff] %v514
          %531 = vst [vmem:[#allocation2 + $0x8] sm:$0xff] %v515
          %532 = vst [vmem:[#allocation2 + $0x10] sm:$0xff] %v516
          %533 = vst [vmem:[#allocation2 + $0x18] sm:$0xff] %v517
          %534 = vst [vmem:[#allocation2 + $0x20] sm:$0xff] %v518
          %535 = vst [vmem:[#allocation2 + $0x28] sm:$0xff] %v519
          %536 = vst [vmem:[#allocation2 + $0x30] sm:$0xff] %v520
          %537 = vst [vmem:[#allocation2 + $0x38] sm:$0xff] %v521
          %vm538 = vcmp.ge.bf16.partialorder %v466, 953301202
          %vm539 = vcmp.ge.bf16.partialorder %v467, 953301202
          %vm540 = vcmp.ge.bf16.partialorder %v468, 953301202
          %vm541 = vcmp.ge.bf16.partialorder %v469, 953301202
          %vm542 = vcmp.ge.bf16.partialorder %v470, 953301202
          %vm543 = vcmp.ge.bf16.partialorder %v471, 953301202
          %vm544 = vcmp.ge.bf16.partialorder %v472, 953301202
          %vm545 = vcmp.ge.bf16.partialorder %v473, 953301202
          %vm546 = vcmp.ge.bf16.partialorder %v474, 953301202
          %vm547 = vcmp.ge.bf16.partialorder %v475, 953301202
          %vm548 = vcmp.ge.bf16.partialorder %v476, 953301202
          %vm549 = vcmp.ge.bf16.partialorder %v477, 953301202
          %vm550 = vcmp.ge.bf16.partialorder %v478, 953301202
          %vm551 = vcmp.ge.bf16.partialorder %v479, 953301202
          %vm552 = vcmp.ge.bf16.partialorder %v480, 953301202
          %vm553 = vcmp.ge.bf16.partialorder %v481, 953301202
          %v554 = vsel %vm538, %v466, 0
          %v555 = vsel %vm539, %v467, 0
          %v556 = vsel %vm540, %v468, 0
          %v557 = vsel %vm541, %v469, 0
          %v558 = vsel %vm542, %v470, 0
          %v559 = vsel %vm543, %v471, 0
          %v560 = vsel %vm544, %v472, 0
          %v561 = vsel %vm545, %v473, 0
          %v562 = vsel %vm546, %v474, 0
          %v563 = vsel %vm547, %v475, 0
          %v564 = vsel %vm548, %v476, 0
          %v565 = vsel %vm549, %v477, 0
          %v566 = vsel %vm550, %v478, 0
          %v567 = vsel %vm551, %v479, 0
          %v568 = vsel %vm552, %v480, 0
          %v569 = vsel %vm553, %v481, 0
          %v570 = vld [vmem:[#allocation6] sm:$0xf]
          %v571 = vld [vmem:[#allocation6 + $0x4] sm:$0xf]
          %v572 = vld [vmem:[#allocation6 + $0x8] sm:$0xf]
          %v573 = vld [vmem:[#allocation6 + $0xc] sm:$0xf]
          %v574 = vld [vmem:[#allocation6 + $0x10] sm:$0xf]
          %v575 = vld [vmem:[#allocation6 + $0x14] sm:$0xf]
          %v576 = vld [vmem:[#allocation6 + $0x18] sm:$0xf]
          %v577 = vld [vmem:[#allocation6 + $0x1c] sm:$0xf]
          %v578 = vld [vmem:[#allocation6 + $0x20] sm:$0xf]
          %v579 = vld [vmem:[#allocation6 + $0x24] sm:$0xf]
          %v580 = vld [vmem:[#allocation6 + $0x28] sm:$0xf]
          %v581 = vld [vmem:[#allocation6 + $0x2c] sm:$0xf]
          %v582 = vld [vmem:[#allocation6 + $0x30] sm:$0xf]
          %v583 = vld [vmem:[#allocation6 + $0x34] sm:$0xf]
          %v584 = vld [vmem:[#allocation6 + $0x38] sm:$0xf]
          %v585 = vld [vmem:[#allocation6 + $0x3c] sm:$0xf]
          %v586 = vld [vmem:[#allocation9] sm:$0x1]
          %v588 = vlaneseq
          %v589 = vshrl.u32 %v588, 7
          %v590 = vsub.s32 0, %v589
          %v591 = vrot.slane %v586, %v590
          %v609 = vunpack.c.l.b16 %v554
          %v610 = vunpack.c.l.b16 %v555
          %v611 = vunpack.c.l.b16 %v556
          %v612 = vunpack.c.l.b16 %v557
          %v613 = vunpack.c.l.b16 %v558
          %v614 = vunpack.c.l.b16 %v559
          %v615 = vunpack.c.l.b16 %v560
          %v616 = vunpack.c.l.b16 %v561
          %v617 = vunpack.c.l.b16 %v562
          %v618 = vunpack.c.l.b16 %v563
          %v619 = vunpack.c.l.b16 %v564
          %v620 = vunpack.c.l.b16 %v565
          %v621 = vunpack.c.l.b16 %v566
          %v622 = vunpack.c.l.b16 %v567
          %v623 = vunpack.c.l.b16 %v568
          %v624 = vunpack.c.l.b16 %v569
          %v625 = vpack.c.b16 %v610, %v609
          %v626 = vpack.c.b16 %v612, %v611
          %v627 = vpack.c.b16 %v614, %v613
          %v628 = vpack.c.b16 %v616, %v615
          %v629 = vpack.c.b16 %v618, %v617
          %v630 = vpack.c.b16 %v620, %v619
          %v631 = vpack.c.b16 %v622, %v621
          %v632 = vpack.c.b16 %v624, %v623
          %v657 = vunpack.c.l.b16 %v570
          %v658 = vunpack.c.l.b16 %v571
          %v659 = vunpack.c.l.b16 %v572
          %v660 = vunpack.c.l.b16 %v573
          %v661 = vunpack.c.l.b16 %v574
          %v662 = vunpack.c.l.b16 %v575
          %v663 = vunpack.c.l.b16 %v576
          %v664 = vunpack.c.l.b16 %v577
          %v665 = vunpack.c.l.b16 %v578
          %v666 = vunpack.c.l.b16 %v579
          %v667 = vunpack.c.l.b16 %v580
          %v668 = vunpack.c.l.b16 %v581
          %v669 = vunpack.c.l.b16 %v582
          %v670 = vunpack.c.l.b16 %v583
          %v671 = vunpack.c.l.b16 %v584
          %v672 = vunpack.c.l.b16 %v585
          %v673 = vpack.c.b16 %v658, %v657
          %v674 = vpack.c.b16 %v660, %v659
          %v675 = vpack.c.b16 %v662, %v661
          %v676 = vpack.c.b16 %v664, %v663
          %v677 = vpack.c.b16 %v666, %v665
          %v678 = vpack.c.b16 %v668, %v667
          %v679 = vpack.c.b16 %v670, %v669
          %v680 = vpack.c.b16 %v672, %v671
          %689 = vmatprep.subr.bf16.mxu0 0
          %690 = vmatpush1.bf16.msra.mxu0 %v673
          %691 = vmatprep.subr.bf16.mxu0 0
          %692 = vmatpush1.bf16.msra.mxu0 %v674
          %693 = vmatprep.subr.bf16.mxu0 0
          %694 = vmatpush1.bf16.msra.mxu0 %v675
          %695 = vmatprep.subr.bf16.mxu0 0
          %696 = vmatpush1.bf16.msra.mxu0 %v676
          %697 = vmatprep.subr.bf16.mxu0 0
          %698 = vmatpush1.bf16.msra.mxu0 %v677
          %699 = vmatprep.subr.bf16.mxu0 0
          %700 = vmatpush1.bf16.msra.mxu0 %v678
          %701 = vmatprep.subr.bf16.mxu0 0
          %702 = vmatpush1.bf16.msra.mxu0 %v679
          %703 = vmatprep.subr.bf16.mxu0 0
          %704 = vmatpush1.bf16.msra.mxu0 %v680
          %705 = vmatprep.subr.bf16.mxu0 0
          %706 = vmatpush1.bf16.msra.mxu0 0
          %707 = vmatprep.subr.bf16.mxu0 0
          %708 = vmatpush1.bf16.msra.mxu0 0
          %709 = vmatprep.subr.bf16.mxu0 0
          %710 = vmatpush1.bf16.msra.mxu0 0
          %711 = vmatprep.subr.bf16.mxu0 0
          %712 = vmatpush1.bf16.msra.mxu0 0
          %713 = vmatprep.subr.bf16.mxu0 0
          %714 = vmatpush1.bf16.msra.mxu0 0
          %715 = vmatprep.subr.bf16.mxu0 0
          %716 = vmatpush1.bf16.msra.mxu0 0
          %717 = vmatprep.subr.bf16.mxu0 0
          %718 = vmatpush1.bf16.msra.mxu0 0
          %719 = vmatprep.subr.bf16.mxu0 0
          %720 = vmatpush1.bf16.msra.mxu0 0
          %721 = vmatprep.mubr.bf16.mxu0 0
          %722 = vmatmul.mubr.bf16.gmra.mrb[0].mxu0 %v625
          %v723 = vpop.f32.mrb[0].mxu0
          %v724 = vadd.f32 %v591, %v723
          %v725 = vpop.f32.mrb[0].mxu0
          %v726 = vpop.f32.mrb[0].mxu0
          %v727 = vadd.f32 %v591, %v726
          %v728 = vpop.f32.mrb[0].mxu0
          %729 = vmatprep.mubr.bf16.mxu0 0
          %730 = vmatmul.mubr.bf16.gmra.mrb[0].mxu0 %v626
          %v731 = vpop.f32.mrb[0].mxu0
          %v732 = vadd.f32 %v591, %v731
          %v733 = vpop.f32.mrb[0].mxu0
          %v734 = vpop.f32.mrb[0].mxu0
          %v735 = vadd.f32 %v591, %v734
          %v736 = vpop.f32.mrb[0].mxu0
          %737 = vmatprep.mubr.bf16.mxu0 0
          %738 = vmatmul.mubr.bf16.gmra.mrb[0].mxu0 %v627
          %v739 = vpop.f32.mrb[0].mxu0
          %v740 = vadd.f32 %v591, %v739
          %v741 = vpop.f32.mrb[0].mxu0
          %v742 = vpop.f32.mrb[0].mxu0
          %v743 = vadd.f32 %v591, %v742
          %v744 = vpop.f32.mrb[0].mxu0
          %745 = vmatprep.mubr.bf16.mxu0 0
          %746 = vmatmul.mubr.bf16.gmra.mrb[0].mxu0 %v628
          %v747 = vpop.f32.mrb[0].mxu0
          %v748 = vadd.f32 %v591, %v747
          %v749 = vpop.f32.mrb[0].mxu0
          %v750 = vpop.f32.mrb[0].mxu0
          %v751 = vadd.f32 %v591, %v750
          %v752 = vpop.f32.mrb[0].mxu0
          %753 = vmatprep.mubr.bf16.mxu0 0
          %754 = vmatmul.mubr.bf16.gmra.mrb[0].mxu0 %v629
          %v755 = vpop.f32.mrb[0].mxu0
          %v756 = vadd.f32 %v591, %v755
          %v757 = vpop.f32.mrb[0].mxu0
          %v758 = vpop.f32.mrb[0].mxu0
          %v759 = vadd.f32 %v591, %v758
          %v760 = vpop.f32.mrb[0].mxu0
          %761 = vmatprep.mubr.bf16.mxu0 0
          %762 = vmatmul.mubr.bf16.gmra.mrb[0].mxu0 %v630
          %v763 = vpop.f32.mrb[0].mxu0
          %v764 = vadd.f32 %v591, %v763
          %v765 = vpop.f32.mrb[0].mxu0
          %v766 = vpop.f32.mrb[0].mxu0
          %v767 = vadd.f32 %v591, %v766
          %v768 = vpop.f32.mrb[0].mxu0
          %769 = vmatprep.mubr.bf16.mxu0 0
          %770 = vmatmul.mubr.bf16.gmra.mrb[0].mxu0 %v631
          %v771 = vpop.f32.mrb[0].mxu0
          %v772 = vadd.f32 %v591, %v771
          %v773 = vpop.f32.mrb[0].mxu0
          %v774 = vpop.f32.mrb[0].mxu0
          %v775 = vadd.f32 %v591, %v774
          %v776 = vpop.f32.mrb[0].mxu0
          %777 = vmatprep.mubr.bf16.mxu0 0
          %778 = vmatmul.mubr.bf16.gmra.mrb[0].mxu0 %v632
          %v779 = vpop.f32.mrb[0].mxu0
          %v780 = vadd.f32 %v591, %v779
          %v781 = vpop.f32.mrb[0].mxu0
          %v782 = vpop.f32.mrb[0].mxu0
          %v783 = vadd.f32 %v591, %v782
          %v784 = vpop.f32.mrb[0].mxu0
          %785 = vdwg.mxu0
          %v786 = vmax.f32 %v724, 0.0
          %v787 = vmax.f32 %v727, 0.0
          %v788 = vmax.f32 %v732, 0.0
          %v789 = vmax.f32 %v735, 0.0
          %v790 = vmax.f32 %v740, 0.0
          %v791 = vmax.f32 %v743, 0.0
          %v792 = vmax.f32 %v748, 0.0
          %v793 = vmax.f32 %v751, 0.0
          %v794 = vmax.f32 %v756, 0.0
          %v795 = vmax.f32 %v759, 0.0
          %v796 = vmax.f32 %v764, 0.0
          %v797 = vmax.f32 %v767, 0.0
          %v798 = vmax.f32 %v772, 0.0
          %v799 = vmax.f32 %v775, 0.0
          %v800 = vmax.f32 %v780, 0.0
          %v801 = vmax.f32 %v783, 0.0
          %v802 = vpack.c.bf16 %v787, %v786
          %v803 = vpack.c.bf16 %v789, %v788
          %v804 = vpack.c.bf16 %v791, %v790
          %v805 = vpack.c.bf16 %v793, %v792
          %v806 = vpack.c.bf16 %v795, %v794
          %v807 = vpack.c.bf16 %v797, %v796
          %v808 = vpack.c.bf16 %v799, %v798
          %v809 = vpack.c.bf16 %v801, %v800
          %v810 = vld [vmem:[#allocation11] sm:$0xf]
          %v811 = vld [vmem:[#allocation11 + $0x4] sm:$0xf]
          %v812 = vld [vmem:[#allocation11 + $0x8] sm:$0xf]
          %v813 = vld [vmem:[#allocation11 + $0xc] sm:$0xf]
          %v814 = vld [vmem:[#allocation12] sm:$0x1]
          %v816 = vlaneseq
          %v817 = vshrl.u32 %v816, 7
          %v818 = vsub.s32 0, %v817
          %v819 = vrot.slane %v814, %v818
          %v825 = vunpack.c.l.b16 %v810
          %v826 = vunpack.c.l.b16 %v811
          %v827 = vunpack.c.l.b16 %v812
          %v828 = vunpack.c.l.b16 %v813
          %v829 = vpack.c.b16 %v826, %v825
          %v830 = vpack.c.b16 %v828, %v827
          %vm833 = vcmask 261120
          %v835 = vsel %vm833, %v802, 0
          %v838 = vsel %vm833, %v803, 0
          %v841 = vsel %vm833, %v804, 0
          %v844 = vsel %vm833, %v805, 0
          %v847 = vsel %vm833, %v806, 0
          %v850 = vsel %vm833, %v807, 0
          %v853 = vsel %vm833, %v808, 0
          %v856 = vsel %vm833, %v809, 0
          %858 = vmatprep.subr.bf16.mxu0 0
          %859 = vmatpush1.bf16.msra.mxu0 %v829
          %860 = vmatprep.subr.bf16.mxu0 0
          %861 = vmatpush1.bf16.msra.mxu0 %v830
          %862 = vmatprep.subr.bf16.mxu0 0
          %863 = vmatpush1.bf16.msra.mxu0 0
          %864 = vmatprep.subr.bf16.mxu0 0
          %865 = vmatpush1.bf16.msra.mxu0 0
          %866 = vmatprep.subr.bf16.mxu0 0
          %867 = vmatpush1.bf16.msra.mxu0 0
          %868 = vmatprep.subr.bf16.mxu0 0
          %869 = vmatpush1.bf16.msra.mxu0 0
          %870 = vmatprep.subr.bf16.mxu0 0
          %871 = vmatpush1.bf16.msra.mxu0 0
          %872 = vmatprep.subr.bf16.mxu0 0
          %873 = vmatpush1.bf16.msra.mxu0 0
          %874 = vmatprep.subr.bf16.mxu0 0
          %875 = vmatpush1.bf16.msra.mxu0 0
          %876 = vmatprep.subr.bf16.mxu0 0
          %877 = vmatpush1.bf16.msra.mxu0 0
          %878 = vmatprep.subr.bf16.mxu0 0
          %879 = vmatpush1.bf16.msra.mxu0 0
          %880 = vmatprep.subr.bf16.mxu0 0
          %881 = vmatpush1.bf16.msra.mxu0 0
          %882 = vmatprep.subr.bf16.mxu0 0
          %883 = vmatpush1.bf16.msra.mxu0 0
          %884 = vmatprep.subr.bf16.mxu0 0
          %885 = vmatpush1.bf16.msra.mxu0 0
          %886 = vmatprep.subr.bf16.mxu0 0
          %887 = vmatpush1.bf16.msra.mxu0 0
          %888 = vmatprep.subr.bf16.mxu0 0
          %889 = vmatpush1.bf16.msra.mxu0 0
          %890 = vmatprep.mubr.bf16.mxu0 0
          %891 = vmatmul.mubr.bf16.gmra.mrb[0].mxu0 %v835
          %v892 = vpop.f32.mrb[0].mxu0
          %v893 = vadd.f32 %v819, %v892
          %v894 = vpop.f32.mrb[0].mxu0
          %v895 = vpop.f32.mrb[0].mxu0
          %v896 = vadd.f32 %v819, %v895
          %v897 = vpop.f32.mrb[0].mxu0
          %898 = vmatprep.mubr.bf16.mxu0 0
          %899 = vmatmul.mubr.bf16.gmra.mrb[0].mxu0 %v838
          %v900 = vpop.f32.mrb[0].mxu0
          %v901 = vadd.f32 %v819, %v900
          %v902 = vpop.f32.mrb[0].mxu0
          %v903 = vpop.f32.mrb[0].mxu0
          %v904 = vadd.f32 %v819, %v903
          %v905 = vpop.f32.mrb[0].mxu0
          %906 = vmatprep.mubr.bf16.mxu0 0
          %907 = vmatmul.mubr.bf16.gmra.mrb[0].mxu0 %v841
          %v908 = vpop.f32.mrb[0].mxu0
          %v909 = vadd.f32 %v819, %v908
          %v910 = vpop.f32.mrb[0].mxu0
          %v911 = vpop.f32.mrb[0].mxu0
          %v912 = vadd.f32 %v819, %v911
          %v913 = vpop.f32.mrb[0].mxu0
          %914 = vmatprep.mubr.bf16.mxu0 0
          %915 = vmatmul.mubr.bf16.gmra.mrb[0].mxu0 %v844
          %v916 = vpop.f32.mrb[0].mxu0
          %v917 = vadd.f32 %v819, %v916
          %v918 = vpop.f32.mrb[0].mxu0
          %v919 = vpop.f32.mrb[0].mxu0
          %v920 = vadd.f32 %v819, %v919
          %v921 = vpop.f32.mrb[0].mxu0
          %922 = vmatprep.mubr.bf16.mxu0 0
          %923 = vmatmul.mubr.bf16.gmra.mrb[0].mxu0 %v847
          %v924 = vpop.f32.mrb[0].mxu0
          %v925 = vadd.f32 %v819, %v924
          %v926 = vpop.f32.mrb[0].mxu0
          %v927 = vpop.f32.mrb[0].mxu0
          %v928 = vadd.f32 %v819, %v927
          %v929 = vpop.f32.mrb[0].mxu0
          %930 = vmatprep.mubr.bf16.mxu0 0
          %931 = vmatmul.mubr.bf16.gmra.mrb[0].mxu0 %v850
          %v932 = vpop.f32.mrb[0].mxu0
          %v933 = vadd.f32 %v819, %v932
          %v934 = vpop.f32.mrb[0].mxu0
          %v935 = vpop.f32.mrb[0].mxu0
          %v936 = vadd.f32 %v819, %v935
          %v937 = vpop.f32.mrb[0].mxu0
          %938 = vmatprep.mubr.bf16.mxu0 0
          %939 = vmatmul.mubr.bf16.gmra.mrb[0].mxu0 %v853
          %v940 = vpop.f32.mrb[0].mxu0
          %v941 = vadd.f32 %v819, %v940
          %v942 = vpop.f32.mrb[0].mxu0
          %v943 = vpop.f32.mrb[0].mxu0
          %v944 = vadd.f32 %v819, %v943
          %v945 = vpop.f32.mrb[0].mxu0
          %946 = vmatprep.mubr.bf16.mxu0 0
          %947 = vmatmul.mubr.bf16.gmra.mrb[0].mxu0 %v856
          %v948 = vpop.f32.mrb[0].mxu0
          %v949 = vadd.f32 %v819, %v948
          %v950 = vpop.f32.mrb[0].mxu0
          %v951 = vpop.f32.mrb[0].mxu0
          %v952 = vadd.f32 %v819, %v951
          %v953 = vpop.f32.mrb[0].mxu0
          %954 = vdwg.mxu0
          %v955 = vmax.f32 %v893, 0.0
          %v956 = vmax.f32 %v896, 0.0
          %v957 = vmax.f32 %v901, 0.0
          %v958 = vmax.f32 %v904, 0.0
          %v959 = vmax.f32 %v909, 0.0
          %v960 = vmax.f32 %v912, 0.0
          %v961 = vmax.f32 %v917, 0.0
          %v962 = vmax.f32 %v920, 0.0
          %v963 = vmax.f32 %v925, 0.0
          %v964 = vmax.f32 %v928, 0.0
          %v965 = vmax.f32 %v933, 0.0
          %v966 = vmax.f32 %v936, 0.0
          %v967 = vmax.f32 %v941, 0.0
          %v968 = vmax.f32 %v944, 0.0
          %v969 = vmax.f32 %v949, 0.0
          %v970 = vmax.f32 %v952, 0.0
          %v971 = vpack.c.bf16 %v956, %v955
          %v972 = vpack.c.bf16 %v958, %v957
          %v973 = vpack.c.bf16 %v960, %v959
          %v974 = vpack.c.bf16 %v962, %v961
          %v975 = vpack.c.bf16 %v964, %v963
          %v976 = vpack.c.bf16 %v966, %v965
          %v977 = vpack.c.bf16 %v968, %v967
          %v978 = vpack.c.bf16 %v970, %v969
          %v979 = vld [vmem:[#allocation14] sm:$0xf]
          %v980 = vld [vmem:[#allocation14 + $0x4] sm:$0xf]
          %v981 = vld [vmem:[#allocation14 + $0x8] sm:$0xf]
          %v982 = vld [vmem:[#allocation14 + $0xc] sm:$0xf]
          %v983 = vld [vmem:[#allocation15] sm:$0x1]
          %v985 = vlaneseq
          %v986 = vshrl.u32 %v985, 7
          %v987 = vsub.s32 0, %v986
          %v988 = vrot.slane %v983, %v987
          %v994 = vunpack.c.l.b16 %v979
          %v995 = vunpack.c.l.b16 %v980
          %v996 = vunpack.c.l.b16 %v981
          %v997 = vunpack.c.l.b16 %v982
          %v998 = vpack.c.b16 %v995, %v994
          %v999 = vpack.c.b16 %v997, %v996
          %v1003 = vsel %vm833, %v971, 0
          %v1006 = vsel %vm833, %v972, 0
          %v1009 = vsel %vm833, %v973, 0
          %v1012 = vsel %vm833, %v974, 0
          %v1015 = vsel %vm833, %v975, 0
          %v1018 = vsel %vm833, %v976, 0
          %v1021 = vsel %vm833, %v977, 0
          %v1024 = vsel %vm833, %v978, 0
          %1026 = vmatprep.subr.bf16.mxu0 0
          %1027 = vmatpush1.bf16.msra.mxu0 %v998
          %1028 = vmatprep.subr.bf16.mxu0 0
          %1029 = vmatpush1.bf16.msra.mxu0 %v999
          %1030 = vmatprep.subr.bf16.mxu0 0
          %1031 = vmatpush1.bf16.msra.mxu0 0
          %1032 = vmatprep.subr.bf16.mxu0 0
          %1033 = vmatpush1.bf16.msra.mxu0 0
          %1034 = vmatprep.subr.bf16.mxu0 0
          %1035 = vmatpush1.bf16.msra.mxu0 0
          %1036 = vmatprep.subr.bf16.mxu0 0
          %1037 = vmatpush1.bf16.msra.mxu0 0
          %1038 = vmatprep.subr.bf16.mxu0 0
          %1039 = vmatpush1.bf16.msra.mxu0 0
          %1040 = vmatprep.subr.bf16.mxu0 0
          %1041 = vmatpush1.bf16.msra.mxu0 0
          %1042 = vmatprep.subr.bf16.mxu0 0
          %1043 = vmatpush1.bf16.msra.mxu0 0
          %1044 = vmatprep.subr.bf16.mxu0 0
          %1045 = vmatpush1.bf16.msra.mxu0 0
          %1046 = vmatprep.subr.bf16.mxu0 0
          %1047 = vmatpush1.bf16.msra.mxu0 0
          %1048 = vmatprep.subr.bf16.mxu0 0
          %1049 = vmatpush1.bf16.msra.mxu0 0
          %1050 = vmatprep.subr.bf16.mxu0 0
          %1051 = vmatpush1.bf16.msra.mxu0 0
          %1052 = vmatprep.subr.bf16.mxu0 0
          %1053 = vmatpush1.bf16.msra.mxu0 0
          %1054 = vmatprep.subr.bf16.mxu0 0
          %1055 = vmatpush1.bf16.msra.mxu0 0
          %1056 = vmatprep.subr.bf16.mxu0 0
          %1057 = vmatpush1.bf16.msra.mxu0 0
          %1058 = vmatprep.mubr.bf16.mxu0 0
          %1059 = vmatmul.mubr.bf16.gmra.mrb[0].mxu0 %v1003
          %v1060 = vpop.f32.mrb[0].mxu0
          %v1061 = vadd.f32 %v988, %v1060
          %v1062 = vpop.f32.mrb[0].mxu0
          %v1063 = vpop.f32.mrb[0].mxu0
          %v1064 = vadd.f32 %v988, %v1063
          %v1065 = vpop.f32.mrb[0].mxu0
          %1066 = vmatprep.mubr.bf16.mxu0 0
          %1067 = vmatmul.mubr.bf16.gmra.mrb[0].mxu0 %v1006
          %v1068 = vpop.f32.mrb[0].mxu0
          %v1069 = vadd.f32 %v988, %v1068
          %v1070 = vpop.f32.mrb[0].mxu0
          %v1071 = vpop.f32.mrb[0].mxu0
          %v1072 = vadd.f32 %v988, %v1071
          %v1073 = vpop.f32.mrb[0].mxu0
          %1074 = vmatprep.mubr.bf16.mxu0 0
          %1075 = vmatmul.mubr.bf16.gmra.mrb[0].mxu0 %v1009
          %v1076 = vpop.f32.mrb[0].mxu0
          %v1077 = vadd.f32 %v988, %v1076
          %v1078 = vpop.f32.mrb[0].mxu0
          %v1079 = vpop.f32.mrb[0].mxu0
          %v1080 = vadd.f32 %v988, %v1079
          %v1081 = vpop.f32.mrb[0].mxu0
          %1082 = vmatprep.mubr.bf16.mxu0 0
          %1083 = vmatmul.mubr.bf16.gmra.mrb[0].mxu0 %v1012
          %v1084 = vpop.f32.mrb[0].mxu0
          %v1085 = vadd.f32 %v988, %v1084
          %v1086 = vpop.f32.mrb[0].mxu0
          %v1087 = vpop.f32.mrb[0].mxu0
          %v1088 = vadd.f32 %v988, %v1087
          %v1089 = vpop.f32.mrb[0].mxu0
          %1090 = vmatprep.mubr.bf16.mxu0 0
          %1091 = vmatmul.mubr.bf16.gmra.mrb[0].mxu0 %v1015
          %v1092 = vpop.f32.mrb[0].mxu0
          %v1093 = vadd.f32 %v988, %v1092
          %v1094 = vpop.f32.mrb[0].mxu0
          %v1095 = vpop.f32.mrb[0].mxu0
          %v1096 = vadd.f32 %v988, %v1095
          %v1097 = vpop.f32.mrb[0].mxu0
          %1098 = vmatprep.mubr.bf16.mxu0 0
          %1099 = vmatmul.mubr.bf16.gmra.mrb[0].mxu0 %v1018
          %v1100 = vpop.f32.mrb[0].mxu0
          %v1101 = vadd.f32 %v988, %v1100
          %v1102 = vpop.f32.mrb[0].mxu0
          %v1103 = vpop.f32.mrb[0].mxu0
          %v1104 = vadd.f32 %v988, %v1103
          %v1105 = vpop.f32.mrb[0].mxu0
          %1106 = vmatprep.mubr.bf16.mxu0 0
          %1107 = vmatmul.mubr.bf16.gmra.mrb[0].mxu0 %v1021
          %v1108 = vpop.f32.mrb[0].mxu0
          %v1109 = vadd.f32 %v988, %v1108
          %v1110 = vpop.f32.mrb[0].mxu0
          %v1111 = vpop.f32.mrb[0].mxu0
          %v1112 = vadd.f32 %v988, %v1111
          %v1113 = vpop.f32.mrb[0].mxu0
          %1114 = vmatprep.mubr.bf16.mxu0 0
          %1115 = vmatmul.mubr.bf16.gmra.mrb[0].mxu0 %v1024
          %v1116 = vpop.f32.mrb[0].mxu0
          %v1117 = vadd.f32 %v988, %v1116
          %v1118 = vpop.f32.mrb[0].mxu0
          %v1119 = vpop.f32.mrb[0].mxu0
          %v1120 = vadd.f32 %v988, %v1119
          %v1121 = vpop.f32.mrb[0].mxu0
          %1122 = vdwg.mxu0
          %v1123 = vpack.c.bf16 %v1064, %v1061
          %v1124 = vpack.c.bf16 %v1072, %v1069
          %v1125 = vpack.c.bf16 %v1080, %v1077
          %v1126 = vpack.c.bf16 %v1088, %v1085
          %v1127 = vpack.c.bf16 %v1096, %v1093
          %v1128 = vpack.c.bf16 %v1104, %v1101
          %v1129 = vpack.c.bf16 %v1112, %v1109
          %v1130 = vpack.c.bf16 %v1120, %v1117
          %v1139 = vunpack.c.l.b16 %v1123
          %v1140 = vunpack.c.h.b16 %v1123
          %v1141 = vunpack.c.l.b16 %v1124
          %v1142 = vunpack.c.h.b16 %v1124
          %v1143 = vunpack.c.l.b16 %v1125
          %v1144 = vunpack.c.h.b16 %v1125
          %v1145 = vunpack.c.l.b16 %v1126
          %v1146 = vunpack.c.h.b16 %v1126
          %v1147 = vunpack.c.l.b16 %v1127
          %v1148 = vunpack.c.h.b16 %v1127
          %v1149 = vunpack.c.l.b16 %v1128
          %v1150 = vunpack.c.h.b16 %v1128
          %v1151 = vunpack.c.l.b16 %v1129
          %v1152 = vunpack.c.h.b16 %v1129
          %v1153 = vunpack.c.l.b16 %v1130
          %v1154 = vunpack.c.h.b16 %v1130
          %v1155 = vpack.c.b16 %v1139, %v1139
          %v1156 = vpack.c.b16 %v1140, %v1140
          %v1157 = vpack.c.b16 %v1141, %v1141
          %v1158 = vpack.c.b16 %v1142, %v1142
          %v1159 = vpack.c.b16 %v1143, %v1143
          %v1160 = vpack.c.b16 %v1144, %v1144
          %v1161 = vpack.c.b16 %v1145, %v1145
          %v1162 = vpack.c.b16 %v1146, %v1146
          %v1163 = vpack.c.b16 %v1147, %v1147
          %v1164 = vpack.c.b16 %v1148, %v1148
          %v1165 = vpack.c.b16 %v1149, %v1149
          %v1166 = vpack.c.b16 %v1150, %v1150
          %v1167 = vpack.c.b16 %v1151, %v1151
          %v1168 = vpack.c.b16 %v1152, %v1152
          %v1169 = vpack.c.b16 %v1153, %v1153
          %v1170 = vpack.c.b16 %v1154, %v1154
          %1187 = vst [vmem:[%s446] sm:$0xf] %v1155
          %1188 = vst [vmem:[%s446 + $0x4] sm:$0xf] %v1156
          %1189 = vst [vmem:[%s446 + $0x8] sm:$0xf] %v1157
          %1190 = vst [vmem:[%s446 + $0xc] sm:$0xf] %v1158
          %1191 = vst [vmem:[%s446 + $0x10] sm:$0xf] %v1159
          %1192 = vst [vmem:[%s446 + $0x14] sm:$0xf] %v1160
          %1193 = vst [vmem:[%s446 + $0x18] sm:$0xf] %v1161
          %1194 = vst [vmem:[%s446 + $0x1c] sm:$0xf] %v1162
          %1195 = vst [vmem:[%s446 + $0x20] sm:$0xf] %v1163
          %1196 = vst [vmem:[%s446 + $0x24] sm:$0xf] %v1164
          %1197 = vst [vmem:[%s446 + $0x28] sm:$0xf] %v1165
          %1198 = vst [vmem:[%s446 + $0x2c] sm:$0xf] %v1166
          %1199 = vst [vmem:[%s446 + $0x30] sm:$0xf] %v1167
          %1200 = vst [vmem:[%s446 + $0x34] sm:$0xf] %v1168
          %1201 = vst [vmem:[%s446 + $0x38] sm:$0xf] %v1169
          %1202 = vst [vmem:[%s446 + $0x3c] sm:$0xf] %v1170
          %v1203 = vld [vmem:[#allocation8] sm:$0xf]
          %1204 = vmatprep.subr.bf16.mxu0 0
          %1205 = vmatpush1.bf16.msra.mxu0 %v802
          %1206 = vmatprep.subr.bf16.mxu0 0
          %1207 = vmatpush1.bf16.msra.mxu0 %v803
          %1208 = vmatprep.subr.bf16.mxu0 0
          %1209 = vmatpush1.bf16.msra.mxu0 %v804
          %1210 = vmatprep.subr.bf16.mxu0 0
          %1211 = vmatpush1.bf16.msra.mxu0 %v805
          %1212 = vmatprep.subr.bf16.mxu0 0
          %1213 = vmatpush1.bf16.msra.mxu0 %v806
          %1214 = vmatprep.subr.bf16.mxu0 0
          %1215 = vmatpush1.bf16.msra.mxu0 %v807
          %1216 = vmatprep.subr.bf16.mxu0 0
          %1217 = vmatpush1.bf16.msra.mxu0 %v808
          %1218 = vmatprep.subr.bf16.mxu0 0
          %1219 = vmatpush1.bf16.msra.mxu0 %v809
          %1220 = vmatprep.subr.bf16.mxu0 0
          %1221 = vmatpush1.bf16.msra.mxu0 0
          %1222 = vmatprep.subr.bf16.mxu0 0
          %1223 = vmatpush1.bf16.msra.mxu0 0
          %1224 = vmatprep.subr.bf16.mxu0 0
          %1225 = vmatpush1.bf16.msra.mxu0 0
          %1226 = vmatprep.subr.bf16.mxu0 0
          %1227 = vmatpush1.bf16.msra.mxu0 0
          %1228 = vmatprep.subr.bf16.mxu0 0
          %1229 = vmatpush1.bf16.msra.mxu0 0
          %1230 = vmatprep.subr.bf16.mxu0 0
          %1231 = vmatpush1.bf16.msra.mxu0 0
          %1232 = vmatprep.subr.bf16.mxu0 0
          %1233 = vmatpush1.bf16.msra.mxu0 0
          %1234 = vmatprep.subr.bf16.mxu0 0
          %1235 = vmatpush1.bf16.msra.mxu0 0
          %1236 = vmatprep.mubr.bf16.mxu0 0
          %1237 = vmatmul.mubr.bf16.gmra.mrb[0].mxu0 %v1203
          %v1238 = vpop.f32.mrb[0].mxu0
          %v1239 = vadd.f32 0.0, %v1238
          %v1240 = vpop.f32.mrb[0].mxu0
          %v1241 = vpop.f32.mrb[0].mxu0
          %v1242 = vpop.f32.mrb[0].mxu0
          %1243 = vdwg.mxu0
          %1244 = vst.msk [vmem:[%s453] sm:$0xff] %vm833, %v1239
        $region88: #{tpu_custom_call.1} parent=51 // pred_fallthru
          _
        %p1245 = scmp.gt.s32.totalorder %s37, 0
        // Predicated region
        $region89: #{tpu_custom_call.1} parent=51 // pred_check
          %p1246 = pneg %p1245
        $region90: #{tpu_custom_call.1} parent=51 // pred_check_branch
          %1248 = sbr.rel (%p1246) target = $region92
        $region91: #{tpu_custom_call.1} parent=51 // pred_region
          %v1249 = vld [vmem:[#allocation2] sm:$0xff]
          %v1250 = vld [vmem:[#allocation2 + $0x8] sm:$0xff]
          %v1251 = vld [vmem:[#allocation2 + $0x10] sm:$0xff]
          %v1252 = vld [vmem:[#allocation2 + $0x18] sm:$0xff]
          %v1253 = vld [vmem:[#allocation2 + $0x20] sm:$0xff]
          %v1254 = vld [vmem:[#allocation2 + $0x28] sm:$0xff]
          %v1255 = vld [vmem:[#allocation2 + $0x30] sm:$0xff]
          %v1256 = vld [vmem:[#allocation2 + $0x38] sm:$0xff]
          %v1257 = vld [vmem:[#allocation3] sm:$0xf]
          %v1258 = vld [vmem:[#allocation3 + $0x4] sm:$0xf]
          %v1259 = vld [vmem:[#allocation3 + $0x8] sm:$0xf]
          %v1260 = vld [vmem:[#allocation3 + $0xc] sm:$0xf]
          %v1261 = vld [vmem:[#allocation3 + $0x10] sm:$0xf]
          %v1262 = vld [vmem:[#allocation3 + $0x14] sm:$0xf]
          %v1263 = vld [vmem:[#allocation3 + $0x18] sm:$0xf]
          %v1264 = vld [vmem:[#allocation3 + $0x1c] sm:$0xf]
          %v1265 = vld [vmem:[#allocation3 + $0x20] sm:$0xf]
          %v1266 = vld [vmem:[#allocation3 + $0x24] sm:$0xf]
          %v1267 = vld [vmem:[#allocation3 + $0x28] sm:$0xf]
          %v1268 = vld [vmem:[#allocation3 + $0x2c] sm:$0xf]
          %v1269 = vld [vmem:[#allocation3 + $0x30] sm:$0xf]
          %v1270 = vld [vmem:[#allocation3 + $0x34] sm:$0xf]
          %v1271 = vld [vmem:[#allocation3 + $0x38] sm:$0xf]
          %v1272 = vld [vmem:[#allocation3 + $0x3c] sm:$0xf]
          %v1289 = vunpack.c.l.b16 %v1257
          %v1290 = vunpack.c.l.b16 %v1258
          %v1291 = vunpack.c.l.b16 %v1259
          %v1292 = vunpack.c.l.b16 %v1260
          %v1293 = vunpack.c.l.b16 %v1261
          %v1294 = vunpack.c.l.b16 %v1262
          %v1295 = vunpack.c.l.b16 %v1263
          %v1296 = vunpack.c.l.b16 %v1264
          %v1297 = vunpack.c.l.b16 %v1265
          %v1298 = vunpack.c.l.b16 %v1266
          %v1299 = vunpack.c.l.b16 %v1267
          %v1300 = vunpack.c.l.b16 %v1268
          %v1301 = vunpack.c.l.b16 %v1269
          %v1302 = vunpack.c.l.b16 %v1270
          %v1303 = vunpack.c.l.b16 %v1271
          %v1304 = vunpack.c.l.b16 %v1272
          %v1305 = vpack.c.b16 %v1290, %v1289
          %v1306 = vpack.c.b16 %v1292, %v1291
          %v1307 = vpack.c.b16 %v1294, %v1293
          %v1308 = vpack.c.b16 %v1296, %v1295
          %v1309 = vpack.c.b16 %v1298, %v1297
          %v1310 = vpack.c.b16 %v1300, %v1299
          %v1311 = vpack.c.b16 %v1302, %v1301
          %v1312 = vpack.c.b16 %v1304, %v1303
          %1321 = vmatprep.subr.bf16.mxu0 0
          %1322 = vmatpush1.bf16.msra.mxu0 %v1305
          %1323 = vmatprep.subr.bf16.mxu0 0
          %1324 = vmatpush1.bf16.msra.mxu0 %v1306
          %1325 = vmatprep.subr.bf16.mxu0 0
          %1326 = vmatpush1.bf16.msra.mxu0 %v1307
          %1327 = vmatprep.subr.bf16.mxu0 0
          %1328 = vmatpush1.bf16.msra.mxu0 %v1308
          %1329 = vmatprep.subr.bf16.mxu0 0
          %1330 = vmatpush1.bf16.msra.mxu0 %v1309
          %1331 = vmatprep.subr.bf16.mxu0 0
          %1332 = vmatpush1.bf16.msra.mxu0 %v1310
          %1333 = vmatprep.subr.bf16.mxu0 0
          %1334 = vmatpush1.bf16.msra.mxu0 %v1311
          %1335 = vmatprep.subr.bf16.mxu0 0
          %1336 = vmatpush1.bf16.msra.mxu0 %v1312
          %1337 = vmatprep.subr.bf16.mxu0 0
          %1338 = vmatpush1.bf16.msra.mxu0 0
          %1339 = vmatprep.subr.bf16.mxu0 0
          %1340 = vmatpush1.bf16.msra.mxu0 0
          %1341 = vmatprep.subr.bf16.mxu0 0
          %1342 = vmatpush1.bf16.msra.mxu0 0
          %1343 = vmatprep.subr.bf16.mxu0 0
          %1344 = vmatpush1.bf16.msra.mxu0 0
          %1345 = vmatprep.subr.bf16.mxu0 0
          %1346 = vmatpush1.bf16.msra.mxu0 0
          %1347 = vmatprep.subr.bf16.mxu0 0
          %1348 = vmatpush1.bf16.msra.mxu0 0
          %1349 = vmatprep.subr.bf16.mxu0 0
          %1350 = vmatpush1.bf16.msra.mxu0 0
          %1351 = vmatprep.subr.bf16.mxu0 0
          %1352 = vmatpush1.bf16.msra.mxu0 0
          %1353 = vmatprep.mubr.bf16.mxu0 0
          %1354 = vmatmul.mubr.bf16.gmra.mrb[0].mxu0 %v1249
          %v1355 = vpop.f32.mrb[0].mxu0
          %v1356 = vadd.f32 0.0, %v1355
          %v1357 = vpop.f32.mrb[0].mxu0
          %v1358 = vpop.f32.mrb[0].mxu0
          %v1359 = vadd.f32 0.0, %v1358
          %v1360 = vpop.f32.mrb[0].mxu0
          %1361 = vmatprep.mubr.bf16.mxu0 0
          %1362 = vmatmul.mubr.bf16.gmra.mrb[0].mxu0 %v1250
          %v1363 = vpop.f32.mrb[0].mxu0
          %v1364 = vadd.f32 0.0, %v1363
          %v1365 = vpop.f32.mrb[0].mxu0
          %v1366 = vpop.f32.mrb[0].mxu0
          %v1367 = vadd.f32 0.0, %v1366
          %v1368 = vpop.f32.mrb[0].mxu0
          %1369 = vmatprep.mubr.bf16.mxu0 0
          %1370 = vmatmul.mubr.bf16.gmra.mrb[0].mxu0 %v1251
          %v1371 = vpop.f32.mrb[0].mxu0
          %v1372 = vadd.f32 0.0, %v1371
          %v1373 = vpop.f32.mrb[0].mxu0
          %v1374 = vpop.f32.mrb[0].mxu0
          %v1375 = vadd.f32 0.0, %v1374
          %v1376 = vpop.f32.mrb[0].mxu0
          %1377 = vmatprep.mubr.bf16.mxu0 0
          %1378 = vmatmul.mubr.bf16.gmra.mrb[0].mxu0 %v1252
          %v1379 = vpop.f32.mrb[0].mxu0
          %v1380 = vadd.f32 0.0, %v1379
          %v1381 = vpop.f32.mrb[0].mxu0
          %v1382 = vpop.f32.mrb[0].mxu0
          %v1383 = vadd.f32 0.0, %v1382
          %v1384 = vpop.f32.mrb[0].mxu0
          %1385 = vmatprep.mubr.bf16.mxu0 0
          %1386 = vmatmul.mubr.bf16.gmra.mrb[0].mxu0 %v1253
          %v1387 = vpop.f32.mrb[0].mxu0
          %v1388 = vadd.f32 0.0, %v1387
          %v1389 = vpop.f32.mrb[0].mxu0
          %v1390 = vpop.f32.mrb[0].mxu0
          %v1391 = vadd.f32 0.0, %v1390
          %v1392 = vpop.f32.mrb[0].mxu0
          %1393 = vmatprep.mubr.bf16.mxu0 0
          %1394 = vmatmul.mubr.bf16.gmra.mrb[0].mxu0 %v1254
          %v1395 = vpop.f32.mrb[0].mxu0
          %v1396 = vadd.f32 0.0, %v1395
          %v1397 = vpop.f32.mrb[0].mxu0
          %v1398 = vpop.f32.mrb[0].mxu0
          %v1399 = vadd.f32 0.0, %v1398
          %v1400 = vpop.f32.mrb[0].mxu0
          %1401 = vmatprep.mubr.bf16.mxu0 0
          %1402 = vmatmul.mubr.bf16.gmra.mrb[0].mxu0 %v1255
          %v1403 = vpop.f32.mrb[0].mxu0
          %v1404 = vadd.f32 0.0, %v1403
          %v1405 = vpop.f32.mrb[0].mxu0
          %v1406 = vpop.f32.mrb[0].mxu0
          %v1407 = vadd.f32 0.0, %v1406
          %v1408 = vpop.f32.mrb[0].mxu0
          %1409 = vmatprep.mubr.bf16.mxu0 0
          %1410 = vmatmul.mubr.bf16.gmra.mrb[0].mxu0 %v1256
          %v1411 = vpop.f32.mrb[0].mxu0
          %v1412 = vadd.f32 0.0, %v1411
          %v1413 = vpop.f32.mrb[0].mxu0
          %v1414 = vpop.f32.mrb[0].mxu0
          %v1415 = vadd.f32 0.0, %v1414
          %v1416 = vpop.f32.mrb[0].mxu0
          %1417 = vdwg.mxu0
          %v1418 = vpack.c.bf16 %v1359, %v1356
          %v1419 = vpack.c.bf16 %v1367, %v1364
          %v1420 = vpack.c.bf16 %v1375, %v1372
          %v1421 = vpack.c.bf16 %v1383, %v1380
          %v1422 = vpack.c.bf16 %v1391, %v1388
          %v1423 = vpack.c.bf16 %v1399, %v1396
          %v1424 = vpack.c.bf16 %v1407, %v1404
          %v1425 = vpack.c.bf16 %v1415, %v1412
          %1426 = vst [vmem:[#allocation2] sm:$0xff] %v1418
          %1427 = vst [vmem:[#allocation2 + $0x8] sm:$0xff] %v1419
          %1428 = vst [vmem:[#allocation2 + $0x10] sm:$0xff] %v1420
          %1429 = vst [vmem:[#allocation2 + $0x18] sm:$0xff] %v1421
          %1430 = vst [vmem:[#allocation2 + $0x20] sm:$0xff] %v1422
          %1431 = vst [vmem:[#allocation2 + $0x28] sm:$0xff] %v1423
          %1432 = vst [vmem:[#allocation2 + $0x30] sm:$0xff] %v1424
          %1433 = vst [vmem:[#allocation2 + $0x38] sm:$0xff] %v1425
          %vm1434 = vcmp.ge.bf16.partialorder %v1418, 953301202
          %vm1435 = vcmp.ge.bf16.partialorder %v1419, 953301202
          %vm1436 = vcmp.ge.bf16.partialorder %v1420, 953301202
          %vm1437 = vcmp.ge.bf16.partialorder %v1421, 953301202
          %vm1438 = vcmp.ge.bf16.partialorder %v1422, 953301202
          %vm1439 = vcmp.ge.bf16.partialorder %v1423, 953301202
          %vm1440 = vcmp.ge.bf16.partialorder %v1424, 953301202
          %vm1441 = vcmp.ge.bf16.partialorder %v1425, 953301202
          %v1442 = vsel %vm1434, %v1418, 0
          %v1443 = vsel %vm1435, %v1419, 0
          %v1444 = vsel %vm1436, %v1420, 0
          %v1445 = vsel %vm1437, %v1421, 0
          %v1446 = vsel %vm1438, %v1422, 0
          %v1447 = vsel %vm1439, %v1423, 0
          %v1448 = vsel %vm1440, %v1424, 0
          %v1449 = vsel %vm1441, %v1425, 0
          %v1450 = vld [vmem:[#allocation6] sm:$0xf]
          %v1451 = vld [vmem:[#allocation6 + $0x4] sm:$0xf]
          %v1452 = vld [vmem:[#allocation6 + $0x8] sm:$0xf]
          %v1453 = vld [vmem:[#allocation6 + $0xc] sm:$0xf]
          %v1454 = vld [vmem:[#allocation6 + $0x10] sm:$0xf]
          %v1455 = vld [vmem:[#allocation6 + $0x14] sm:$0xf]
          %v1456 = vld [vmem:[#allocation6 + $0x18] sm:$0xf]
          %v1457 = vld [vmem:[#allocation6 + $0x1c] sm:$0xf]
          %v1458 = vld [vmem:[#allocation6 + $0x20] sm:$0xf]
          %v1459 = vld [vmem:[#allocation6 + $0x24] sm:$0xf]
          %v1460 = vld [vmem:[#allocation6 + $0x28] sm:$0xf]
          %v1461 = vld [vmem:[#allocation6 + $0x2c] sm:$0xf]
          %v1462 = vld [vmem:[#allocation6 + $0x30] sm:$0xf]
          %v1463 = vld [vmem:[#allocation6 + $0x34] sm:$0xf]
          %v1464 = vld [vmem:[#allocation6 + $0x38] sm:$0xf]
          %v1465 = vld [vmem:[#allocation6 + $0x3c] sm:$0xf]
          %v1466 = vld [vmem:[#allocation9] sm:$0x1]
          %v1468 = vlaneseq
          %v1469 = vshrl.u32 %v1468, 7
          %v1470 = vsub.s32 0, %v1469
          %v1471 = vrot.slane %v1466, %v1470
          %v1489 = vunpack.c.l.b16 %v1450
          %v1490 = vunpack.c.l.b16 %v1451
          %v1491 = vunpack.c.l.b16 %v1452
          %v1492 = vunpack.c.l.b16 %v1453
          %v1493 = vunpack.c.l.b16 %v1454
          %v1494 = vunpack.c.l.b16 %v1455
          %v1495 = vunpack.c.l.b16 %v1456
          %v1496 = vunpack.c.l.b16 %v1457
          %v1497 = vunpack.c.l.b16 %v1458
          %v1498 = vunpack.c.l.b16 %v1459
          %v1499 = vunpack.c.l.b16 %v1460
          %v1500 = vunpack.c.l.b16 %v1461
          %v1501 = vunpack.c.l.b16 %v1462
          %v1502 = vunpack.c.l.b16 %v1463
          %v1503 = vunpack.c.l.b16 %v1464
          %v1504 = vunpack.c.l.b16 %v1465
          %v1505 = vpack.c.b16 %v1490, %v1489
          %v1506 = vpack.c.b16 %v1492, %v1491
          %v1507 = vpack.c.b16 %v1494, %v1493
          %v1508 = vpack.c.b16 %v1496, %v1495
          %v1509 = vpack.c.b16 %v1498, %v1497
          %v1510 = vpack.c.b16 %v1500, %v1499
          %v1511 = vpack.c.b16 %v1502, %v1501
          %v1512 = vpack.c.b16 %v1504, %v1503
          %1521 = vmatprep.subr.bf16.mxu0 0
          %1522 = vmatpush1.bf16.msra.mxu0 %v1505
          %1523 = vmatprep.subr.bf16.mxu0 0
          %1524 = vmatpush1.bf16.msra.mxu0 %v1506
          %1525 = vmatprep.subr.bf16.mxu0 0
          %1526 = vmatpush1.bf16.msra.mxu0 %v1507
          %1527 = vmatprep.subr.bf16.mxu0 0
          %1528 = vmatpush1.bf16.msra.mxu0 %v1508
          %1529 = vmatprep.subr.bf16.mxu0 0
          %1530 = vmatpush1.bf16.msra.mxu0 %v1509
          %1531 = vmatprep.subr.bf16.mxu0 0
          %1532 = vmatpush1.bf16.msra.mxu0 %v1510
          %1533 = vmatprep.subr.bf16.mxu0 0
          %1534 = vmatpush1.bf16.msra.mxu0 %v1511
          %1535 = vmatprep.subr.bf16.mxu0 0
          %1536 = vmatpush1.bf16.msra.mxu0 %v1512
          %1537 = vmatprep.subr.bf16.mxu0 0
          %1538 = vmatpush1.bf16.msra.mxu0 0
          %1539 = vmatprep.subr.bf16.mxu0 0
          %1540 = vmatpush1.bf16.msra.mxu0 0
          %1541 = vmatprep.subr.bf16.mxu0 0
          %1542 = vmatpush1.bf16.msra.mxu0 0
          %1543 = vmatprep.subr.bf16.mxu0 0
          %1544 = vmatpush1.bf16.msra.mxu0 0
          %1545 = vmatprep.subr.bf16.mxu0 0
          %1546 = vmatpush1.bf16.msra.mxu0 0
          %1547 = vmatprep.subr.bf16.mxu0 0
          %1548 = vmatpush1.bf16.msra.mxu0 0
          %1549 = vmatprep.subr.bf16.mxu0 0
          %1550 = vmatpush1.bf16.msra.mxu0 0
          %1551 = vmatprep.subr.bf16.mxu0 0
          %1552 = vmatpush1.bf16.msra.mxu0 0
          %1553 = vmatprep.mubr.bf16.mxu0 0
          %1554 = vmatmul.mubr.bf16.gmra.mrb[0].mxu0 %v1442
          %v1555 = vpop.f32.mrb[0].mxu0
          %v1556 = vadd.f32 %v1471, %v1555
          %v1557 = vpop.f32.mrb[0].mxu0
          %v1558 = vpop.f32.mrb[0].mxu0
          %v1559 = vadd.f32 %v1471, %v1558
          %v1560 = vpop.f32.mrb[0].mxu0
          %1561 = vmatprep.mubr.bf16.mxu0 0
          %1562 = vmatmul.mubr.bf16.gmra.mrb[0].mxu0 %v1443
          %v1563 = vpop.f32.mrb[0].mxu0
          %v1564 = vadd.f32 %v1471, %v1563
          %v1565 = vpop.f32.mrb[0].mxu0
          %v1566 = vpop.f32.mrb[0].mxu0
          %v1567 = vadd.f32 %v1471, %v1566
          %v1568 = vpop.f32.mrb[0].mxu0
          %1569 = vmatprep.mubr.bf16.mxu0 0
          %1570 = vmatmul.mubr.bf16.gmra.mrb[0].mxu0 %v1444
          %v1571 = vpop.f32.mrb[0].mxu0
          %v1572 = vadd.f32 %v1471, %v1571
          %v1573 = vpop.f32.mrb[0].mxu0
          %v1574 = vpop.f32.mrb[0].mxu0
          %v1575 = vadd.f32 %v1471, %v1574
          %v1576 = vpop.f32.mrb[0].mxu0
          %1577 = vmatprep.mubr.bf16.mxu0 0
          %1578 = vmatmul.mubr.bf16.gmra.mrb[0].mxu0 %v1445
          %v1579 = vpop.f32.mrb[0].mxu0
          %v1580 = vadd.f32 %v1471, %v1579
          %v1581 = vpop.f32.mrb[0].mxu0
          %v1582 = vpop.f32.mrb[0].mxu0
          %v1583 = vadd.f32 %v1471, %v1582
          %v1584 = vpop.f32.mrb[0].mxu0
          %1585 = vmatprep.mubr.bf16.mxu0 0
          %1586 = vmatmul.mubr.bf16.gmra.mrb[0].mxu0 %v1446
          %v1587 = vpop.f32.mrb[0].mxu0
          %v1588 = vadd.f32 %v1471, %v1587
          %v1589 = vpop.f32.mrb[0].mxu0
          %v1590 = vpop.f32.mrb[0].mxu0
          %v1591 = vadd.f32 %v1471, %v1590
          %v1592 = vpop.f32.mrb[0].mxu0
          %1593 = vmatprep.mubr.bf16.mxu0 0
          %1594 = vmatmul.mubr.bf16.gmra.mrb[0].mxu0 %v1447
          %v1595 = vpop.f32.mrb[0].mxu0
          %v1596 = vadd.f32 %v1471, %v1595
          %v1597 = vpop.f32.mrb[0].mxu0
          %v1598 = vpop.f32.mrb[0].mxu0
          %v1599 = vadd.f32 %v1471, %v1598
          %v1600 = vpop.f32.mrb[0].mxu0
          %1601 = vmatprep.mubr.bf16.mxu0 0
          %1602 = vmatmul.mubr.bf16.gmra.mrb[0].mxu0 %v1448
          %v1603 = vpop.f32.mrb[0].mxu0
          %v1604 = vadd.f32 %v1471, %v1603
          %v1605 = vpop.f32.mrb[0].mxu0
          %v1606 = vpop.f32.mrb[0].mxu0
          %v1607 = vadd.f32 %v1471, %v1606
          %v1608 = vpop.f32.mrb[0].mxu0
          %1609 = vmatprep.mubr.bf16.mxu0 0
          %1610 = vmatmul.mubr.bf16.gmra.mrb[0].mxu0 %v1449
          %v1611 = vpop.f32.mrb[0].mxu0
          %v1612 = vadd.f32 %v1471, %v1611
          %v1613 = vpop.f32.mrb[0].mxu0
          %v1614 = vpop.f32.mrb[0].mxu0
          %v1615 = vadd.f32 %v1471, %v1614
          %v1616 = vpop.f32.mrb[0].mxu0
          %1617 = vdwg.mxu0
          %v1618 = vmax.f32 %v1556, 0.0
          %v1619 = vmax.f32 %v1559, 0.0
          %v1620 = vmax.f32 %v1564, 0.0
          %v1621 = vmax.f32 %v1567, 0.0
          %v1622 = vmax.f32 %v1572, 0.0
          %v1623 = vmax.f32 %v1575, 0.0
          %v1624 = vmax.f32 %v1580, 0.0
          %v1625 = vmax.f32 %v1583, 0.0
          %v1626 = vmax.f32 %v1588, 0.0
          %v1627 = vmax.f32 %v1591, 0.0
          %v1628 = vmax.f32 %v1596, 0.0
          %v1629 = vmax.f32 %v1599, 0.0
          %v1630 = vmax.f32 %v1604, 0.0
          %v1631 = vmax.f32 %v1607, 0.0
          %v1632 = vmax.f32 %v1612, 0.0
          %v1633 = vmax.f32 %v1615, 0.0
          %v1634 = vpack.c.bf16 %v1619, %v1618
          %v1635 = vpack.c.bf16 %v1621, %v1620
          %v1636 = vpack.c.bf16 %v1623, %v1622
          %v1637 = vpack.c.bf16 %v1625, %v1624
          %v1638 = vpack.c.bf16 %v1627, %v1626
          %v1639 = vpack.c.bf16 %v1629, %v1628
          %v1640 = vpack.c.bf16 %v1631, %v1630
          %v1641 = vpack.c.bf16 %v1633, %v1632
          %v1642 = vld [vmem:[#allocation11] sm:$0xf]
          %v1643 = vld [vmem:[#allocation11 + $0x4] sm:$0xf]
          %v1644 = vld [vmem:[#allocation11 + $0x8] sm:$0xf]
          %v1645 = vld [vmem:[#allocation11 + $0xc] sm:$0xf]
          %v1646 = vld [vmem:[#allocation12] sm:$0x1]
          %v1648 = vlaneseq
          %v1649 = vshrl.u32 %v1648, 7
          %v1650 = vsub.s32 0, %v1649
          %v1651 = vrot.slane %v1646, %v1650
          %v1657 = vunpack.c.l.b16 %v1642
          %v1658 = vunpack.c.l.b16 %v1643
          %v1659 = vunpack.c.l.b16 %v1644
          %v1660 = vunpack.c.l.b16 %v1645
          %v1661 = vpack.c.b16 %v1658, %v1657
          %v1662 = vpack.c.b16 %v1660, %v1659
          %vm1665 = vcmask 261120
          %v1667 = vsel %vm1665, %v1634, 0
          %v1670 = vsel %vm1665, %v1635, 0
          %v1673 = vsel %vm1665, %v1636, 0
          %v1676 = vsel %vm1665, %v1637, 0
          %v1679 = vsel %vm1665, %v1638, 0
          %v1682 = vsel %vm1665, %v1639, 0
          %v1685 = vsel %vm1665, %v1640, 0
          %v1688 = vsel %vm1665, %v1641, 0
          %1690 = vmatprep.subr.bf16.mxu0 0
          %1691 = vmatpush1.bf16.msra.mxu0 %v1661
          %1692 = vmatprep.subr.bf16.mxu0 0
          %1693 = vmatpush1.bf16.msra.mxu0 %v1662
          %1694 = vmatprep.subr.bf16.mxu0 0
          %1695 = vmatpush1.bf16.msra.mxu0 0
          %1696 = vmatprep.subr.bf16.mxu0 0
          %1697 = vmatpush1.bf16.msra.mxu0 0
          %1698 = vmatprep.subr.bf16.mxu0 0
          %1699 = vmatpush1.bf16.msra.mxu0 0
          %1700 = vmatprep.subr.bf16.mxu0 0
          %1701 = vmatpush1.bf16.msra.mxu0 0
          %1702 = vmatprep.subr.bf16.mxu0 0
          %1703 = vmatpush1.bf16.msra.mxu0 0
          %1704 = vmatprep.subr.bf16.mxu0 0
          %1705 = vmatpush1.bf16.msra.mxu0 0
          %1706 = vmatprep.subr.bf16.mxu0 0
          %1707 = vmatpush1.bf16.msra.mxu0 0
          %1708 = vmatprep.subr.bf16.mxu0 0
          %1709 = vmatpush1.bf16.msra.mxu0 0
          %1710 = vmatprep.subr.bf16.mxu0 0
          %1711 = vmatpush1.bf16.msra.mxu0 0
          %1712 = vmatprep.subr.bf16.mxu0 0
          %1713 = vmatpush1.bf16.msra.mxu0 0
          %1714 = vmatprep.subr.bf16.mxu0 0
          %1715 = vmatpush1.bf16.msra.mxu0 0
          %1716 = vmatprep.subr.bf16.mxu0 0
          %1717 = vmatpush1.bf16.msra.mxu0 0
          %1718 = vmatprep.subr.bf16.mxu0 0
          %1719 = vmatpush1.bf16.msra.mxu0 0
          %1720 = vmatprep.subr.bf16.mxu0 0
          %1721 = vmatpush1.bf16.msra.mxu0 0
          %1722 = vmatprep.mubr.bf16.mxu0 0
          %1723 = vmatmul.mubr.bf16.gmra.mrb[0].mxu0 %v1667
          %v1724 = vpop.f32.mrb[0].mxu0
          %v1725 = vadd.f32 %v1651, %v1724
          %v1726 = vpop.f32.mrb[0].mxu0
          %v1727 = vpop.f32.mrb[0].mxu0
          %v1728 = vadd.f32 %v1651, %v1727
          %v1729 = vpop.f32.mrb[0].mxu0
          %1730 = vmatprep.mubr.bf16.mxu0 0
          %1731 = vmatmul.mubr.bf16.gmra.mrb[0].mxu0 %v1670
          %v1732 = vpop.f32.mrb[0].mxu0
          %v1733 = vadd.f32 %v1651, %v1732
          %v1734 = vpop.f32.mrb[0].mxu0
          %v1735 = vpop.f32.mrb[0].mxu0
          %v1736 = vadd.f32 %v1651, %v1735
          %v1737 = vpop.f32.mrb[0].mxu0
          %1738 = vmatprep.mubr.bf16.mxu0 0
          %1739 = vmatmul.mubr.bf16.gmra.mrb[0].mxu0 %v1673
          %v1740 = vpop.f32.mrb[0].mxu0
          %v1741 = vadd.f32 %v1651, %v1740
          %v1742 = vpop.f32.mrb[0].mxu0
          %v1743 = vpop.f32.mrb[0].mxu0
          %v1744 = vadd.f32 %v1651, %v1743
          %v1745 = vpop.f32.mrb[0].mxu0
          %1746 = vmatprep.mubr.bf16.mxu0 0
          %1747 = vmatmul.mubr.bf16.gmra.mrb[0].mxu0 %v1676
          %v1748 = vpop.f32.mrb[0].mxu0
          %v1749 = vadd.f32 %v1651, %v1748
          %v1750 = vpop.f32.mrb[0].mxu0
          %v1751 = vpop.f32.mrb[0].mxu0
          %v1752 = vadd.f32 %v1651, %v1751
          %v1753 = vpop.f32.mrb[0].mxu0
          %1754 = vmatprep.mubr.bf16.mxu0 0
          %1755 = vmatmul.mubr.bf16.gmra.mrb[0].mxu0 %v1679
          %v1756 = vpop.f32.mrb[0].mxu0
          %v1757 = vadd.f32 %v1651, %v1756
          %v1758 = vpop.f32.mrb[0].mxu0
          %v1759 = vpop.f32.mrb[0].mxu0
          %v1760 = vadd.f32 %v1651, %v1759
          %v1761 = vpop.f32.mrb[0].mxu0
          %1762 = vmatprep.mubr.bf16.mxu0 0
          %1763 = vmatmul.mubr.bf16.gmra.mrb[0].mxu0 %v1682
          %v1764 = vpop.f32.mrb[0].mxu0
          %v1765 = vadd.f32 %v1651, %v1764
          %v1766 = vpop.f32.mrb[0].mxu0
          %v1767 = vpop.f32.mrb[0].mxu0
          %v1768 = vadd.f32 %v1651, %v1767
          %v1769 = vpop.f32.mrb[0].mxu0
          %1770 = vmatprep.mubr.bf16.mxu0 0
          %1771 = vmatmul.mubr.bf16.gmra.mrb[0].mxu0 %v1685
          %v1772 = vpop.f32.mrb[0].mxu0
          %v1773 = vadd.f32 %v1651, %v1772
          %v1774 = vpop.f32.mrb[0].mxu0
          %v1775 = vpop.f32.mrb[0].mxu0
          %v1776 = vadd.f32 %v1651, %v1775
          %v1777 = vpop.f32.mrb[0].mxu0
          %1778 = vmatprep.mubr.bf16.mxu0 0
          %1779 = vmatmul.mubr.bf16.gmra.mrb[0].mxu0 %v1688
          %v1780 = vpop.f32.mrb[0].mxu0
          %v1781 = vadd.f32 %v1651, %v1780
          %v1782 = vpop.f32.mrb[0].mxu0
          %v1783 = vpop.f32.mrb[0].mxu0
          %v1784 = vadd.f32 %v1651, %v1783
          %v1785 = vpop.f32.mrb[0].mxu0
          %1786 = vdwg.mxu0
          %v1787 = vmax.f32 %v1725, 0.0
          %v1788 = vmax.f32 %v1728, 0.0
          %v1789 = vmax.f32 %v1733, 0.0
          %v1790 = vmax.f32 %v1736, 0.0
          %v1791 = vmax.f32 %v1741, 0.0
          %v1792 = vmax.f32 %v1744, 0.0
          %v1793 = vmax.f32 %v1749, 0.0
          %v1794 = vmax.f32 %v1752, 0.0
          %v1795 = vmax.f32 %v1757, 0.0
          %v1796 = vmax.f32 %v1760, 0.0
          %v1797 = vmax.f32 %v1765, 0.0
          %v1798 = vmax.f32 %v1768, 0.0
          %v1799 = vmax.f32 %v1773, 0.0
          %v1800 = vmax.f32 %v1776, 0.0
          %v1801 = vmax.f32 %v1781, 0.0
          %v1802 = vmax.f32 %v1784, 0.0
          %v1803 = vpack.c.bf16 %v1788, %v1787
          %v1804 = vpack.c.bf16 %v1790, %v1789
          %v1805 = vpack.c.bf16 %v1792, %v1791
          %v1806 = vpack.c.bf16 %v1794, %v1793
          %v1807 = vpack.c.bf16 %v1796, %v1795
          %v1808 = vpack.c.bf16 %v1798, %v1797
          %v1809 = vpack.c.bf16 %v1800, %v1799
          %v1810 = vpack.c.bf16 %v1802, %v1801
          %v1811 = vld [vmem:[#allocation14] sm:$0xf]
          %v1812 = vld [vmem:[#allocation14 + $0x4] sm:$0xf]
          %v1813 = vld [vmem:[#allocation14 + $0x8] sm:$0xf]
          %v1814 = vld [vmem:[#allocation14 + $0xc] sm:$0xf]
          %v1815 = vld [vmem:[#allocation15] sm:$0x1]
          %v1817 = vlaneseq
          %v1818 = vshrl.u32 %v1817, 7
          %v1819 = vsub.s32 0, %v1818
          %v1820 = vrot.slane %v1815, %v1819
          %v1826 = vunpack.c.l.b16 %v1811
          %v1827 = vunpack.c.l.b16 %v1812
          %v1828 = vunpack.c.l.b16 %v1813
          %v1829 = vunpack.c.l.b16 %v1814
          %v1830 = vpack.c.b16 %v1827, %v1826
          %v1831 = vpack.c.b16 %v1829, %v1828
          %v1835 = vsel %vm1665, %v1803, 0
          %v1838 = vsel %vm1665, %v1804, 0
          %v1841 = vsel %vm1665, %v1805, 0
          %v1844 = vsel %vm1665, %v1806, 0
          %v1847 = vsel %vm1665, %v1807, 0
          %v1850 = vsel %vm1665, %v1808, 0
          %v1853 = vsel %vm1665, %v1809, 0
          %v1856 = vsel %vm1665, %v1810, 0
          %1858 = vmatprep.subr.bf16.mxu0 0
          %1859 = vmatpush1.bf16.msra.mxu0 %v1830
          %1860 = vmatprep.subr.bf16.mxu0 0
          %1861 = vmatpush1.bf16.msra.mxu0 %v1831
          %1862 = vmatprep.subr.bf16.mxu0 0
          %1863 = vmatpush1.bf16.msra.mxu0 0
          %1864 = vmatprep.subr.bf16.mxu0 0
          %1865 = vmatpush1.bf16.msra.mxu0 0
          %1866 = vmatprep.subr.bf16.mxu0 0
          %1867 = vmatpush1.bf16.msra.mxu0 0
          %1868 = vmatprep.subr.bf16.mxu0 0
          %1869 = vmatpush1.bf16.msra.mxu0 0
          %1870 = vmatprep.subr.bf16.mxu0 0
          %1871 = vmatpush1.bf16.msra.mxu0 0
          %1872 = vmatprep.subr.bf16.mxu0 0
          %1873 = vmatpush1.bf16.msra.mxu0 0
          %1874 = vmatprep.subr.bf16.mxu0 0
          %1875 = vmatpush1.bf16.msra.mxu0 0
          %1876 = vmatprep.subr.bf16.mxu0 0
          %1877 = vmatpush1.bf16.msra.mxu0 0
          %1878 = vmatprep.subr.bf16.mxu0 0
          %1879 = vmatpush1.bf16.msra.mxu0 0
          %1880 = vmatprep.subr.bf16.mxu0 0
          %1881 = vmatpush1.bf16.msra.mxu0 0
          %1882 = vmatprep.subr.bf16.mxu0 0
          %1883 = vmatpush1.bf16.msra.mxu0 0
          %1884 = vmatprep.subr.bf16.mxu0 0
          %1885 = vmatpush1.bf16.msra.mxu0 0
          %1886 = vmatprep.subr.bf16.mxu0 0
          %1887 = vmatpush1.bf16.msra.mxu0 0
          %1888 = vmatprep.subr.bf16.mxu0 0
          %1889 = vmatpush1.bf16.msra.mxu0 0
          %1890 = vmatprep.mubr.bf16.mxu0 0
          %1891 = vmatmul.mubr.bf16.gmra.mrb[0].mxu0 %v1835
          %v1892 = vpop.f32.mrb[0].mxu0
          %v1893 = vadd.f32 %v1820, %v1892
          %v1894 = vpop.f32.mrb[0].mxu0
          %v1895 = vpop.f32.mrb[0].mxu0
          %v1896 = vadd.f32 %v1820, %v1895
          %v1897 = vpop.f32.mrb[0].mxu0
          %1898 = vmatprep.mubr.bf16.mxu0 0
          %1899 = vmatmul.mubr.bf16.gmra.mrb[0].mxu0 %v1838
          %v1900 = vpop.f32.mrb[0].mxu0
          %v1901 = vadd.f32 %v1820, %v1900
          %v1902 = vpop.f32.mrb[0].mxu0
          %v1903 = vpop.f32.mrb[0].mxu0
          %v1904 = vadd.f32 %v1820, %v1903
          %v1905 = vpop.f32.mrb[0].mxu0
          %1906 = vmatprep.mubr.bf16.mxu0 0
          %1907 = vmatmul.mubr.bf16.gmra.mrb[0].mxu0 %v1841
          %v1908 = vpop.f32.mrb[0].mxu0
          %v1909 = vadd.f32 %v1820, %v1908
          %v1910 = vpop.f32.mrb[0].mxu0
          %v1911 = vpop.f32.mrb[0].mxu0
          %v1912 = vadd.f32 %v1820, %v1911
          %v1913 = vpop.f32.mrb[0].mxu0
          %1914 = vmatprep.mubr.bf16.mxu0 0
          %1915 = vmatmul.mubr.bf16.gmra.mrb[0].mxu0 %v1844
          %v1916 = vpop.f32.mrb[0].mxu0
          %v1917 = vadd.f32 %v1820, %v1916
          %v1918 = vpop.f32.mrb[0].mxu0
          %v1919 = vpop.f32.mrb[0].mxu0
          %v1920 = vadd.f32 %v1820, %v1919
          %v1921 = vpop.f32.mrb[0].mxu0
          %1922 = vmatprep.mubr.bf16.mxu0 0
          %1923 = vmatmul.mubr.bf16.gmra.mrb[0].mxu0 %v1847
          %v1924 = vpop.f32.mrb[0].mxu0
          %v1925 = vadd.f32 %v1820, %v1924
          %v1926 = vpop.f32.mrb[0].mxu0
          %v1927 = vpop.f32.mrb[0].mxu0
          %v1928 = vadd.f32 %v1820, %v1927
          %v1929 = vpop.f32.mrb[0].mxu0
          %1930 = vmatprep.mubr.bf16.mxu0 0
          %1931 = vmatmul.mubr.bf16.gmra.mrb[0].mxu0 %v1850
          %v1932 = vpop.f32.mrb[0].mxu0
          %v1933 = vadd.f32 %v1820, %v1932
          %v1934 = vpop.f32.mrb[0].mxu0
          %v1935 = vpop.f32.mrb[0].mxu0
          %v1936 = vadd.f32 %v1820, %v1935
          %v1937 = vpop.f32.mrb[0].mxu0
          %1938 = vmatprep.mubr.bf16.mxu0 0
          %1939 = vmatmul.mubr.bf16.gmra.mrb[0].mxu0 %v1853
          %v1940 = vpop.f32.mrb[0].mxu0
          %v1941 = vadd.f32 %v1820, %v1940
          %v1942 = vpop.f32.mrb[0].mxu0
          %v1943 = vpop.f32.mrb[0].mxu0
          %v1944 = vadd.f32 %v1820, %v1943
          %v1945 = vpop.f32.mrb[0].mxu0
          %1946 = vmatprep.mubr.bf16.mxu0 0
          %1947 = vmatmul.mubr.bf16.gmra.mrb[0].mxu0 %v1856
          %v1948 = vpop.f32.mrb[0].mxu0
          %v1949 = vadd.f32 %v1820, %v1948
          %v1950 = vpop.f32.mrb[0].mxu0
          %v1951 = vpop.f32.mrb[0].mxu0
          %v1952 = vadd.f32 %v1820, %v1951
          %v1953 = vpop.f32.mrb[0].mxu0
          %1954 = vdwg.mxu0
          %v1955 = vpack.c.bf16 %v1896, %v1893
          %v1956 = vpack.c.bf16 %v1904, %v1901
          %v1957 = vpack.c.bf16 %v1912, %v1909
          %v1958 = vpack.c.bf16 %v1920, %v1917
          %v1959 = vpack.c.bf16 %v1928, %v1925
          %v1960 = vpack.c.bf16 %v1936, %v1933
          %v1961 = vpack.c.bf16 %v1944, %v1941
          %v1962 = vpack.c.bf16 %v1952, %v1949
          %v1971 = vunpack.c.l.b16 %v1955
          %v1972 = vunpack.c.h.b16 %v1955
          %v1973 = vunpack.c.l.b16 %v1956
          %v1974 = vunpack.c.h.b16 %v1956
          %v1975 = vunpack.c.l.b16 %v1957
          %v1976 = vunpack.c.h.b16 %v1957
          %v1977 = vunpack.c.l.b16 %v1958
          %v1978 = vunpack.c.h.b16 %v1958
          %v1979 = vunpack.c.l.b16 %v1959
          %v1980 = vunpack.c.h.b16 %v1959
          %v1981 = vunpack.c.l.b16 %v1960
          %v1982 = vunpack.c.h.b16 %v1960
          %v1983 = vunpack.c.l.b16 %v1961
          %v1984 = vunpack.c.h.b16 %v1961
          %v1985 = vunpack.c.l.b16 %v1962
          %v1986 = vunpack.c.h.b16 %v1962
          %v1987 = vpack.c.b16 %v1971, %v1971
          %v1988 = vpack.c.b16 %v1972, %v1972
          %v1989 = vpack.c.b16 %v1973, %v1973
          %v1990 = vpack.c.b16 %v1974, %v1974
          %v1991 = vpack.c.b16 %v1975, %v1975
          %v1992 = vpack.c.b16 %v1976, %v1976
          %v1993 = vpack.c.b16 %v1977, %v1977
          %v1994 = vpack.c.b16 %v1978, %v1978
          %v1995 = vpack.c.b16 %v1979, %v1979
          %v1996 = vpack.c.b16 %v1980, %v1980
          %v1997 = vpack.c.b16 %v1981, %v1981
          %v1998 = vpack.c.b16 %v1982, %v1982
          %v1999 = vpack.c.b16 %v1983, %v1983
          %v2000 = vpack.c.b16 %v1984, %v1984
          %v2001 = vpack.c.b16 %v1985, %v1985
          %v2002 = vpack.c.b16 %v1986, %v1986
          %2019 = vst [vmem:[%s446] sm:$0xf] %v1987
          %2020 = vst [vmem:[%s446 + $0x4] sm:$0xf] %v1988
          %2021 = vst [vmem:[%s446 + $0x8] sm:$0xf] %v1989
          %2022 = vst [vmem:[%s446 + $0xc] sm:$0xf] %v1990
          %2023 = vst [vmem:[%s446 + $0x10] sm:$0xf] %v1991
          %2024 = vst [vmem:[%s446 + $0x14] sm:$0xf] %v1992
          %2025 = vst [vmem:[%s446 + $0x18] sm:$0xf] %v1993
          %2026 = vst [vmem:[%s446 + $0x1c] sm:$0xf] %v1994
          %2027 = vst [vmem:[%s446 + $0x20] sm:$0xf] %v1995
          %2028 = vst [vmem:[%s446 + $0x24] sm:$0xf] %v1996
          %2029 = vst [vmem:[%s446 + $0x28] sm:$0xf] %v1997
          %2030 = vst [vmem:[%s446 + $0x2c] sm:$0xf] %v1998
          %2031 = vst [vmem:[%s446 + $0x30] sm:$0xf] %v1999
          %2032 = vst [vmem:[%s446 + $0x34] sm:$0xf] %v2000
          %2033 = vst [vmem:[%s446 + $0x38] sm:$0xf] %v2001
          %2034 = vst [vmem:[%s446 + $0x3c] sm:$0xf] %v2002
          %v2035 = vld [vmem:[#allocation8] sm:$0xf]
          %2036 = vmatprep.subr.bf16.mxu0 0
          %2037 = vmatpush1.bf16.msra.mxu0 %v1634
          %2038 = vmatprep.subr.bf16.mxu0 0
          %2039 = vmatpush1.bf16.msra.mxu0 %v1635
          %2040 = vmatprep.subr.bf16.mxu0 0
          %2041 = vmatpush1.bf16.msra.mxu0 %v1636
          %2042 = vmatprep.subr.bf16.mxu0 0
          %2043 = vmatpush1.bf16.msra.mxu0 %v1637
          %2044 = vmatprep.subr.bf16.mxu0 0
          %2045 = vmatpush1.bf16.msra.mxu0 %v1638
          %2046 = vmatprep.subr.bf16.mxu0 0
          %2047 = vmatpush1.bf16.msra.mxu0 %v1639
          %2048 = vmatprep.subr.bf16.mxu0 0
          %2049 = vmatpush1.bf16.msra.mxu0 %v1640
          %2050 = vmatprep.subr.bf16.mxu0 0
          %2051 = vmatpush1.bf16.msra.mxu0 %v1641
          %2052 = vmatprep.subr.bf16.mxu0 0
          %2053 = vmatpush1.bf16.msra.mxu0 0
          %2054 = vmatprep.subr.bf16.mxu0 0
          %2055 = vmatpush1.bf16.msra.mxu0 0
          %2056 = vmatprep.subr.bf16.mxu0 0
          %2057 = vmatpush1.bf16.msra.mxu0 0
          %2058 = vmatprep.subr.bf16.mxu0 0
          %2059 = vmatpush1.bf16.msra.mxu0 0
          %2060 = vmatprep.subr.bf16.mxu0 0
          %2061 = vmatpush1.bf16.msra.mxu0 0
          %2062 = vmatprep.subr.bf16.mxu0 0
          %2063 = vmatpush1.bf16.msra.mxu0 0
          %2064 = vmatprep.subr.bf16.mxu0 0
          %2065 = vmatpush1.bf16.msra.mxu0 0
          %2066 = vmatprep.subr.bf16.mxu0 0
          %2067 = vmatpush1.bf16.msra.mxu0 0
          %2068 = vmatprep.mubr.bf16.mxu0 0
          %2069 = vmatmul.mubr.bf16.gmra.mrb[0].mxu0 %v2035
          %v2070 = vpop.f32.mrb[0].mxu0
          %v2071 = vadd.f32 0.0, %v2070
          %v2072 = vpop.f32.mrb[0].mxu0
          %v2073 = vpop.f32.mrb[0].mxu0
          %v2074 = vpop.f32.mrb[0].mxu0
          %2075 = vdwg.mxu0
          %2076 = vst.msk [vmem:[%s453] sm:$0xff] %vm1665, %v2071
        $region92: #{tpu_custom_call.1} parent=51 // pred_fallthru
          _
        %s2077 = sand.u32 %s227, 1
        %s2078 = scalar_lea.sflag [#allocation5], %s2077
        %s2079 = sand.u32 %s227, 1
        %s2080 = smul.addr %s2079, 64
        %s2081 = scalar_lea.vmem [#allocation17], %s2080
        %s2082 = sand.u32 %s255, 1
        %s2083 = scalar_lea.sflag [#allocation19], %s2082
        %s2084 = sand.u32 %s255, 1
        %s2085 = smul.addr %s2084, 8
        %s2086 = scalar_lea.vmem [#allocation18], %s2085
        // Predicated region
        $region93: #{tpu_custom_call.1} parent=51 // pred_check
          %p2087 = pneg %p237
        $region94: #{tpu_custom_call.1} parent=51 // pred_check_branch
          %2089 = sbr.rel (%p2087) target = $region96
        $region95: #{tpu_custom_call.1} parent=51 // pred_region
          %s2090 = smul.u32 16, %s36
          %s2092 = ssub.s32 1024, 1024
          %2093 = vsyncadd %s2078, %s2092
          %s2094 = smul.addr %s37, 16
          %s2095 = sadd.s32 %s2090, %s2094
          %s2096 = smul.addr %s2095, 64
          %s2097 = scalar_lea.hbm %s8, %s2096
          %s2098 = sshll.u32 %s2081, 4
          %s2099 = int_to_ptr.vmem [resolvable:$true] %s2098
          %2104 = dma.vmem_to_hbm [thread:$0]  %s2099, 1024, %s2097, %s2078, 64, 64, 4
        $region96: #{tpu_custom_call.1} parent=51 // pred_fallthru
          _
        // Predicated region
        $region97: #{tpu_custom_call.1} parent=51 // pred_check
          %p2105 = pneg %p265
        $region98: #{tpu_custom_call.1} parent=51 // pred_check_branch
          %2107 = sbr.rel (%p2105) target = $region100
        $region99: #{tpu_custom_call.1} parent=51 // pred_region
          %s2109 = ssub.s32 128, 128
          %2110 = vsyncadd %s2083, %s2109
          %s2111 = smul.addr %s36, 4
          %s2112 = sadd.s32 %s37, %s2111
          %s2113 = smul.addr %s2112, 128
          %s2114 = scalar_lea.hbm %s9, %s2113
          %s2116 = sshll.u32 %s2086, 4
          %s2117 = int_to_ptr.vmem [resolvable:$true] %s2116
          %2119 = dma.vmem_to_hbm [thread:$0]  %s2117, 128, %s2114, %s2083
        $region100: #{tpu_custom_call.1} parent=51 // pred_fallthru
          _
      $region52: #{tpu_custom_call.1} parent=5 // pred_fallthru
        _
      %p2120 = scmp.le.s32.totalorder 2, %s27
      // Predicated region
      $region101: #{tpu_custom_call.1} parent=5 // pred_check
        %p2121 = pneg %p2120
      $region102: #{tpu_custom_call.1} parent=5 // pred_check_branch
        %2123 = sbr.rel (%p2121) target = $region104
      $region103: #{tpu_custom_call.1} parent=5 // pred_region
        %s2124 = ssub.s32 %s27, 2
        // Predicated region
        $region105: #{tpu_custom_call.1} parent=103 // pred_check
          %p2125 = pneg %p243
        $region106: #{tpu_custom_call.1} parent=103 // pred_check_branch
          %2127 = sbr.rel (%p2125) target = $region108
        $region107: #{tpu_custom_call.1} parent=103 // pred_region
          %s2128 = sand.u32 %s228, 1
          %s2129 = scalar_lea.sflag [#allocation5], %s2128
          %s2130 = sand.u32 %s228, 1
          %s2131 = smul.addr %s2130, 64
          %s2132 = scalar_lea.vmem [#allocation17], %s2131
          %2133 = dma.done %s2129, 1024
        $region108: #{tpu_custom_call.1} parent=103 // pred_fallthru
          _
        // Predicated region
        $region109: #{tpu_custom_call.1} parent=103 // pred_check
          %p2134 = pneg %p271
        $region110: #{tpu_custom_call.1} parent=103 // pred_check_branch
          %2136 = sbr.rel (%p2134) target = $region112
        $region111: #{tpu_custom_call.1} parent=103 // pred_region
          %s2137 = sand.u32 %s256, 1
          %s2138 = scalar_lea.sflag [#allocation19], %s2137
          %s2139 = sand.u32 %s256, 1
          %s2140 = smul.addr %s2139, 8
          %s2141 = scalar_lea.vmem [#allocation18], %s2140
          %2142 = dma.done %s2138, 128
        $region112: #{tpu_custom_call.1} parent=103 // pred_fallthru
          _
      $region104: #{tpu_custom_call.1} parent=5 // pred_fallthru
        _
    $region6: #{tpu_custom_call.1} parent=1 // loop_footer
      %s31 = sadd.s32 1, %s27
    $region7: #{tpu_custom_call.1} parent=1 // loop_footer_branch
      %26 = sbr.rel target = $region3
    $region8: #{tpu_custom_call.1} parent=1 // loop_exit
      _
    %2143 = vsyncpa [#allocation4], 1
    %s2144 = scalar_lea.sflag [#allocation4], 1
    %2145 = vsyncpa %s2144, 1
    %2146 = vsyncpa [#allocation7], 1
    %2147 = vsyncpa [#allocation10], 1
    %2148 = vsyncpa [#allocation13], 1
    %2149 = vsyncpa [#allocation16], 1
    %2150 = vsyncpa [#allocation5], 1
    %s2151 = scalar_lea.sflag [#allocation5], 1
    %2152 = vsyncpa %s2151, 1
    %2153 = vsyncpa [#allocation19], 1
    %s2154 = scalar_lea.sflag [#allocation19], 1
    %2155 = vsyncpa %s2154, 1

// kernel: tpu_custom_call.1
$region0: #{tpu_custom_call.1}
  #allocation0 [shape = 'u32[]', space=smem, size = 0x4, offset = 0x4, fixed_abs, tag = 'smem constant byte address 0x4 - core index']
  #allocation1 [shape = 'u32[144,128]{1,0:T(1,128)}', space=vmem, size = 0x12000, scoped, tag = 'internal scratch']
  #allocation2 [shape = 'bf16[128,128]{1,0:T(16,128)(2,1)}', space=vmem, size = 0x8000, scoped, tag = 'scratch operand']
  %s0 = inlined_call_operand.hbm [shape: bf16[128,128], index: 0, kind: input, shape index: {}]
  %s1 = inlined_call_operand.hbm [shape: bf16[128,32], index: 1, kind: input, shape index: {}]
  %s2 = inlined_call_operand.hbm [shape: bf16[8,128], index: 2, kind: input, shape index: {}]
  %s3 = inlined_call_operand.hbm [shape: f32[1,32], index: 3, kind: input, shape index: {}]
  %s4 = inlined_call_operand.hbm [shape: bf16[32,32], index: 4, kind: input, shape index: {}]
  %s5 = inlined_call_operand.hbm [shape: f32[1,32], index: 5, kind: input, shape index: {}]
  %s6 = inlined_call_operand.hbm [shape: bf16[32,128], index: 6, kind: input, shape index: {}]
  %s7 = inlined_call_operand.hbm [shape: f32[1,128], index: 7, kind: input, shape index: {}]
  %s8 = inlined_call_operand.hbm [shape: bf16[4,128,128], index: 8, kind: output, shape index: {0}]
  %s9 = inlined_call_operand.hbm [shape: f32[1,4,8,32], index: 9, kind: output, shape index: {1}]
  %10 = xla_tuple %s8, %s9
  %s11 = sld [smem:[#allocation0]]
  $region113: #{tpu_custom_call.1} parent=0
    _
  %s13 = ssub.s32 1, %s11
  %s14 = scalar_select 0, %s13, %s11
  $region1: #{tpu_custom_call.1} parent=0
    #allocation3 [shape = 'u8[32768]{0}', space=vmem, size = 0x8000, scoped, tag = 'input window, operand 0, single buffered']
    #allocation4 [shape = 's32[2]{0}', space=sflag, size = 0x8, scoped, tag = 'scoped memory for tpu_custom_call.1']
    #allocation5 [shape = 's32[2]{0}', space=sflag, size = 0x8, scoped, tag = 'scoped memory for tpu_custom_call.1']
    #allocation6 [shape = 'u8[32768]{0}', space=vmem, size = 0x8000, scoped, tag = 'input window, operand 1, single buffered']
    #allocation7 [shape = 's32[1]{0}', space=sflag, size = 0x4, scoped, tag = 'scoped memory for tpu_custom_call.1']
    #allocation8 [shape = 'u8[2048]{0}', space=vmem, size = 0x800, scoped, tag = 'input window, operand 2, single buffered']
    #allocation9 [shape = 'u8[512]{0}', space=vmem, size = 0x400, scoped, tag = 'input window, operand 3, single buffered']
    #allocation10 [shape = 's32[1]{0}', space=sflag, size = 0x4, scoped, tag = 'scoped memory for tpu_custom_call.1']
    #allocation11 [shape = 'u8[8192]{0}', space=vmem, size = 0x2000, scoped, tag = 'input window, operand 4, single buffered']
    #allocation12 [shape = 'u8[512]{0}', space=vmem, size = 0x400, scoped, tag = 'input window, operand 5, single buffered']
    #allocation13 [shape = 's32[1]{0}', space=sflag, size = 0x4, scoped, tag = 'scoped memory for tpu_custom_call.1']
    #allocation14 [shape = 'u8[8192]{0}', space=vmem, size = 0x2000, scoped, tag = 'input window, operand 6, single buffered']
    #allocation15 [shape = 'u8[512]{0}', space=vmem, size = 0x400, scoped, tag = 'input window, operand 7, single buffered']
    #allocation16 [shape = 's32[1]{0}', space=sflag, size = 0x4, scoped, tag = 'scoped memory for tpu_custom_call.1']
    #allocation17 [shape = 'u8[65536]{0}', space=vmem, size = 0x10000, scoped, tag = 'output window, operand 0']
    #allocation18 [shape = 'u8[8192]{0}', space=vmem, size = 0x2000, scoped, tag = 'output window, operand 1']
    #allocation19 [shape = 's32[2]{0}', space=sflag, size = 0x8, scoped, tag = 'scoped memory for tpu_custom_call.1']
    %15 = vsyncpa [#allocation4], 0
    %16 = vsyncpa [#allocation7], 0
    %17 = vsyncpa [#allocation10], 0
    %18 = vsyncpa [#allocation13], 0
    %19 = vsyncpa [#allocation16], 0
    %20 = vsyncpa [#allocation5], 0
    %s21 = scalar_lea.sflag [#allocation5], 1
    %22 = vsyncpa %s21, 0
    %23 = vsyncpa [#allocation19], 0
    %s24 = scalar_lea.sflag [#allocation19], 1
    %25 = vsyncpa %s24, 0
    loop: start=0, step=1, limit=6
    $region2: #{tpu_custom_call.1} parent=1 // loop_pre_header
      _
    $region3: #{tpu_custom_call.1} parent=1 // loop_header
      %s27 = sphi 0, %s31
      %p28 = scmp.ge.s32.totalorder %s27, 6
      %s34 = sphi 0, %s46
      %s35 = sphi 0, %s42
      %s36 = sphi 0, %s34
      %s37 = sphi 0, %s35
      %s38 = sphi 0, %s36
      %s39 = sphi 0, %s37
      %s47 = sphi 0, %s47
      %s49 = sphi 0, %s47
      %s50 = sphi 0, %s49
      %s64 = sphi 0, %s50
      %s68 = sphi 0, %s68
      %s70 = sphi 0, %s68
      %s71 = sphi 0, %s70
      %s85 = sphi 0, %s71
      %s91 = sphi 0, %s93
      %s94 = sphi 0, %s91
      %s95 = sphi 0, %s94
      %s111 = sphi 0, %s95
      %s115 = sphi 0, %s115
      %s117 = sphi 0, %s115
      %s118 = sphi 0, %s117
      %s132 = sphi 0, %s118
      %s136 = sphi 0, %s136
      %s138 = sphi 0, %s136
      %s139 = sphi 0, %s138
      %s153 = sphi 0, %s139
      %s157 = sphi 0, %s157
      %s159 = sphi 0, %s157
      %s160 = sphi 0, %s159
      %s174 = sphi 0, %s160
      %s178 = sphi 0, %s178
      %s180 = sphi 0, %s178
      %s181 = sphi 0, %s180
      %s195 = sphi 0, %s181
      %s199 = sphi 0, %s199
      %s201 = sphi 0, %s199
      %s202 = sphi 0, %s201
      %s216 = sphi 0, %s202
      %s224 = sphi 0, %s226
      %s227 = sphi 0, %s224
      %s228 = sphi 0, %s227
      %s244 = sphi 0, %s228
      %s252 = sphi 0, %s254
      %s255 = sphi 0, %s252
      %s256 = sphi 0, %s255
      %s272 = sphi 0, %s256
    $region4: #{tpu_custom_call.1} parent=1 // loop_header_branch
      %30 = sbr.rel (%p28) target = $region8
    $region5: #{tpu_custom_call.1} parent=1 // loop_body
      %s32 = ssub.s32 %s27, 1
      %s33 = ssub.s32 %s27, 2
      %s40 = sadd.s32 1, %s35
      %p41 = scmp.ge.s32.totalorder %s40, 4
      %s42 = scalar_select %p41, 0, %s40
      %s43 = sadd.s32 1, %s34
      %s44 = scalar_select %p41, %s43, %s34
      %p45 = scmp.ge.s32.totalorder %s44, 1
      %s46 = scalar_select %p45, 0, %s44
      %s48 = sadd.s32 %s47, 1
      %p51 = scmp.eq.s32.totalorder %s27, 3
      %p52 = scmp.ne.s32.totalorder %s47, %s49
      %p53 = scmp.eq.s32.totalorder %s27, 0
      %p54 = por %p52, %p53
      %p55 = scmp.ne.s32.totalorder %s47, %s49
      %p56 = scmp.eq.s32.totalorder %s32, 3
      %p57 = por %p55, %p56
      %p58 = scmp.ne.s32.totalorder %s49, %s50
      %p59 = scmp.eq.s32.totalorder %s32, 0
      %p60 = por %p58, %p59
      %p61 = scmp.ne.s32.totalorder %s49, %s50
      %p62 = scmp.eq.s32.totalorder %s33, 3
      %p63 = por %p61, %p62
      %p65 = scmp.ne.s32.totalorder %s50, %s64
      %p66 = scmp.eq.s32.totalorder %s33, 0
      %p67 = por %p65, %p66
      %s69 = sadd.s32 %s68, 1
      %p72 = scmp.eq.s32.totalorder %s27, 3
      %p73 = scmp.ne.s32.totalorder %s68, %s70
      %p74 = scmp.eq.s32.totalorder %s27, 0
      %p75 = por %p73, %p74
      %p76 = scmp.ne.s32.totalorder %s68, %s70
      %p77 = scmp.eq.s32.totalorder %s32, 3
      %p78 = por %p76, %p77
      %p79 = scmp.ne.s32.totalorder %s70, %s71
      %p80 = scmp.eq.s32.totalorder %s32, 0
      %p81 = por %p79, %p80
      %p82 = scmp.ne.s32.totalorder %s70, %s71
      %p83 = scmp.eq.s32.totalorder %s33, 3
      %p84 = por %p82, %p83
      %p86 = scmp.ne.s32.totalorder %s71, %s85
      %p87 = scmp.eq.s32.totalorder %s33, 0
      %p88 = por %p86, %p87
      %s89 = ssub.s32 %s34, %s46
      %p90 = scmp.eq.s32.totalorder %s89, 0
      %s92 = sadd.s32 %s91, 1
      %s93 = scalar_select %p90, %s91, %s92
      %p96 = pneg %p90
      %p97 = scmp.eq.s32.totalorder %s27, 3
      %p98 = por %p96, %p97
      %p99 = scmp.ne.s32.totalorder %s91, %s94
      %p100 = scmp.eq.s32.totalorder %s27, 0
      %p101 = por %p99, %p100
      %p102 = scmp.ne.s32.totalorder %s91, %s94
      %p103 = scmp.eq.s32.totalorder %s32, 3
      %p104 = por %p102, %p103
      %p105 = scmp.ne.s32.totalorder %s94, %s95
      %p106 = scmp.eq.s32.totalorder %s32, 0
      %p107 = por %p105, %p106
      %p108 = scmp.ne.s32.totalorder %s94, %s95
      %p109 = scmp.eq.s32.totalorder %s33, 3
      %p110 = por %p108, %p109
      %p112 = scmp.ne.s32.totalorder %s95, %s111
      %p113 = scmp.eq.s32.totalorder %s33, 0
      %p114 = por %p112, %p113
      %s116 = sadd.s32 %s115, 1
      %p119 = scmp.eq.s32.totalorder %s27, 3
      %p120 = scmp.ne.s32.totalorder %s115, %s117
      %p121 = scmp.eq.s32.totalorder %s27, 0
      %p122 = por %p120, %p121
      %p123 = scmp.ne.s32.totalorder %s115, %s117
      %p124 = scmp.eq.s32.totalorder %s32, 3
      %p125 = por %p123, %p124
      %p126 = scmp.ne.s32.totalorder %s117, %s118
      %p127 = scmp.eq.s32.totalorder %s32, 0
      %p128 = por %p126, %p127
      %p129 = scmp.ne.s32.totalorder %s117, %s118
      %p130 = scmp.eq.s32.totalorder %s33, 3
      %p131 = por %p129, %p130
      %p133 = scmp.ne.s32.totalorder %s118, %s132
      %p134 = scmp.eq.s32.totalorder %s33, 0
      %p135 = por %p133, %p134
      %s137 = sadd.s32 %s136, 1
      %p140 = scmp.eq.s32.totalorder %s27, 3
      %p141 = scmp.ne.s32.totalorder %s136, %s138
      %p142 = scmp.eq.s32.totalorder %s27, 0
      %p143 = por %p141, %p142
      %p144 = scmp.ne.s32.totalorder %s136, %s138
      %p145 = scmp.eq.s32.totalorder %s32, 3
      %p146 = por %p144, %p145
      %p147 = scmp.ne.s32.totalorder %s138, %s139
      %p148 = scmp.eq.s32.totalorder %s32, 0
      %p149 = por %p147, %p148
      %p150 = scmp.ne.s32.totalorder %s138, %s139
      %p151 = scmp.eq.s32.totalorder %s33, 3
      %p152 = por %p150, %p151
      %p154 = scmp.ne.s32.totalorder %s139, %s153
      %p155 = scmp.eq.s32.totalorder %s33, 0
      %p156 = por %p154, %p155
      %s158 = sadd.s32 %s157, 1
      %p161 = scmp.eq.s32.totalorder %s27, 3
      %p162 = scmp.ne.s32.totalorder %s157, %s159
      %p163 = scmp.eq.s32.totalorder %s27, 0
      %p164 = por %p162, %p163
      %p165 = scmp.ne.s32.totalorder %s157, %s159
      %p166 = scmp.eq.s32.totalorder %s32, 3
      %p167 = por %p165, %p166
      %p168 = scmp.ne.s32.totalorder %s159, %s160
      %p169 = scmp.eq.s32.totalorder %s32, 0
      %p170 = por %p168, %p169
      %p171 = scmp.ne.s32.totalorder %s159, %s160
      %p172 = scmp.eq.s32.totalorder %s33, 3
      %p173 = por %p171, %p172
      %p175 = scmp.ne.s32.totalorder %s160, %s174
      %p176 = scmp.eq.s32.totalorder %s33, 0
      %p177 = por %p175, %p176
      %s179 = sadd.s32 %s178, 1
      %p182 = scmp.eq.s32.totalorder %s27, 3
      %p183 = scmp.ne.s32.totalorder %s178, %s180
      %p184 = scmp.eq.s32.totalorder %s27, 0
      %p185 = por %p183, %p184
      %p186 = scmp.ne.s32.totalorder %s178, %s180
      %p187 = scmp.eq.s32.totalorder %s32, 3
      %p188 = por %p186, %p187
      %p189 = scmp.ne.s32.totalorder %s180, %s181
      %p190 = scmp.eq.s32.totalorder %s32, 0
      %p191 = por %p189, %p190
      %p192 = scmp.ne.s32.totalorder %s180, %s181
      %p193 = scmp.eq.s32.totalorder %s33, 3
      %p194 = por %p192, %p193
      %p196 = scmp.ne.s32.totalorder %s181, %s195
      %p197 = scmp.eq.s32.totalorder %s33, 0
      %p198 = por %p196, %p197
      %s200 = sadd.s32 %s199, 1
      %p203 = scmp.eq.s32.totalorder %s27, 3
      %p204 = scmp.ne.s32.totalorder %s199, %s201
      %p205 = scmp.eq.s32.totalorder %s27, 0
      %p206 = por %p204, %p205
      %p207 = scmp.ne.s32.totalorder %s199, %s201
      %p208 = scmp.eq.s32.totalorder %s32, 3
      %p209 = por %p207, %p208
      %p210 = scmp.ne.s32.totalorder %s201, %s202
      %p211 = scmp.eq.s32.totalorder %s32, 0
      %p212 = por %p210, %p211
      %p213 = scmp.ne.s32.totalorder %s201, %s202
      %p214 = scmp.eq.s32.totalorder %s33, 3
      %p215 = por %p213, %p214
      %p217 = scmp.ne.s32.totalorder %s202, %s216
      %p218 = scmp.eq.s32.totalorder %s33, 0
      %p219 = por %p217, %p218
      %s220 = ssub.s32 %s35, %s42
      %s221 = ssub.s32 %s34, %s46
      %s222 = sor.u32 %s220, %s221
      %p223 = scmp.eq.s32.totalorder %s222, 0
      %s225 = sadd.s32 %s224, 1
      %s226 = scalar_select %p223, %s224, %s225
      %p229 = pneg %p223
      %p230 = scmp.eq.s32.totalorder %s27, 3
      %p231 = por %p229, %p230
      %p232 = scmp.ne.s32.totalorder %s224, %s227
      %p233 = scmp.eq.s32.totalorder %s27, 0
      %p234 = por %p232, %p233
      %p235 = scmp.ne.s32.totalorder %s224, %s227
      %p236 = scmp.eq.s32.totalorder %s32, 3
      %p237 = por %p235, %p236
      %p238 = scmp.ne.s32.totalorder %s227, %s228
      %p239 = scmp.eq.s32.totalorder %s32, 0
      %p240 = por %p238, %p239
      %p241 = scmp.ne.s32.totalorder %s227, %s228
      %p242 = scmp.eq.s32.totalorder %s33, 3
      %p243 = por %p241, %p242
      %p245 = scmp.ne.s32.totalorder %s228, %s244
      %p246 = scmp.eq.s32.totalorder %s33, 0
      %p247 = por %p245, %p246
      %s248 = ssub.s32 %s34, %s46
      %s249 = ssub.s32 %s35, %s42
      %s250 = sor.u32 %s248, %s249
      %p251 = scmp.eq.s32.totalorder %s250, 0
      %s253 = sadd.s32 %s252, 1
      %s254 = scalar_select %p251, %s252, %s253
      %p257 = pneg %p251
      %p258 = scmp.eq.s32.totalorder %s27, 3
      %p259 = por %p257, %p258
      %p260 = scmp.ne.s32.totalorder %s252, %s255
      %p261 = scmp.eq.s32.totalorder %s27, 0
      %p262 = por %p260, %p261
      %p263 = scmp.ne.s32.totalorder %s252, %s255
      %p264 = scmp.eq.s32.totalorder %s32, 3
      %p265 = por %p263, %p264
      %p266 = scmp.ne.s32.totalorder %s255, %s256
      %p267 = scmp.eq.s32.totalorder %s32, 0
      %p268 = por %p266, %p267
      %p269 = scmp.ne.s32.totalorder %s255, %s256
      %p270 = scmp.eq.s32.totalorder %s33, 3
      %p271 = por %p269, %p270
      %p273 = scmp.ne.s32.totalorder %s256, %s272
      %p274 = scmp.eq.s32.totalorder %s33, 0
      %p275 = por %p273, %p274
      %p276 = scmp.le.s32.totalorder 1, %s27
      %p277 = scmp.lt.s32.totalorder %s27, 5
      %p278 = pnand %p276, %p277
      %p279 = pneg %p278
      // Predicated region
      $region9: #{tpu_custom_call.1} parent=5 // pred_check
        _
      $region10: #{tpu_custom_call.1} parent=5 // pred_check_branch
        %281 = sbr.rel (%p278) target = $region12
      $region11: #{tpu_custom_call.1} parent=5 // pred_region
        %s282 = ssub.s32 %s27, 1
        // Predicated region
        $region13: #{tpu_custom_call.1} parent=11 // pred_check
          %p283 = pneg %p60
        $region14: #{tpu_custom_call.1} parent=11 // pred_check_branch
          %285 = sbr.rel (%p283) target = $region16
        $region15: #{tpu_custom_call.1} parent=11 // pred_region
          %s287 = ssub.s32 1024, 1024
          %288 = vsyncadd [#allocation4], %s287
          %s289 = sshll.u32 [#allocation3], 4
          %s290 = int_to_ptr.vmem [resolvable:$true] %s289
          %295 = dma.hbm_to_vmem [thread:$0]  %s0, 1024, %s290, [#allocation4], 64, 64, 4
        $region16: #{tpu_custom_call.1} parent=11 // pred_fallthru
          _
        // Predicated region
        $region17: #{tpu_custom_call.1} parent=11 // pred_check
          %p296 = pneg %p81
        $region18: #{tpu_custom_call.1} parent=11 // pred_check_branch
          %298 = sbr.rel (%p296) target = $region20
        $region19: #{tpu_custom_call.1} parent=11 // pred_region
          %s300 = ssub.s32 1024, 1024
          %301 = vsyncadd [#allocation7], %s300
          %s302 = sshll.u32 [#allocation6], 4
          %s303 = int_to_ptr.vmem [resolvable:$true] %s302
          %308 = dma.hbm_to_vmem [thread:$0]  %s1, 1024, %s303, [#allocation7], 64, 64, 4
        $region20: #{tpu_custom_call.1} parent=11 // pred_fallthru
          _
        // Predicated region
        $region21: #{tpu_custom_call.1} parent=11 // pred_check
          %p309 = pneg %p107
        $region22: #{tpu_custom_call.1} parent=11 // pred_check_branch
          %311 = sbr.rel (%p309) target = $region24
        $region23: #{tpu_custom_call.1} parent=11 // pred_region
          %s313 = ssub.s32 64, 64
          %314 = vsyncadd [#allocation7], %s313
          %s315 = smul.addr %s36, 64
          %s316 = scalar_lea.hbm %s2, %s315
          %s318 = sshll.u32 [#allocation8], 4
          %s319 = int_to_ptr.vmem [resolvable:$true] %s318
          %321 = dma.hbm_to_vmem [thread:$0]  %s316, 64, %s319, [#allocation7]
        $region24: #{tpu_custom_call.1} parent=11 // pred_fallthru
          _
        // Predicated region
        $region25: #{tpu_custom_call.1} parent=11 // pred_check
          %p322 = pneg %p128
        $region26: #{tpu_custom_call.1} parent=11 // pred_check_branch
          %324 = sbr.rel (%p322) target = $region28
        $region27: #{tpu_custom_call.1} parent=11 // pred_region
          %s326 = ssub.s32 16, 16
          %327 = vsyncadd [#allocation10], %s326
          %s329 = sshll.u32 [#allocation9], 4
          %s330 = int_to_ptr.vmem [resolvable:$true] %s329
          %332 = dma.hbm_to_vmem [thread:$0]  %s3, 16, %s330, [#allocation10]
        $region28: #{tpu_custom_call.1} parent=11 // pred_fallthru
          _
        // Predicated region
        $region29: #{tpu_custom_call.1} parent=11 // pred_check
          %p333 = pneg %p149
        $region30: #{tpu_custom_call.1} parent=11 // pred_check_branch
          %335 = sbr.rel (%p333) target = $region32
        $region31: #{tpu_custom_call.1} parent=11 // pred_region
          %s337 = ssub.s32 256, 256
          %338 = vsyncadd [#allocation10], %s337
          %s339 = sshll.u32 [#allocation11], 4
          %s340 = int_to_ptr.vmem [resolvable:$true] %s339
          %345 = dma.hbm_to_vmem [thread:$0]  %s4, 256, %s340, [#allocation10], 64, 64, 4
        $region32: #{tpu_custom_call.1} parent=11 // pred_fallthru
          _
        // Predicated region
        $region33: #{tpu_custom_call.1} parent=11 // pred_check
          %p346 = pneg %p170
        $region34: #{tpu_custom_call.1} parent=11 // pred_check_branch
          %348 = sbr.rel (%p346) target = $region36
        $region35: #{tpu_custom_call.1} parent=11 // pred_region
          %s350 = ssub.s32 16, 16
          %351 = vsyncadd [#allocation13], %s350
          %s353 = sshll.u32 [#allocation12], 4
          %s354 = int_to_ptr.vmem [resolvable:$true] %s353
          %356 = dma.hbm_to_vmem [thread:$0]  %s5, 16, %s354, [#allocation13]
        $region36: #{tpu_custom_call.1} parent=11 // pred_fallthru
          _
        // Predicated region
        $region37: #{tpu_custom_call.1} parent=11 // pred_check
          %p357 = pneg %p191
        $region38: #{tpu_custom_call.1} parent=11 // pred_check_branch
          %359 = sbr.rel (%p357) target = $region40
        $region39: #{tpu_custom_call.1} parent=11 // pred_region
          %s361 = ssub.s32 256, 256
          %362 = vsyncadd [#allocation13], %s361
          %s363 = sshll.u32 [#allocation14], 4
          %s364 = int_to_ptr.vmem [resolvable:$true] %s363
          %369 = dma.hbm_to_vmem [thread:$0]  %s6, 256, %s364, [#allocation13], 64, 64, 4
        $region40: #{tpu_custom_call.1} parent=11 // pred_fallthru
          _
        // Predicated region
        $region41: #{tpu_custom_call.1} parent=11 // pred_check
          %p370 = pneg %p212
        $region42: #{tpu_custom_call.1} parent=11 // pred_check_branch
          %372 = sbr.rel (%p370) target = $region44
        $region43: #{tpu_custom_call.1} parent=11 // pred_region
          %s374 = ssub.s32 16, 16
          %375 = vsyncadd [#allocation16], %s374
          %s377 = sshll.u32 [#allocation15], 4
          %s378 = int_to_ptr.vmem [resolvable:$true] %s377
          %380 = dma.hbm_to_vmem [thread:$0]  %s7, 16, %s378, [#allocation16]
        $region44: #{tpu_custom_call.1} parent=11 // pred_fallthru
          _
      $region12: #{tpu_custom_call.1} parent=5 // pred_fallthru
        _
      %p381 = scmp.lt.s32.totalorder %s27, 4
      // Predicated region
      $region45: #{tpu_custom_call.1} parent=5 // pred_check
        %p382 = pneg %p381
      $region46: #{tpu_custom_call.1} parent=5 // pred_check_branch
        %384 = sbr.rel (%p382) target = $region48
      $region47: #{tpu_custom_call.1} parent=5 // pred_region
        _
      $region48: #{tpu_custom_call.1} parent=5 // pred_fallthru
        _
      %p385 = scmp.le.s32.totalorder 1, %s27
      %p386 = scmp.lt.s32.totalorder %s27, 5
      %p387 = pnand %p385, %p386
      %p388 = pneg %p387
      // Predicated region
      $region49: #{tpu_custom_call.1} parent=5 // pred_check
        _
      $region50: #{tpu_custom_call.1} parent=5 // pred_check_branch
        %390 = sbr.rel (%p387) target = $region52
      $region51: #{tpu_custom_call.1} parent=5 // pred_region
        %s391 = ssub.s32 %s27, 1
        // Predicated region
        $region53: #{tpu_custom_call.1} parent=51 // pred_check
          %p392 = pneg %p60
        $region54: #{tpu_custom_call.1} parent=51 // pred_check_branch
          %394 = sbr.rel (%p392) target = $region56
        $region55: #{tpu_custom_call.1} parent=51 // pred_region
          %395 = dma.done [#allocation4], 1024
        $region56: #{tpu_custom_call.1} parent=51 // pred_fallthru
          _
        // Predicated region
        $region57: #{tpu_custom_call.1} parent=51 // pred_check
          %p396 = pneg %p81
        $region58: #{tpu_custom_call.1} parent=51 // pred_check_branch
          %398 = sbr.rel (%p396) target = $region60
        $region59: #{tpu_custom_call.1} parent=51 // pred_region
          %399 = dma.done [#allocation7], 1024
        $region60: #{tpu_custom_call.1} parent=51 // pred_fallthru
          _
        // Predicated region
        $region61: #{tpu_custom_call.1} parent=51 // pred_check
          %p400 = pneg %p107
        $region62: #{tpu_custom_call.1} parent=51 // pred_check_branch
          %402 = sbr.rel (%p400) target = $region64
        $region63: #{tpu_custom_call.1} parent=51 // pred_region
          %403 = dma.done [#allocation7], 64
        $region64: #{tpu_custom_call.1} parent=51 // pred_fallthru
          _
        // Predicated region
        $region65: #{tpu_custom_call.1} parent=51 // pred_check
          %p404 = pneg %p128
        $region66: #{tpu_custom_call.1} parent=51 // pred_check_branch
          %406 = sbr.rel (%p404) target = $region68
        $region67: #{tpu_custom_call.1} parent=51 // pred_region
          %407 = dma.done [#allocation10], 16
        $region68: #{tpu_custom_call.1} parent=51 // pred_fallthru
          _
        // Predicated region
        $region69: #{tpu_custom_call.1} parent=51 // pred_check
          %p408 = pneg %p149
        $region70: #{tpu_custom_call.1} parent=51 // pred_check_branch
          %410 = sbr.rel (%p408) target = $region72
        $region71: #{tpu_custom_call.1} parent=51 // pred_region
          %411 = dma.done [#allocation10], 256
        $region72: #{tpu_custom_call.1} parent=51 // pred_fallthru
          _
        // Predicated region
        $region73: #{tpu_custom_call.1} parent=51 // pred_check
          %p412 = pneg %p170
        $region74: #{tpu_custom_call.1} parent=51 // pred_check_branch
          %414 = sbr.rel (%p412) target = $region76
        $region75: #{tpu_custom_call.1} parent=51 // pred_region
          %415 = dma.done [#allocation13], 16
        $region76: #{tpu_custom_call.1} parent=51 // pred_fallthru
          _
        // Predicated region
        $region77: #{tpu_custom_call.1} parent=51 // pred_check
          %p416 = pneg %p191
        $region78: #{tpu_custom_call.1} parent=51 // pred_check_branch
          %418 = sbr.rel (%p416) target = $region80
        $region79: #{tpu_custom_call.1} parent=51 // pred_region
          %419 = dma.done [#allocation13], 256
        $region80: #{tpu_custom_call.1} parent=51 // pred_fallthru
          _
        // Predicated region
        $region81: #{tpu_custom_call.1} parent=51 // pred_check
          %p420 = pneg %p212
        $region82: #{tpu_custom_call.1} parent=51 // pred_check_branch
          %422 = sbr.rel (%p420) target = $region84
        $region83: #{tpu_custom_call.1} parent=51 // pred_region
          %423 = dma.done [#allocation16], 16
        $region84: #{tpu_custom_call.1} parent=51 // pred_fallthru
          _
        %p424 = pneg %p60
        %p425 = pneg %p57
        %p426 = pneg %p81
        %p427 = pneg %p78
        %p428 = pneg %p107
        %p429 = pneg %p104
        %p430 = pneg %p128
        %p431 = pneg %p125
        %p432 = pneg %p149
        %p433 = pneg %p146
        %p434 = pneg %p170
        %p435 = pneg %p167
        %p436 = pneg %p191
        %p437 = pneg %p188
        %p438 = pneg %p212
        %p439 = pneg %p209
        %p440 = pneg %p240
        %p441 = pneg %p237
        %s442 = sand.u32 %s227, 1
        %s443 = scalar_lea.sflag [#allocation5], %s442
        %s444 = sand.u32 %s227, 1
        %s445 = smul.addr %s444, 64
        %s446 = scalar_lea.vmem [#allocation17], %s445
        %p447 = pneg %p268
        %p448 = pneg %p265
        %s449 = sand.u32 %s255, 1
        %s450 = scalar_lea.sflag [#allocation19], %s449
        %s451 = sand.u32 %s255, 1
        %s452 = smul.addr %s451, 8
        %s453 = scalar_lea.vmem [#allocation18], %s452
        %s454 = smul.u32 16, %s36
        %s457 = smul.u32 %s36, 128
        %p458 = scmp.eq.s32.totalorder %s37, 0
        // Predicated region
        $region85: #{tpu_custom_call.1} parent=51 // pred_check
          %p459 = pneg %p458
        $region86: #{tpu_custom_call.1} parent=51 // pred_check_branch
          %461 = sbr.rel (%p459) target = $region88
        $region87: #{tpu_custom_call.1} parent=51 // pred_region
          %s462 = sshra.s32 %s457, 3
          %s463 = sand.u32 %s457, 7
          %s464 = smul.addr %s462, 4
          %s465 = scalar_lea.vmem [#allocation3], %s464
          %v466 = vld [vmem:[%s465] sm:$0xf]
          %v467 = vld [vmem:[%s465 + $0x4] sm:$0xf]
          %v468 = vld [vmem:[%s465 + $0x8] sm:$0xf]
          %v469 = vld [vmem:[%s465 + $0xc] sm:$0xf]
          %v470 = vld [vmem:[%s465 + $0x10] sm:$0xf]
          %v471 = vld [vmem:[%s465 + $0x14] sm:$0xf]
          %v472 = vld [vmem:[%s465 + $0x18] sm:$0xf]
          %v473 = vld [vmem:[%s465 + $0x1c] sm:$0xf]
          %v474 = vld [vmem:[%s465 + $0x20] sm:$0xf]
          %v475 = vld [vmem:[%s465 + $0x24] sm:$0xf]
          %v476 = vld [vmem:[%s465 + $0x28] sm:$0xf]
          %v477 = vld [vmem:[%s465 + $0x2c] sm:$0xf]
          %v478 = vld [vmem:[%s465 + $0x30] sm:$0xf]
          %v479 = vld [vmem:[%s465 + $0x34] sm:$0xf]
          %v480 = vld [vmem:[%s465 + $0x38] sm:$0xf]
          %v481 = vld [vmem:[%s465 + $0x3c] sm:$0xf]
          %v498 = vunpack.c.l.b16 %v466
          %v499 = vunpack.c.l.b16 %v467
          %v500 = vunpack.c.l.b16 %v468
          %v501 = vunpack.c.l.b16 %v469
          %v502 = vunpack.c.l.b16 %v470
          %v503 = vunpack.c.l.b16 %v471
          %v504 = vunpack.c.l.b16 %v472
          %v505 = vunpack.c.l.b16 %v473
          %v506 = vunpack.c.l.b16 %v474
          %v507 = vunpack.c.l.b16 %v475
          %v508 = vunpack.c.l.b16 %v476
          %v509 = vunpack.c.l.b16 %v477
          %v510 = vunpack.c.l.b16 %v478
          %v511 = vunpack.c.l.b16 %v479
          %v512 = vunpack.c.l.b16 %v480
          %v513 = vunpack.c.l.b16 %v481
          %v514 = vpack.c.b16 %v499, %v498
          %v515 = vpack.c.b16 %v501, %v500
          %v516 = vpack.c.b16 %v503, %v502
          %v517 = vpack.c.b16 %v505, %v504
          %v518 = vpack.c.b16 %v507, %v506
          %v519 = vpack.c.b16 %v509, %v508
          %v520 = vpack.c.b16 %v511, %v510
          %v521 = vpack.c.b16 %v513, %v512
          %530 = vst [vmem:[#allocation2] sm:$0xff] %v514
          %531 = vst [vmem:[#allocation2 + $0x8] sm:$0xff] %v515
          %532 = vst [vmem:[#allocation2 + $0x10] sm:$0xff] %v516
          %533 = vst [vmem:[#allocation2 + $0x18] sm:$0xff] %v517
          %534 = vst [vmem:[#allocation2 + $0x20] sm:$0xff] %v518
          %535 = vst [vmem:[#allocation2 + $0x28] sm:$0xff] %v519
          %536 = vst [vmem:[#allocation2 + $0x30] sm:$0xff] %v520
          %537 = vst [vmem:[#allocation2 + $0x38] sm:$0xff] %v521
          %vm538 = vcmp.ge.bf16.partialorder %v466, 953301202
          %vm539 = vcmp.ge.bf16.partialorder %v467, 953301202
          %vm540 = vcmp.ge.bf16.partialorder %v468, 953301202
          %vm541 = vcmp.ge.bf16.partialorder %v469, 953301202
          %vm542 = vcmp.ge.bf16.partialorder %v470, 953301202
          %vm543 = vcmp.ge.bf16.partialorder %v471, 953301202
          %vm544 = vcmp.ge.bf16.partialorder %v472, 953301202
          %vm545 = vcmp.ge.bf16.partialorder %v473, 953301202
          %vm546 = vcmp.ge.bf16.partialorder %v474, 953301202
          %vm547 = vcmp.ge.bf16.partialorder %v475, 953301202
          %vm548 = vcmp.ge.bf16.partialorder %v476, 953301202
          %vm549 = vcmp.ge.bf16.partialorder %v477, 953301202
          %vm550 = vcmp.ge.bf16.partialorder %v478, 953301202
          %vm551 = vcmp.ge.bf16.partialorder %v479, 953301202
          %vm552 = vcmp.ge.bf16.partialorder %v480, 953301202
          %vm553 = vcmp.ge.bf16.partialorder %v481, 953301202
          %v554 = vsel %vm538, %v466, 0
          %v555 = vsel %vm539, %v467, 0
          %v556 = vsel %vm540, %v468, 0
          %v557 = vsel %vm541, %v469, 0
          %v558 = vsel %vm542, %v470, 0
          %v559 = vsel %vm543, %v471, 0
          %v560 = vsel %vm544, %v472, 0
          %v561 = vsel %vm545, %v473, 0
          %v562 = vsel %vm546, %v474, 0
          %v563 = vsel %vm547, %v475, 0
          %v564 = vsel %vm548, %v476, 0
          %v565 = vsel %vm549, %v477, 0
          %v566 = vsel %vm550, %v478, 0
          %v567 = vsel %vm551, %v479, 0
          %v568 = vsel %vm552, %v480, 0
          %v569 = vsel %vm553, %v481, 0
          %v570 = vld [vmem:[#allocation6] sm:$0xf]
          %v571 = vld [vmem:[#allocation6 + $0x4] sm:$0xf]
          %v572 = vld [vmem:[#allocation6 + $0x8] sm:$0xf]
          %v573 = vld [vmem:[#allocation6 + $0xc] sm:$0xf]
          %v574 = vld [vmem:[#allocation6 + $0x10] sm:$0xf]
          %v575 = vld [vmem:[#allocation6 + $0x14] sm:$0xf]
          %v576 = vld [vmem:[#allocation6 + $0x18] sm:$0xf]
          %v577 = vld [vmem:[#allocation6 + $0x1c] sm:$0xf]
          %v578 = vld [vmem:[#allocation6 + $0x20] sm:$0xf]
          %v579 = vld [vmem:[#allocation6 + $0x24] sm:$0xf]
          %v580 = vld [vmem:[#allocation6 + $0x28] sm:$0xf]
          %v581 = vld [vmem:[#allocation6 + $0x2c] sm:$0xf]
          %v582 = vld [vmem:[#allocation6 + $0x30] sm:$0xf]
          %v583 = vld [vmem:[#allocation6 + $0x34] sm:$0xf]
          %v584 = vld [vmem:[#allocation6 + $0x38] sm:$0xf]
          %v585 = vld [vmem:[#allocation6 + $0x3c] sm:$0xf]
          %v586 = vld [vmem:[#allocation9] sm:$0x1]
          %v588 = vlaneseq
          %v589 = vshrl.u32 %v588, 7
          %v590 = vsub.s32 0, %v589
          %v591 = vrot.slane %v586, %v590
          %v609 = vunpack.c.l.b16 %v554
          %v610 = vunpack.c.l.b16 %v555
          %v611 = vunpack.c.l.b16 %v556
          %v612 = vunpack.c.l.b16 %v557
          %v613 = vunpack.c.l.b16 %v558
          %v614 = vunpack.c.l.b16 %v559
          %v615 = vunpack.c.l.b16 %v560
          %v616 = vunpack.c.l.b16 %v561
          %v617 = vunpack.c.l.b16 %v562
          %v618 = vunpack.c.l.b16 %v563
          %v619 = vunpack.c.l.b16 %v564
          %v620 = vunpack.c.l.b16 %v565
          %v621 = vunpack.c.l.b16 %v566
          %v622 = vunpack.c.l.b16 %v567
          %v623 = vunpack.c.l.b16 %v568
          %v624 = vunpack.c.l.b16 %v569
          %v625 = vpack.c.b16 %v610, %v609
          %v626 = vpack.c.b16 %v612, %v611
          %v627 = vpack.c.b16 %v614, %v613
          %v628 = vpack.c.b16 %v616, %v615
          %v629 = vpack.c.b16 %v618, %v617
          %v630 = vpack.c.b16 %v620, %v619
          %v631 = vpack.c.b16 %v622, %v621
          %v632 = vpack.c.b16 %v624, %v623
          %v657 = vunpack.c.l.b16 %v570
          %v658 = vunpack.c.l.b16 %v571
          %v659 = vunpack.c.l.b16 %v572
          %v660 = vunpack.c.l.b16 %v573
          %v661 = vunpack.c.l.b16 %v574
          %v662 = vunpack.c.l.b16 %v575
          %v663 = vunpack.c.l.b16 %v576
          %v664 = vunpack.c.l.b16 %v577
          %v665 = vunpack.c.l.b16 %v578
          %v666 = vunpack.c.l.b16 %v579
          %v667 = vunpack.c.l.b16 %v580
          %v668 = vunpack.c.l.b16 %v581
          %v669 = vunpack.c.l.b16 %v582
          %v670 = vunpack.c.l.b16 %v583
          %v671 = vunpack.c.l.b16 %v584
          %v672 = vunpack.c.l.b16 %v585
          %v673 = vpack.c.b16 %v658, %v657
          %v674 = vpack.c.b16 %v660, %v659
          %v675 = vpack.c.b16 %v662, %v661
          %v676 = vpack.c.b16 %v664, %v663
          %v677 = vpack.c.b16 %v666, %v665
          %v678 = vpack.c.b16 %v668, %v667
          %v679 = vpack.c.b16 %v670, %v669
          %v680 = vpack.c.b16 %v672, %v671
          %689 = vmatprep.subr.bf16.mxu0 0
          %690 = vmatpush1.bf16.msra.mxu0 %v673
          %691 = vmatprep.subr.bf16.mxu0 0
          %692 = vmatpush1.bf16.msra.mxu0 %v674
          %693 = vmatprep.subr.bf16.mxu0 0
          %694 = vmatpush1.bf16.msra.mxu0 %v675
          %695 = vmatprep.subr.bf16.mxu0 0
          %696 = vmatpush1.bf16.msra.mxu0 %v676
          %697 = vmatprep.subr.bf16.mxu0 0
          %698 = vmatpush1.bf16.msra.mxu0 %v677
          %699 = vmatprep.subr.bf16.mxu0 0
          %700 = vmatpush1.bf16.msra.mxu0 %v678
          %701 = vmatprep.subr.bf16.mxu0 0
          %702 = vmatpush1.bf16.msra.mxu0 %v679
          %703 = vmatprep.subr.bf16.mxu0 0
          %704 = vmatpush1.bf16.msra.mxu0 %v680
          %705 = vmatprep.subr.bf16.mxu0 0
          %706 = vmatpush1.bf16.msra.mxu0 0
          %707 = vmatprep.subr.bf16.mxu0 0
          %708 = vmatpush1.bf16.msra.mxu0 0
          %709 = vmatprep.subr.bf16.mxu0 0
          %710 = vmatpush1.bf16.msra.mxu0 0
          %711 = vmatprep.subr.bf16.mxu0 0
          %712 = vmatpush1.bf16.msra.mxu0 0
          %713 = vmatprep.subr.bf16.mxu0 0
          %714 = vmatpush1.bf16.msra.mxu0 0
          %715 = vmatprep.subr.bf16.mxu0 0
          %716 = vmatpush1.bf16.msra.mxu0 0
          %717 = vmatprep.subr.bf16.mxu0 0
          %718 = vmatpush1.bf16.msra.mxu0 0
          %719 = vmatprep.subr.bf16.mxu0 0
          %720 = vmatpush1.bf16.msra.mxu0 0
          %721 = vmatprep.mubr.bf16.mxu0 0
          %722 = vmatmul.mubr.bf16.gmra.mrb[0].mxu0 %v625
          %v723 = vpop.f32.mrb[0].mxu0
          %v724 = vadd.f32 %v591, %v723
          %v725 = vpop.f32.mrb[0].mxu0
          %v726 = vpop.f32.mrb[0].mxu0
          %v727 = vadd.f32 %v591, %v726
          %v728 = vpop.f32.mrb[0].mxu0
          %729 = vmatprep.mubr.bf16.mxu0 0
          %730 = vmatmul.mubr.bf16.gmra.mrb[0].mxu0 %v626
          %v731 = vpop.f32.mrb[0].mxu0
          %v732 = vadd.f32 %v591, %v731
          %v733 = vpop.f32.mrb[0].mxu0
          %v734 = vpop.f32.mrb[0].mxu0
          %v735 = vadd.f32 %v591, %v734
          %v736 = vpop.f32.mrb[0].mxu0
          %737 = vmatprep.mubr.bf16.mxu0 0
          %738 = vmatmul.mubr.bf16.gmra.mrb[0].mxu0 %v627
          %v739 = vpop.f32.mrb[0].mxu0
          %v740 = vadd.f32 %v591, %v739
          %v741 = vpop.f32.mrb[0].mxu0
          %v742 = vpop.f32.mrb[0].mxu0
          %v743 = vadd.f32 %v591, %v742
          %v744 = vpop.f32.mrb[0].mxu0
          %745 = vmatprep.mubr.bf16.mxu0 0
          %746 = vmatmul.mubr.bf16.gmra.mrb[0].mxu0 %v628
          %v747 = vpop.f32.mrb[0].mxu0
          %v748 = vadd.f32 %v591, %v747
          %v749 = vpop.f32.mrb[0].mxu0
          %v750 = vpop.f32.mrb[0].mxu0
          %v751 = vadd.f32 %v591, %v750
          %v752 = vpop.f32.mrb[0].mxu0
          %753 = vmatprep.mubr.bf16.mxu0 0
          %754 = vmatmul.mubr.bf16.gmra.mrb[0].mxu0 %v629
          %v755 = vpop.f32.mrb[0].mxu0
          %v756 = vadd.f32 %v591, %v755
          %v757 = vpop.f32.mrb[0].mxu0
          %v758 = vpop.f32.mrb[0].mxu0
          %v759 = vadd.f32 %v591, %v758
          %v760 = vpop.f32.mrb[0].mxu0
          %761 = vmatprep.mubr.bf16.mxu0 0
          %762 = vmatmul.mubr.bf16.gmra.mrb[0].mxu0 %v630
          %v763 = vpop.f32.mrb[0].mxu0
          %v764 = vadd.f32 %v591, %v763
          %v765 = vpop.f32.mrb[0].mxu0
          %v766 = vpop.f32.mrb[0].mxu0
          %v767 = vadd.f32 %v591, %v766
          %v768 = vpop.f32.mrb[0].mxu0
          %769 = vmatprep.mubr.bf16.mxu0 0
          %770 = vmatmul.mubr.bf16.gmra.mrb[0].mxu0 %v631
          %v771 = vpop.f32.mrb[0].mxu0
          %v772 = vadd.f32 %v591, %v771
          %v773 = vpop.f32.mrb[0].mxu0
          %v774 = vpop.f32.mrb[0].mxu0
          %v775 = vadd.f32 %v591, %v774
          %v776 = vpop.f32.mrb[0].mxu0
          %777 = vmatprep.mubr.bf16.mxu0 0
          %778 = vmatmul.mubr.bf16.gmra.mrb[0].mxu0 %v632
          %v779 = vpop.f32.mrb[0].mxu0
          %v780 = vadd.f32 %v591, %v779
          %v781 = vpop.f32.mrb[0].mxu0
          %v782 = vpop.f32.mrb[0].mxu0
          %v783 = vadd.f32 %v591, %v782
          %v784 = vpop.f32.mrb[0].mxu0
          %785 = vdwg.mxu0
          %v786 = vmax.f32 %v724, 0.0
          %v787 = vmax.f32 %v727, 0.0
          %v788 = vmax.f32 %v732, 0.0
          %v789 = vmax.f32 %v735, 0.0
          %v790 = vmax.f32 %v740, 0.0
          %v791 = vmax.f32 %v743, 0.0
          %v792 = vmax.f32 %v748, 0.0
          %v793 = vmax.f32 %v751, 0.0
          %v794 = vmax.f32 %v756, 0.0
          %v795 = vmax.f32 %v759, 0.0
          %v796 = vmax.f32 %v764, 0.0
          %v797 = vmax.f32 %v767, 0.0
          %v798 = vmax.f32 %v772, 0.0
          %v799 = vmax.f32 %v775, 0.0
          %v800 = vmax.f32 %v780, 0.0
          %v801 = vmax.f32 %v783, 0.0
          %v802 = vpack.c.bf16 %v787, %v786
          %v803 = vpack.c.bf16 %v789, %v788
          %v804 = vpack.c.bf16 %v791, %v790
          %v805 = vpack.c.bf16 %v793, %v792
          %v806 = vpack.c.bf16 %v795, %v794
          %v807 = vpack.c.bf16 %v797, %v796
          %v808 = vpack.c.bf16 %v799, %v798
          %v809 = vpack.c.bf16 %v801, %v800
          %v810 = vld [vmem:[#allocation11] sm:$0xf]
          %v811 = vld [vmem:[#allocation11 + $0x4] sm:$0xf]
          %v812 = vld [vmem:[#allocation11 + $0x8] sm:$0xf]
          %v813 = vld [vmem:[#allocation11 + $0xc] sm:$0xf]
          %v814 = vld [vmem:[#allocation12] sm:$0x1]
          %v816 = vlaneseq
          %v817 = vshrl.u32 %v816, 7
          %v818 = vsub.s32 0, %v817
          %v819 = vrot.slane %v814, %v818
          %v825 = vunpack.c.l.b16 %v810
          %v826 = vunpack.c.l.b16 %v811
          %v827 = vunpack.c.l.b16 %v812
          %v828 = vunpack.c.l.b16 %v813
          %v829 = vpack.c.b16 %v826, %v825
          %v830 = vpack.c.b16 %v828, %v827
          %vm833 = vcmask 261120
          %v835 = vsel %vm833, %v802, 0
          %v838 = vsel %vm833, %v803, 0
          %v841 = vsel %vm833, %v804, 0
          %v844 = vsel %vm833, %v805, 0
          %v847 = vsel %vm833, %v806, 0
          %v850 = vsel %vm833, %v807, 0
          %v853 = vsel %vm833, %v808, 0
          %v856 = vsel %vm833, %v809, 0
          %858 = vmatprep.subr.bf16.mxu0 0
          %859 = vmatpush1.bf16.msra.mxu0 %v829
          %860 = vmatprep.subr.bf16.mxu0 0
          %861 = vmatpush1.bf16.msra.mxu0 %v830
          %862 = vmatprep.subr.bf16.mxu0 0
          %863 = vmatpush1.bf16.msra.mxu0 0
          %864 = vmatprep.subr.bf16.mxu0 0
          %865 = vmatpush1.bf16.msra.mxu0 0
          %866 = vmatprep.subr.bf16.mxu0 0
          %867 = vmatpush1.bf16.msra.mxu0 0
          %868 = vmatprep.subr.bf16.mxu0 0
          %869 = vmatpush1.bf16.msra.mxu0 0
          %870 = vmatprep.subr.bf16.mxu0 0
          %871 = vmatpush1.bf16.msra.mxu0 0
          %872 = vmatprep.subr.bf16.mxu0 0
          %873 = vmatpush1.bf16.msra.mxu0 0
          %874 = vmatprep.subr.bf16.mxu0 0
          %875 = vmatpush1.bf16.msra.mxu0 0
          %876 = vmatprep.subr.bf16.mxu0 0
          %877 = vmatpush1.bf16.msra.mxu0 0
          %878 = vmatprep.subr.bf16.mxu0 0
          %879 = vmatpush1.bf16.msra.mxu0 0
          %880 = vmatprep.subr.bf16.mxu0 0
          %881 = vmatpush1.bf16.msra.mxu0 0
          %882 = vmatprep.subr.bf16.mxu0 0
          %883 = vmatpush1.bf16.msra.mxu0 0
          %884 = vmatprep.subr.bf16.mxu0 0
          %885 = vmatpush1.bf16.msra.mxu0 0
          %886 = vmatprep.subr.bf16.mxu0 0
          %887 = vmatpush1.bf16.msra.mxu0 0
          %888 = vmatprep.subr.bf16.mxu0 0
          %889 = vmatpush1.bf16.msra.mxu0 0
          %890 = vmatprep.mubr.bf16.mxu0 0
          %891 = vmatmul.mubr.bf16.gmra.mrb[0].mxu0 %v835
          %v892 = vpop.f32.mrb[0].mxu0
          %v893 = vadd.f32 %v819, %v892
          %v894 = vpop.f32.mrb[0].mxu0
          %v895 = vpop.f32.mrb[0].mxu0
          %v896 = vadd.f32 %v819, %v895
          %v897 = vpop.f32.mrb[0].mxu0
          %898 = vmatprep.mubr.bf16.mxu0 0
          %899 = vmatmul.mubr.bf16.gmra.mrb[0].mxu0 %v838
          %v900 = vpop.f32.mrb[0].mxu0
          %v901 = vadd.f32 %v819, %v900
          %v902 = vpop.f32.mrb[0].mxu0
          %v903 = vpop.f32.mrb[0].mxu0
          %v904 = vadd.f32 %v819, %v903
          %v905 = vpop.f32.mrb[0].mxu0
          %906 = vmatprep.mubr.bf16.mxu0 0
          %907 = vmatmul.mubr.bf16.gmra.mrb[0].mxu0 %v841
          %v908 = vpop.f32.mrb[0].mxu0
          %v909 = vadd.f32 %v819, %v908
          %v910 = vpop.f32.mrb[0].mxu0
          %v911 = vpop.f32.mrb[0].mxu0
          %v912 = vadd.f32 %v819, %v911
          %v913 = vpop.f32.mrb[0].mxu0
          %914 = vmatprep.mubr.bf16.mxu0 0
          %915 = vmatmul.mubr.bf16.gmra.mrb[0].mxu0 %v844
          %v916 = vpop.f32.mrb[0].mxu0
          %v917 = vadd.f32 %v819, %v916
          %v918 = vpop.f32.mrb[0].mxu0
          %v919 = vpop.f32.mrb[0].mxu0
          %v920 = vadd.f32 %v819, %v919
          %v921 = vpop.f32.mrb[0].mxu0
          %922 = vmatprep.mubr.bf16.mxu0 0
          %923 = vmatmul.mubr.bf16.gmra.mrb[0].mxu0 %v847
          %v924 = vpop.f32.mrb[0].mxu0
          %v925 = vadd.f32 %v819, %v924
          %v926 = vpop.f32.mrb[0].mxu0
          %v927 = vpop.f32.mrb[0].mxu0
          %v928 = vadd.f32 %v819, %v927
          %v929 = vpop.f32.mrb[0].mxu0
          %930 = vmatprep.mubr.bf16.mxu0 0
          %931 = vmatmul.mubr.bf16.gmra.mrb[0].mxu0 %v850
          %v932 = vpop.f32.mrb[0].mxu0
          %v933 = vadd.f32 %v819, %v932
          %v934 = vpop.f32.mrb[0].mxu0
          %v935 = vpop.f32.mrb[0].mxu0
          %v936 = vadd.f32 %v819, %v935
          %v937 = vpop.f32.mrb[0].mxu0
          %938 = vmatprep.mubr.bf16.mxu0 0
          %939 = vmatmul.mubr.bf16.gmra.mrb[0].mxu0 %v853
          %v940 = vpop.f32.mrb[0].mxu0
          %v941 = vadd.f32 %v819, %v940
          %v942 = vpop.f32.mrb[0].mxu0
          %v943 = vpop.f32.mrb[0].mxu0
          %v944 = vadd.f32 %v819, %v943
          %v945 = vpop.f32.mrb[0].mxu0
          %946 = vmatprep.mubr.bf16.mxu0 0
          %947 = vmatmul.mubr.bf16.gmra.mrb[0].mxu0 %v856
          %v948 = vpop.f32.mrb[0].mxu0
          %v949 = vadd.f32 %v819, %v948
          %v950 = vpop.f32.mrb[0].mxu0
          %v951 = vpop.f32.mrb[0].mxu0
          %v952 = vadd.f32 %v819, %v951
          %v953 = vpop.f32.mrb[0].mxu0
          %954 = vdwg.mxu0
          %v955 = vmax.f32 %v893, 0.0
          %v956 = vmax.f32 %v896, 0.0
          %v957 = vmax.f32 %v901, 0.0
          %v958 = vmax.f32 %v904, 0.0
          %v959 = vmax.f32 %v909, 0.0
          %v960 = vmax.f32 %v912, 0.0
          %v961 = vmax.f32 %v917, 0.0
          %v962 = vmax.f32 %v920, 0.0
          %v963 = vmax.f32 %v925, 0.0
          %v964 = vmax.f32 %v928, 0.0
          %v965 = vmax.f32 %v933, 0.0
          %v966 = vmax.f32 %v936, 0.0
          %v967 = vmax.f32 %v941, 0.0
          %v968 = vmax.f32 %v944, 0.0
          %v969 = vmax.f32 %v949, 0.0
          %v970 = vmax.f32 %v952, 0.0
          %v971 = vpack.c.bf16 %v956, %v955
          %v972 = vpack.c.bf16 %v958, %v957
          %v973 = vpack.c.bf16 %v960, %v959
          %v974 = vpack.c.bf16 %v962, %v961
          %v975 = vpack.c.bf16 %v964, %v963
          %v976 = vpack.c.bf16 %v966, %v965
          %v977 = vpack.c.bf16 %v968, %v967
          %v978 = vpack.c.bf16 %v970, %v969
          %v979 = vld [vmem:[#allocation14] sm:$0xf]
          %v980 = vld [vmem:[#allocation14 + $0x4] sm:$0xf]
          %v981 = vld [vmem:[#allocation14 + $0x8] sm:$0xf]
          %v982 = vld [vmem:[#allocation14 + $0xc] sm:$0xf]
          %v983 = vld [vmem:[#allocation15] sm:$0x1]
          %v985 = vlaneseq
          %v986 = vshrl.u32 %v985, 7
          %v987 = vsub.s32 0, %v986
          %v988 = vrot.slane %v983, %v987
          %v994 = vunpack.c.l.b16 %v979
          %v995 = vunpack.c.l.b16 %v980
          %v996 = vunpack.c.l.b16 %v981
          %v997 = vunpack.c.l.b16 %v982
          %v998 = vpack.c.b16 %v995, %v994
          %v999 = vpack.c.b16 %v997, %v996
          %v1003 = vsel %vm833, %v971, 0
          %v1006 = vsel %vm833, %v972, 0
          %v1009 = vsel %vm833, %v973, 0
          %v1012 = vsel %vm833, %v974, 0
          %v1015 = vsel %vm833, %v975, 0
          %v1018 = vsel %vm833, %v976, 0
          %v1021 = vsel %vm833, %v977, 0
          %v1024 = vsel %vm833, %v978, 0
          %1026 = vmatprep.subr.bf16.mxu0 0
          %1027 = vmatpush1.bf16.msra.mxu0 %v998
          %1028 = vmatprep.subr.bf16.mxu0 0
          %1029 = vmatpush1.bf16.msra.mxu0 %v999
          %1030 = vmatprep.subr.bf16.mxu0 0
          %1031 = vmatpush1.bf16.msra.mxu0 0
          %1032 = vmatprep.subr.bf16.mxu0 0
          %1033 = vmatpush1.bf16.msra.mxu0 0
          %1034 = vmatprep.subr.bf16.mxu0 0
          %1035 = vmatpush1.bf16.msra.mxu0 0
          %1036 = vmatprep.subr.bf16.mxu0 0
          %1037 = vmatpush1.bf16.msra.mxu0 0
          %1038 = vmatprep.subr.bf16.mxu0 0
          %1039 = vmatpush1.bf16.msra.mxu0 0
          %1040 = vmatprep.subr.bf16.mxu0 0
          %1041 = vmatpush1.bf16.msra.mxu0 0
          %1042 = vmatprep.subr.bf16.mxu0 0
          %1043 = vmatpush1.bf16.msra.mxu0 0
          %1044 = vmatprep.subr.bf16.mxu0 0
          %1045 = vmatpush1.bf16.msra.mxu0 0
          %1046 = vmatprep.subr.bf16.mxu0 0
          %1047 = vmatpush1.bf16.msra.mxu0 0
          %1048 = vmatprep.subr.bf16.mxu0 0
          %1049 = vmatpush1.bf16.msra.mxu0 0
          %1050 = vmatprep.subr.bf16.mxu0 0
          %1051 = vmatpush1.bf16.msra.mxu0 0
          %1052 = vmatprep.subr.bf16.mxu0 0
          %1053 = vmatpush1.bf16.msra.mxu0 0
          %1054 = vmatprep.subr.bf16.mxu0 0
          %1055 = vmatpush1.bf16.msra.mxu0 0
          %1056 = vmatprep.subr.bf16.mxu0 0
          %1057 = vmatpush1.bf16.msra.mxu0 0
          %1058 = vmatprep.mubr.bf16.mxu0 0
          %1059 = vmatmul.mubr.bf16.gmra.mrb[0].mxu0 %v1003
          %v1060 = vpop.f32.mrb[0].mxu0
          %v1061 = vadd.f32 %v988, %v1060
          %v1062 = vpop.f32.mrb[0].mxu0
          %v1063 = vpop.f32.mrb[0].mxu0
          %v1064 = vadd.f32 %v988, %v1063
          %v1065 = vpop.f32.mrb[0].mxu0
          %1066 = vmatprep.mubr.bf16.mxu0 0
          %1067 = vmatmul.mubr.bf16.gmra.mrb[0].mxu0 %v1006
          %v1068 = vpop.f32.mrb[0].mxu0
          %v1069 = vadd.f32 %v988, %v1068
          %v1070 = vpop.f32.mrb[0].mxu0
          %v1071 = vpop.f32.mrb[0].mxu0
          %v1072 = vadd.f32 %v988, %v1071
          %v1073 = vpop.f32.mrb[0].mxu0
          %1074 = vmatprep.mubr.bf16.mxu0 0
          %1075 = vmatmul.mubr.bf16.gmra.mrb[0].mxu0 %v1009
          %v1076 = vpop.f32.mrb[0].mxu0
          %v1077 = vadd.f32 %v988, %v1076
          %v1078 = vpop.f32.mrb[0].mxu0
          %v1079 = vpop.f32.mrb[0].mxu0
          %v1080 = vadd.f32 %v988, %v1079
          %v1081 = vpop.f32.mrb[0].mxu0
          %1082 = vmatprep.mubr.bf16.mxu0 0
          %1083 = vmatmul.mubr.bf16.gmra.mrb[0].mxu0 %v1012
          %v1084 = vpop.f32.mrb[0].mxu0
          %v1085 = vadd.f32 %v988, %v1084
          %v1086 = vpop.f32.mrb[0].mxu0
          %v1087 = vpop.f32.mrb[0].mxu0
          %v1088 = vadd.f32 %v988, %v1087
          %v1089 = vpop.f32.mrb[0].mxu0
          %1090 = vmatprep.mubr.bf16.mxu0 0
          %1091 = vmatmul.mubr.bf16.gmra.mrb[0].mxu0 %v1015
          %v1092 = vpop.f32.mrb[0].mxu0
          %v1093 = vadd.f32 %v988, %v1092
          %v1094 = vpop.f32.mrb[0].mxu0
          %v1095 = vpop.f32.mrb[0].mxu0
          %v1096 = vadd.f32 %v988, %v1095
          %v1097 = vpop.f32.mrb[0].mxu0
          %1098 = vmatprep.mubr.bf16.mxu0 0
          %1099 = vmatmul.mubr.bf16.gmra.mrb[0].mxu0 %v1018
          %v1100 = vpop.f32.mrb[0].mxu0
          %v1101 = vadd.f32 %v988, %v1100
          %v1102 = vpop.f32.mrb[0].mxu0
          %v1103 = vpop.f32.mrb[0].mxu0
          %v1104 = vadd.f32 %v988, %v1103
          %v1105 = vpop.f32.mrb[0].mxu0
          %1106 = vmatprep.mubr.bf16.mxu0 0
          %1107 = vmatmul.mubr.bf16.gmra.mrb[0].mxu0 %v1021
          %v1108 = vpop.f32.mrb[0].mxu0
          %v1109 = vadd.f32 %v988, %v1108
          %v1110 = vpop.f32.mrb[0].mxu0
          %v1111 = vpop.f32.mrb[0].mxu0
          %v1112 = vadd.f32 %v988, %v1111
          %v1113 = vpop.f32.mrb[0].mxu0
          %1114 = vmatprep.mubr.bf16.mxu0 0
          %1115 = vmatmul.mubr.bf16.gmra.mrb[0].mxu0 %v1024
          %v1116 = vpop.f32.mrb[0].mxu0
          %v1117 = vadd.f32 %v988, %v1116
          %v1118 = vpop.f32.mrb[0].mxu0
          %v1119 = vpop.f32.mrb[0].mxu0
          %v1120 = vadd.f32 %v988, %v1119
          %v1121 = vpop.f32.mrb[0].mxu0
          %1122 = vdwg.mxu0
          %v1123 = vpack.c.bf16 %v1064, %v1061
          %v1124 = vpack.c.bf16 %v1072, %v1069
          %v1125 = vpack.c.bf16 %v1080, %v1077
          %v1126 = vpack.c.bf16 %v1088, %v1085
          %v1127 = vpack.c.bf16 %v1096, %v1093
          %v1128 = vpack.c.bf16 %v1104, %v1101
          %v1129 = vpack.c.bf16 %v1112, %v1109
          %v1130 = vpack.c.bf16 %v1120, %v1117
          %v1139 = vunpack.c.l.b16 %v1123
          %v1140 = vunpack.c.h.b16 %v1123
          %v1141 = vunpack.c.l.b16 %v1124
          %v1142 = vunpack.c.h.b16 %v1124
          %v1143 = vunpack.c.l.b16 %v1125
          %v1144 = vunpack.c.h.b16 %v1125
          %v1145 = vunpack.c.l.b16 %v1126
          %v1146 = vunpack.c.h.b16 %v1126
          %v1147 = vunpack.c.l.b16 %v1127
          %v1148 = vunpack.c.h.b16 %v1127
          %v1149 = vunpack.c.l.b16 %v1128
          %v1150 = vunpack.c.h.b16 %v1128
          %v1151 = vunpack.c.l.b16 %v1129
          %v1152 = vunpack.c.h.b16 %v1129
          %v1153 = vunpack.c.l.b16 %v1130
          %v1154 = vunpack.c.h.b16 %v1130
          %v1155 = vpack.c.b16 %v1139, %v1139
          %v1156 = vpack.c.b16 %v1140, %v1140
          %v1157 = vpack.c.b16 %v1141, %v1141
          %v1158 = vpack.c.b16 %v1142, %v1142
          %v1159 = vpack.c.b16 %v1143, %v1143
          %v1160 = vpack.c.b16 %v1144, %v1144
          %v1161 = vpack.c.b16 %v1145, %v1145
          %v1162 = vpack.c.b16 %v1146, %v1146
          %v1163 = vpack.c.b16 %v1147, %v1147
          %v1164 = vpack.c.b16 %v1148, %v1148
          %v1165 = vpack.c.b16 %v1149, %v1149
          %v1166 = vpack.c.b16 %v1150, %v1150
          %v1167 = vpack.c.b16 %v1151, %v1151
          %v1168 = vpack.c.b16 %v1152, %v1152
          %v1169 = vpack.c.b16 %v1153, %v1153
          %v1170 = vpack.c.b16 %v1154, %v1154
          %1187 = vst [vmem:[%s446] sm:$0xf] %v1155
          %1188 = vst [vmem:[%s446 + $0x4] sm:$0xf] %v1156
          %1189 = vst [vmem:[%s446 + $0x8] sm:$0xf] %v1157
          %1190 = vst [vmem:[%s446 + $0xc] sm:$0xf] %v1158
          %1191 = vst [vmem:[%s446 + $0x10] sm:$0xf] %v1159
          %1192 = vst [vmem:[%s446 + $0x14] sm:$0xf] %v1160
          %1193 = vst [vmem:[%s446 + $0x18] sm:$0xf] %v1161
          %1194 = vst [vmem:[%s446 + $0x1c] sm:$0xf] %v1162
          %1195 = vst [vmem:[%s446 + $0x20] sm:$0xf] %v1163
          %1196 = vst [vmem:[%s446 + $0x24] sm:$0xf] %v1164
          %1197 = vst [vmem:[%s446 + $0x28] sm:$0xf] %v1165
          %1198 = vst [vmem:[%s446 + $0x2c] sm:$0xf] %v1166
          %1199 = vst [vmem:[%s446 + $0x30] sm:$0xf] %v1167
          %1200 = vst [vmem:[%s446 + $0x34] sm:$0xf] %v1168
          %1201 = vst [vmem:[%s446 + $0x38] sm:$0xf] %v1169
          %1202 = vst [vmem:[%s446 + $0x3c] sm:$0xf] %v1170
          %v1203 = vld [vmem:[#allocation8] sm:$0xf]
          %1204 = vmatprep.subr.bf16.mxu0 0
          %1205 = vmatpush1.bf16.msra.mxu0 %v802
          %1206 = vmatprep.subr.bf16.mxu0 0
          %1207 = vmatpush1.bf16.msra.mxu0 %v803
          %1208 = vmatprep.subr.bf16.mxu0 0
          %1209 = vmatpush1.bf16.msra.mxu0 %v804
          %1210 = vmatprep.subr.bf16.mxu0 0
          %1211 = vmatpush1.bf16.msra.mxu0 %v805
          %1212 = vmatprep.subr.bf16.mxu0 0
          %1213 = vmatpush1.bf16.msra.mxu0 %v806
          %1214 = vmatprep.subr.bf16.mxu0 0
          %1215 = vmatpush1.bf16.msra.mxu0 %v807
          %1216 = vmatprep.subr.bf16.mxu0 0
          %1217 = vmatpush1.bf16.msra.mxu0 %v808
          %1218 = vmatprep.subr.bf16.mxu0 0
          %1219 = vmatpush1.bf16.msra.mxu0 %v809
          %1220 = vmatprep.subr.bf16.mxu0 0
          %1221 = vmatpush1.bf16.msra.mxu0 0
          %1222 = vmatprep.subr.bf16.mxu0 0
          %1223 = vmatpush1.bf16.msra.mxu0 0
          %1224 = vmatprep.subr.bf16.mxu0 0
          %1225 = vmatpush1.bf16.msra.mxu0 0
          %1226 = vmatprep.subr.bf16.mxu0 0
          %1227 = vmatpush1.bf16.msra.mxu0 0
          %1228 = vmatprep.subr.bf16.mxu0 0
          %1229 = vmatpush1.bf16.msra.mxu0 0
          %1230 = vmatprep.subr.bf16.mxu0 0
          %1231 = vmatpush1.bf16.msra.mxu0 0
          %1232 = vmatprep.subr.bf16.mxu0 0
          %1233 = vmatpush1.bf16.msra.mxu0 0
          %1234 = vmatprep.subr.bf16.mxu0 0
          %1235 = vmatpush1.bf16.msra.mxu0 0
          %1236 = vmatprep.mubr.bf16.mxu0 0
          %1237 = vmatmul.mubr.bf16.gmra.mrb[0].mxu0 %v1203
          %v1238 = vpop.f32.mrb[0].mxu0
          %v1239 = vadd.f32 0.0, %v1238
          %v1240 = vpop.f32.mrb[0].mxu0
          %v1241 = vpop.f32.mrb[0].mxu0
          %v1242 = vpop.f32.mrb[0].mxu0
          %1243 = vdwg.mxu0
          %1244 = vst.msk [vmem:[%s453] sm:$0xff] %vm833, %v1239
        $region88: #{tpu_custom_call.1} parent=51 // pred_fallthru
          _
        %p1245 = scmp.gt.s32.totalorder %s37, 0
        // Predicated region
        $region89: #{tpu_custom_call.1} parent=51 // pred_check
          %p1246 = pneg %p1245
        $region90: #{tpu_custom_call.1} parent=51 // pred_check_branch
          %1248 = sbr.rel (%p1246) target = $region92
        $region91: #{tpu_custom_call.1} parent=51 // pred_region
          %v1249 = vld [vmem:[#allocation2] sm:$0xff]
          %v1250 = vld [vmem:[#allocation2 + $0x8] sm:$0xff]
          %v1251 = vld [vmem:[#allocation2 + $0x10] sm:$0xff]
          %v1252 = vld [vmem:[#allocation2 + $0x18] sm:$0xff]
          %v1253 = vld [vmem:[#allocation2 + $0x20] sm:$0xff]
          %v1254 = vld [vmem:[#allocation2 + $0x28] sm:$0xff]
          %v1255 = vld [vmem:[#allocation2 + $0x30] sm:$0xff]
          %v1256 = vld [vmem:[#allocation2 + $0x38] sm:$0xff]
          %v1257 = vld [vmem:[#allocation3] sm:$0xf]
          %v1258 = vld [vmem:[#allocation3 + $0x4] sm:$0xf]
          %v1259 = vld [vmem:[#allocation3 + $0x8] sm:$0xf]
          %v1260 = vld [vmem:[#allocation3 + $0xc] sm:$0xf]
          %v1261 = vld [vmem:[#allocation3 + $0x10] sm:$0xf]
          %v1262 = vld [vmem:[#allocation3 + $0x14] sm:$0xf]
          %v1263 = vld [vmem:[#allocation3 + $0x18] sm:$0xf]
          %v1264 = vld [vmem:[#allocation3 + $0x1c] sm:$0xf]
          %v1265 = vld [vmem:[#allocation3 + $0x20] sm:$0xf]
          %v1266 = vld [vmem:[#allocation3 + $0x24] sm:$0xf]
          %v1267 = vld [vmem:[#allocation3 + $0x28] sm:$0xf]
          %v1268 = vld [vmem:[#allocation3 + $0x2c] sm:$0xf]
          %v1269 = vld [vmem:[#allocation3 + $0x30] sm:$0xf]
          %v1270 = vld [vmem:[#allocation3 + $0x34] sm:$0xf]
          %v1271 = vld [vmem:[#allocation3 + $0x38] sm:$0xf]
          %v1272 = vld [vmem:[#allocation3 + $0x3c] sm:$0xf]
          %v1289 = vunpack.c.l.b16 %v1257
          %v1290 = vunpack.c.l.b16 %v1258
          %v1291 = vunpack.c.l.b16 %v1259
          %v1292 = vunpack.c.l.b16 %v1260
          %v1293 = vunpack.c.l.b16 %v1261
          %v1294 = vunpack.c.l.b16 %v1262
          %v1295 = vunpack.c.l.b16 %v1263
          %v1296 = vunpack.c.l.b16 %v1264
          %v1297 = vunpack.c.l.b16 %v1265
          %v1298 = vunpack.c.l.b16 %v1266
          %v1299 = vunpack.c.l.b16 %v1267
          %v1300 = vunpack.c.l.b16 %v1268
          %v1301 = vunpack.c.l.b16 %v1269
          %v1302 = vunpack.c.l.b16 %v1270
          %v1303 = vunpack.c.l.b16 %v1271
          %v1304 = vunpack.c.l.b16 %v1272
          %v1305 = vpack.c.b16 %v1290, %v1289
          %v1306 = vpack.c.b16 %v1292, %v1291
          %v1307 = vpack.c.b16 %v1294, %v1293
          %v1308 = vpack.c.b16 %v1296, %v1295
          %v1309 = vpack.c.b16 %v1298, %v1297
          %v1310 = vpack.c.b16 %v1300, %v1299
          %v1311 = vpack.c.b16 %v1302, %v1301
          %v1312 = vpack.c.b16 %v1304, %v1303
          %1321 = vmatprep.subr.bf16.mxu0 0
          %1322 = vmatpush1.bf16.msra.mxu0 %v1305
          %1323 = vmatprep.subr.bf16.mxu0 0
          %1324 = vmatpush1.bf16.msra.mxu0 %v1306
          %1325 = vmatprep.subr.bf16.mxu0 0
          %1326 = vmatpush1.bf16.msra.mxu0 %v1307
          %1327 = vmatprep.subr.bf16.mxu0 0
          %1328 = vmatpush1.bf16.msra.mxu0 %v1308
          %1329 = vmatprep.subr.bf16.mxu0 0
          %1330 = vmatpush1.bf16.msra.mxu0 %v1309
          %1331 = vmatprep.subr.bf16.mxu0 0
          %1332 = vmatpush1.bf16.msra.mxu0 %v1310
          %1333 = vmatprep.subr.bf16.mxu0 0
          %1334 = vmatpush1.bf16.msra.mxu0 %v1311
          %1335 = vmatprep.subr.bf16.mxu0 0
          %1336 = vmatpush1.bf16.msra.mxu0 %v1312
          %1337 = vmatprep.subr.bf16.mxu0 0
          %1338 = vmatpush1.bf16.msra.mxu0 0
          %1339 = vmatprep.subr.bf16.mxu0 0
          %1340 = vmatpush1.bf16.msra.mxu0 0
          %1341 = vmatprep.subr.bf16.mxu0 0
          %1342 = vmatpush1.bf16.msra.mxu0 0
          %1343 = vmatprep.subr.bf16.mxu0 0
          %1344 = vmatpush1.bf16.msra.mxu0 0
          %1345 = vmatprep.subr.bf16.mxu0 0
          %1346 = vmatpush1.bf16.msra.mxu0 0
          %1347 = vmatprep.subr.bf16.mxu0 0
          %1348 = vmatpush1.bf16.msra.mxu0 0
          %1349 = vmatprep.subr.bf16.mxu0 0
          %1350 = vmatpush1.bf16.msra.mxu0 0
          %1351 = vmatprep.subr.bf16.mxu0 0
          %1352 = vmatpush1.bf16.msra.mxu0 0
          %1353 = vmatprep.mubr.bf16.mxu0 0
          %1354 = vmatmul.mubr.bf16.gmra.mrb[0].mxu0 %v1249
          %v1355 = vpop.f32.mrb[0].mxu0
          %v1356 = vadd.f32 0.0, %v1355
          %v1357 = vpop.f32.mrb[0].mxu0
          %v1358 = vpop.f32.mrb[0].mxu0
          %v1359 = vadd.f32 0.0, %v1358
          %v1360 = vpop.f32.mrb[0].mxu0
          %1361 = vmatprep.mubr.bf16.mxu0 0
          %1362 = vmatmul.mubr.bf16.gmra.mrb[0].mxu0 %v1250
          %v1363 = vpop.f32.mrb[0].mxu0
          %v1364 = vadd.f32 0.0, %v1363
          %v1365 = vpop.f32.mrb[0].mxu0
          %v1366 = vpop.f32.mrb[0].mxu0
          %v1367 = vadd.f32 0.0, %v1366
          %v1368 = vpop.f32.mrb[0].mxu0
          %1369 = vmatprep.mubr.bf16.mxu0 0
          %1370 = vmatmul.mubr.bf16.gmra.mrb[0].mxu0 %v1251
          %v1371 = vpop.f32.mrb[0].mxu0
          %v1372 = vadd.f32 0.0, %v1371
          %v1373 = vpop.f32.mrb[0].mxu0
          %v1374 = vpop.f32.mrb[0].mxu0
          %v1375 = vadd.f32 0.0, %v1374
          %v1376 = vpop.f32.mrb[0].mxu0
          %1377 = vmatprep.mubr.bf16.mxu0 0
          %1378 = vmatmul.mubr.bf16.gmra.mrb[0].mxu0 %v1252
          %v1379 = vpop.f32.mrb[0].mxu0
          %v1380 = vadd.f32 0.0, %v1379
          %v1381 = vpop.f32.mrb[0].mxu0
          %v1382 = vpop.f32.mrb[0].mxu0
          %v1383 = vadd.f32 0.0, %v1382
          %v1384 = vpop.f32.mrb[0].mxu0
          %1385 = vmatprep.mubr.bf16.mxu0 0
          %1386 = vmatmul.mubr.bf16.gmra.mrb[0].mxu0 %v1253
          %v1387 = vpop.f32.mrb[0].mxu0
          %v1388 = vadd.f32 0.0, %v1387
          %v1389 = vpop.f32.mrb[0].mxu0
          %v1390 = vpop.f32.mrb[0].mxu0
          %v1391 = vadd.f32 0.0, %v1390
          %v1392 = vpop.f32.mrb[0].mxu0
          %1393 = vmatprep.mubr.bf16.mxu0 0
          %1394 = vmatmul.mubr.bf16.gmra.mrb[0].mxu0 %v1254
          %v1395 = vpop.f32.mrb[0].mxu0
          %v1396 = vadd.f32 0.0, %v1395
          %v1397 = vpop.f32.mrb[0].mxu0
          %v1398 = vpop.f32.mrb[0].mxu0
          %v1399 = vadd.f32 0.0, %v1398
          %v1400 = vpop.f32.mrb[0].mxu0
          %1401 = vmatprep.mubr.bf16.mxu0 0
          %1402 = vmatmul.mubr.bf16.gmra.mrb[0].mxu0 %v1255
          %v1403 = vpop.f32.mrb[0].mxu0
          %v1404 = vadd.f32 0.0, %v1403
          %v1405 = vpop.f32.mrb[0].mxu0
          %v1406 = vpop.f32.mrb[0].mxu0
          %v1407 = vadd.f32 0.0, %v1406
          %v1408 = vpop.f32.mrb[0].mxu0
          %1409 = vmatprep.mubr.bf16.mxu0 0
          %1410 = vmatmul.mubr.bf16.gmra.mrb[0].mxu0 %v1256
          %v1411 = vpop.f32.mrb[0].mxu0
          %v1412 = vadd.f32 0.0, %v1411
          %v1413 = vpop.f32.mrb[0].mxu0
          %v1414 = vpop.f32.mrb[0].mxu0
          %v1415 = vadd.f32 0.0, %v1414
          %v1416 = vpop.f32.mrb[0].mxu0
          %1417 = vdwg.mxu0
          %v1418 = vpack.c.bf16 %v1359, %v1356
          %v1419 = vpack.c.bf16 %v1367, %v1364
          %v1420 = vpack.c.bf16 %v1375, %v1372
          %v1421 = vpack.c.bf16 %v1383, %v1380
          %v1422 = vpack.c.bf16 %v1391, %v1388
          %v1423 = vpack.c.bf16 %v1399, %v1396
          %v1424 = vpack.c.bf16 %v1407, %v1404
          %v1425 = vpack.c.bf16 %v1415, %v1412
          %1426 = vst [vmem:[#allocation2] sm:$0xff] %v1418
          %1427 = vst [vmem:[#allocation2 + $0x8] sm:$0xff] %v1419
          %1428 = vst [vmem:[#allocation2 + $0x10] sm:$0xff] %v1420
          %1429 = vst [vmem:[#allocation2 + $0x18] sm:$0xff] %v1421
          %1430 = vst [vmem:[#allocation2 + $0x20] sm:$0xff] %v1422
          %1431 = vst [vmem:[#allocation2 + $0x28] sm:$0xff] %v1423
          %1432 = vst [vmem:[#allocation2 + $0x30] sm:$0xff] %v1424
          %1433 = vst [vmem:[#allocation2 + $0x38] sm:$0xff] %v1425
          %vm1434 = vcmp.ge.bf16.partialorder %v1418, 953301202
          %vm1435 = vcmp.ge.bf16.partialorder %v1419, 953301202
          %vm1436 = vcmp.ge.bf16.partialorder %v1420, 953301202
          %vm1437 = vcmp.ge.bf16.partialorder %v1421, 953301202
          %vm1438 = vcmp.ge.bf16.partialorder %v1422, 953301202
          %vm1439 = vcmp.ge.bf16.partialorder %v1423, 953301202
          %vm1440 = vcmp.ge.bf16.partialorder %v1424, 953301202
          %vm1441 = vcmp.ge.bf16.partialorder %v1425, 953301202
          %v1442 = vsel %vm1434, %v1418, 0
          %v1443 = vsel %vm1435, %v1419, 0
          %v1444 = vsel %vm1436, %v1420, 0
          %v1445 = vsel %vm1437, %v1421, 0
          %v1446 = vsel %vm1438, %v1422, 0
          %v1447 = vsel %vm1439, %v1423, 0
          %v1448 = vsel %vm1440, %v1424, 0
          %v1449 = vsel %vm1441, %v1425, 0
          %v1450 = vld [vmem:[#allocation6] sm:$0xf]
          %v1451 = vld [vmem:[#allocation6 + $0x4] sm:$0xf]
          %v1452 = vld [vmem:[#allocation6 + $0x8] sm:$0xf]
          %v1453 = vld [vmem:[#allocation6 + $0xc] sm:$0xf]
          %v1454 = vld [vmem:[#allocation6 + $0x10] sm:$0xf]
          %v1455 = vld [vmem:[#allocation6 + $0x14] sm:$0xf]
          %v1456 = vld [vmem:[#allocation6 + $0x18] sm:$0xf]
          %v1457 = vld [vmem:[#allocation6 + $0x1c] sm:$0xf]
          %v1458 = vld [vmem:[#allocation6 + $0x20] sm:$0xf]
          %v1459 = vld [vmem:[#allocation6 + $0x24] sm:$0xf]
          %v1460 = vld [vmem:[#allocation6 + $0x28] sm:$0xf]
          %v1461 = vld [vmem:[#allocation6 + $0x2c] sm:$0xf]
          %v1462 = vld [vmem:[#allocation6 + $0x30] sm:$0xf]
          %v1463 = vld [vmem:[#allocation6 + $0x34] sm:$0xf]
          %v1464 = vld [vmem:[#allocation6 + $0x38] sm:$0xf]
          %v1465 = vld [vmem:[#allocation6 + $0x3c] sm:$0xf]
          %v1466 = vld [vmem:[#allocation9] sm:$0x1]
          %v1468 = vlaneseq
          %v1469 = vshrl.u32 %v1468, 7
          %v1470 = vsub.s32 0, %v1469
          %v1471 = vrot.slane %v1466, %v1470
          %v1489 = vunpack.c.l.b16 %v1450
          %v1490 = vunpack.c.l.b16 %v1451
          %v1491 = vunpack.c.l.b16 %v1452
          %v1492 = vunpack.c.l.b16 %v1453
          %v1493 = vunpack.c.l.b16 %v1454
          %v1494 = vunpack.c.l.b16 %v1455
          %v1495 = vunpack.c.l.b16 %v1456
          %v1496 = vunpack.c.l.b16 %v1457
          %v1497 = vunpack.c.l.b16 %v1458
          %v1498 = vunpack.c.l.b16 %v1459
          %v1499 = vunpack.c.l.b16 %v1460
          %v1500 = vunpack.c.l.b16 %v1461
          %v1501 = vunpack.c.l.b16 %v1462
          %v1502 = vunpack.c.l.b16 %v1463
          %v1503 = vunpack.c.l.b16 %v1464
          %v1504 = vunpack.c.l.b16 %v1465
          %v1505 = vpack.c.b16 %v1490, %v1489
          %v1506 = vpack.c.b16 %v1492, %v1491
          %v1507 = vpack.c.b16 %v1494, %v1493
          %v1508 = vpack.c.b16 %v1496, %v1495
          %v1509 = vpack.c.b16 %v1498, %v1497
          %v1510 = vpack.c.b16 %v1500, %v1499
          %v1511 = vpack.c.b16 %v1502, %v1501
          %v1512 = vpack.c.b16 %v1504, %v1503
          %1521 = vmatprep.subr.bf16.mxu0 0
          %1522 = vmatpush1.bf16.msra.mxu0 %v1505
          %1523 = vmatprep.subr.bf16.mxu0 0
          %1524 = vmatpush1.bf16.msra.mxu0 %v1506
          %1525 = vmatprep.subr.bf16.mxu0 0
          %1526 = vmatpush1.bf16.msra.mxu0 %v1507
          %1527 = vmatprep.subr.bf16.mxu0 0
          %1528 = vmatpush1.bf16.msra.mxu0 %v1508
          %1529 = vmatprep.subr.bf16.mxu0 0
          %1530 = vmatpush1.bf16.msra.mxu0 %v1509
          %1531 = vmatprep.subr.bf16.mxu0 0
          %1532 = vmatpush1.bf16.msra.mxu0 %v1510
          %1533 = vmatprep.subr.bf16.mxu0 0
          %1534 = vmatpush1.bf16.msra.mxu0 %v1511
          %1535 = vmatprep.subr.bf16.mxu0 0
          %1536 = vmatpush1.bf16.msra.mxu0 %v1512
          %1537 = vmatprep.subr.bf16.mxu0 0
          %1538 = vmatpush1.bf16.msra.mxu0 0
          %1539 = vmatprep.subr.bf16.mxu0 0
          %1540 = vmatpush1.bf16.msra.mxu0 0
          %1541 = vmatprep.subr.bf16.mxu0 0
          %1542 = vmatpush1.bf16.msra.mxu0 0
          %1543 = vmatprep.subr.bf16.mxu0 0
          %1544 = vmatpush1.bf16.msra.mxu0 0
          %1545 = vmatprep.subr.bf16.mxu0 0
          %1546 = vmatpush1.bf16.msra.mxu0 0
          %1547 = vmatprep.subr.bf16.mxu0 0
          %1548 = vmatpush1.bf16.msra.mxu0 0
          %1549 = vmatprep.subr.bf16.mxu0 0
          %1550 = vmatpush1.bf16.msra.mxu0 0
          %1551 = vmatprep.subr.bf16.mxu0 0
          %1552 = vmatpush1.bf16.msra.mxu0 0
          %1553 = vmatprep.mubr.bf16.mxu0 0
          %1554 = vmatmul.mubr.bf16.gmra.mrb[0].mxu0 %v1442
          %v1555 = vpop.f32.mrb[0].mxu0
          %v1556 = vadd.f32 %v1471, %v1555
          %v1557 = vpop.f32.mrb[0].mxu0
          %v1558 = vpop.f32.mrb[0].mxu0
          %v1559 = vadd.f32 %v1471, %v1558
          %v1560 = vpop.f32.mrb[0].mxu0
          %1561 = vmatprep.mubr.bf16.mxu0 0
          %1562 = vmatmul.mubr.bf16.gmra.mrb[0].mxu0 %v1443
          %v1563 = vpop.f32.mrb[0].mxu0
          %v1564 = vadd.f32 %v1471, %v1563
          %v1565 = vpop.f32.mrb[0].mxu0
          %v1566 = vpop.f32.mrb[0].mxu0
          %v1567 = vadd.f32 %v1471, %v1566
          %v1568 = vpop.f32.mrb[0].mxu0
          %1569 = vmatprep.mubr.bf16.mxu0 0
          %1570 = vmatmul.mubr.bf16.gmra.mrb[0].mxu0 %v1444
          %v1571 = vpop.f32.mrb[0].mxu0
          %v1572 = vadd.f32 %v1471, %v1571
          %v1573 = vpop.f32.mrb[0].mxu0
          %v1574 = vpop.f32.mrb[0].mxu0
          %v1575 = vadd.f32 %v1471, %v1574
          %v1576 = vpop.f32.mrb[0].mxu0
          %1577 = vmatprep.mubr.bf16.mxu0 0
          %1578 = vmatmul.mubr.bf16.gmra.mrb[0].mxu0 %v1445
          %v1579 = vpop.f32.mrb[0].mxu0
          %v1580 = vadd.f32 %v1471, %v1579
          %v1581 = vpop.f32.mrb[0].mxu0
          %v1582 = vpop.f32.mrb[0].mxu0
          %v1583 = vadd.f32 %v1471, %v1582
          %v1584 = vpop.f32.mrb[0].mxu0
          %1585 = vmatprep.mubr.bf16.mxu0 0
          %1586 = vmatmul.mubr.bf16.gmra.mrb[0].mxu0 %v1446
          %v1587 = vpop.f32.mrb[0].mxu0
          %v1588 = vadd.f32 %v1471, %v1587
          %v1589 = vpop.f32.mrb[0].mxu0
          %v1590 = vpop.f32.mrb[0].mxu0
          %v1591 = vadd.f32 %v1471, %v1590
          %v1592 = vpop.f32.mrb[0].mxu0
          %1593 = vmatprep.mubr.bf16.mxu0 0
          %1594 = vmatmul.mubr.bf16.gmra.mrb[0].mxu0 %v1447
          %v1595 = vpop.f32.mrb[0].mxu0
          %v1596 = vadd.f32 %v1471, %v1595
          %v1597 = vpop.f32.mrb[0].mxu0
          %v1598 = vpop.f32.mrb[0].mxu0
          %v1599 = vadd.f32 %v1471, %v1598
          %v1600 = vpop.f32.mrb[0].mxu0
          %1601 = vmatprep.mubr.bf16.mxu0 0
          %1602 = vmatmul.mubr.bf16.gmra.mrb[0].mxu0 %v1448
          %v1603 = vpop.f32.mrb[0].mxu0
          %v1604 = vadd.f32 %v1471, %v1603
          %v1605 = vpop.f32.mrb[0].mxu0
          %v1606 = vpop.f32.mrb[0].mxu0
          %v1607 = vadd.f32 %v1471, %v1606
          %v1608 = vpop.f32.mrb[0].mxu0
          %1609 = vmatprep.mubr.bf16.mxu0 0
          %1610 = vmatmul.mubr.bf16.gmra.mrb[0].mxu0 %v1449
          %v1611 = vpop.f32.mrb[0].mxu0
          %v1612 = vadd.f32 %v1471, %v1611
          %v1613 = vpop.f32.mrb[0].mxu0
          %v1614 = vpop.f32.mrb[0].mxu0
          %v1615 = vadd.f32 %v1471, %v1614
          %v1616 = vpop.f32.mrb[0].mxu0
          %1617 = vdwg.mxu0
          %v1618 = vmax.f32 %v1556, 0.0
          %v1619 = vmax.f32 %v1559, 0.0
          %v1620 = vmax.f32 %v1564, 0.0
          %v1621 = vmax.f32 %v1567, 0.0
          %v1622 = vmax.f32 %v1572, 0.0
          %v1623 = vmax.f32 %v1575, 0.0
          %v1624 = vmax.f32 %v1580, 0.0
          %v1625 = vmax.f32 %v1583, 0.0
          %v1626 = vmax.f32 %v1588, 0.0
          %v1627 = vmax.f32 %v1591, 0.0
          %v1628 = vmax.f32 %v1596, 0.0
          %v1629 = vmax.f32 %v1599, 0.0
          %v1630 = vmax.f32 %v1604, 0.0
          %v1631 = vmax.f32 %v1607, 0.0
          %v1632 = vmax.f32 %v1612, 0.0
          %v1633 = vmax.f32 %v1615, 0.0
          %v1634 = vpack.c.bf16 %v1619, %v1618
          %v1635 = vpack.c.bf16 %v1621, %v1620
          %v1636 = vpack.c.bf16 %v1623, %v1622
          %v1637 = vpack.c.bf16 %v1625, %v1624
          %v1638 = vpack.c.bf16 %v1627, %v1626
          %v1639 = vpack.c.bf16 %v1629, %v1628
          %v1640 = vpack.c.bf16 %v1631, %v1630
          %v1641 = vpack.c.bf16 %v1633, %v1632
          %v1642 = vld [vmem:[#allocation11] sm:$0xf]
          %v1643 = vld [vmem:[#allocation11 + $0x4] sm:$0xf]
          %v1644 = vld [vmem:[#allocation11 + $0x8] sm:$0xf]
          %v1645 = vld [vmem:[#allocation11 + $0xc] sm:$0xf]
          %v1646 = vld [vmem:[#allocation12] sm:$0x1]
          %v1648 = vlaneseq
          %v1649 = vshrl.u32 %v1648, 7
          %v1650 = vsub.s32 0, %v1649
          %v1651 = vrot.slane %v1646, %v1650
          %v1657 = vunpack.c.l.b16 %v1642
          %v1658 = vunpack.c.l.b16 %v1643
          %v1659 = vunpack.c.l.b16 %v1644
          %v1660 = vunpack.c.l.b16 %v1645
          %v1661 = vpack.c.b16 %v1658, %v1657
          %v1662 = vpack.c.b16 %v1660, %v1659
          %vm1665 = vcmask 261120
          %v1667 = vsel %vm1665, %v1634, 0
          %v1670 = vsel %vm1665, %v1635, 0
          %v1673 = vsel %vm1665, %v1636, 0
          %v1676 = vsel %vm1665, %v1637, 0
          %v1679 = vsel %vm1665, %v1638, 0
          %v1682 = vsel %vm1665, %v1639, 0
          %v1685 = vsel %vm1665, %v1640, 0
          %v1688 = vsel %vm1665, %v1641, 0
          %1690 = vmatprep.subr.bf16.mxu0 0
          %1691 = vmatpush1.bf16.msra.mxu0 %v1661
          %1692 = vmatprep.subr.bf16.mxu0 0
          %1693 = vmatpush1.bf16.msra.mxu0 %v1662
          %1694 = vmatprep.subr.bf16.mxu0 0
          %1695 = vmatpush1.bf16.msra.mxu0 0
          %1696 = vmatprep.subr.bf16.mxu0 0
          %1697 = vmatpush1.bf16.msra.mxu0 0
          %1698 = vmatprep.subr.bf16.mxu0 0
          %1699 = vmatpush1.bf16.msra.mxu0 0
          %1700 = vmatprep.subr.bf16.mxu0 0
          %1701 = vmatpush1.bf16.msra.mxu0 0
          %1702 = vmatprep.subr.bf16.mxu0 0
          %1703 = vmatpush1.bf16.msra.mxu0 0
          %1704 = vmatprep.subr.bf16.mxu0 0
          %1705 = vmatpush1.bf16.msra.mxu0 0
          %1706 = vmatprep.subr.bf16.mxu0 0
          %1707 = vmatpush1.bf16.msra.mxu0 0
          %1708 = vmatprep.subr.bf16.mxu0 0
          %1709 = vmatpush1.bf16.msra.mxu0 0
          %1710 = vmatprep.subr.bf16.mxu0 0
          %1711 = vmatpush1.bf16.msra.mxu0 0
          %1712 = vmatprep.subr.bf16.mxu0 0
          %1713 = vmatpush1.bf16.msra.mxu0 0
          %1714 = vmatprep.subr.bf16.mxu0 0
          %1715 = vmatpush1.bf16.msra.mxu0 0
          %1716 = vmatprep.subr.bf16.mxu0 0
          %1717 = vmatpush1.bf16.msra.mxu0 0
          %1718 = vmatprep.subr.bf16.mxu0 0
          %1719 = vmatpush1.bf16.msra.mxu0 0
          %1720 = vmatprep.subr.bf16.mxu0 0
          %1721 = vmatpush1.bf16.msra.mxu0 0
          %1722 = vmatprep.mubr.bf16.mxu0 0
          %1723 = vmatmul.mubr.bf16.gmra.mrb[0].mxu0 %v1667
          %v1724 = vpop.f32.mrb[0].mxu0
          %v1725 = vadd.f32 %v1651, %v1724
          %v1726 = vpop.f32.mrb[0].mxu0
          %v1727 = vpop.f32.mrb[0].mxu0
          %v1728 = vadd.f32 %v1651, %v1727
          %v1729 = vpop.f32.mrb[0].mxu0
          %1730 = vmatprep.mubr.bf16.mxu0 0
          %1731 = vmatmul.mubr.bf16.gmra.mrb[0].mxu0 %v1670
          %v1732 = vpop.f32.mrb[0].mxu0
          %v1733 = vadd.f32 %v1651, %v1732
          %v1734 = vpop.f32.mrb[0].mxu0
          %v1735 = vpop.f32.mrb[0].mxu0
          %v1736 = vadd.f32 %v1651, %v1735
          %v1737 = vpop.f32.mrb[0].mxu0
          %1738 = vmatprep.mubr.bf16.mxu0 0
          %1739 = vmatmul.mubr.bf16.gmra.mrb[0].mxu0 %v1673
          %v1740 = vpop.f32.mrb[0].mxu0
          %v1741 = vadd.f32 %v1651, %v1740
          %v1742 = vpop.f32.mrb[0].mxu0
          %v1743 = vpop.f32.mrb[0].mxu0
          %v1744 = vadd.f32 %v1651, %v1743
          %v1745 = vpop.f32.mrb[0].mxu0
          %1746 = vmatprep.mubr.bf16.mxu0 0
          %1747 = vmatmul.mubr.bf16.gmra.mrb[0].mxu0 %v1676
          %v1748 = vpop.f32.mrb[0].mxu0
          %v1749 = vadd.f32 %v1651, %v1748
          %v1750 = vpop.f32.mrb[0].mxu0
          %v1751 = vpop.f32.mrb[0].mxu0
          %v1752 = vadd.f32 %v1651, %v1751
          %v1753 = vpop.f32.mrb[0].mxu0
          %1754 = vmatprep.mubr.bf16.mxu0 0
          %1755 = vmatmul.mubr.bf16.gmra.mrb[0].mxu0 %v1679
          %v1756 = vpop.f32.mrb[0].mxu0
          %v1757 = vadd.f32 %v1651, %v1756
          %v1758 = vpop.f32.mrb[0].mxu0
          %v1759 = vpop.f32.mrb[0].mxu0
          %v1760 = vadd.f32 %v1651, %v1759
          %v1761 = vpop.f32.mrb[0].mxu0
          %1762 = vmatprep.mubr.bf16.mxu0 0
          %1763 = vmatmul.mubr.bf16.gmra.mrb[0].mxu0 %v1682
          %v1764 = vpop.f32.mrb[0].mxu0
          %v1765 = vadd.f32 %v1651, %v1764
          %v1766 = vpop.f32.mrb[0].mxu0
          %v1767 = vpop.f32.mrb[0].mxu0
          %v1768 = vadd.f32 %v1651, %v1767
          %v1769 = vpop.f32.mrb[0].mxu0
          %1770 = vmatprep.mubr.bf16.mxu0 0
          %1771 = vmatmul.mubr.bf16.gmra.mrb[0].mxu0 %v1685
          %v1772 = vpop.f32.mrb[0].mxu0
          %v1773 = vadd.f32 %v1651, %v1772
          %v1774 = vpop.f32.mrb[0].mxu0
          %v1775 = vpop.f32.mrb[0].mxu0
          %v1776 = vadd.f32 %v1651, %v1775
          %v1777 = vpop.f32.mrb[0].mxu0
          %1778 = vmatprep.mubr.bf16.mxu0 0
          %1779 = vmatmul.mubr.bf16.gmra.mrb[0].mxu0 %v1688
          %v1780 = vpop.f32.mrb[0].mxu0
          %v1781 = vadd.f32 %v1651, %v1780
          %v1782 = vpop.f32.mrb[0].mxu0
          %v1783 = vpop.f32.mrb[0].mxu0
          %v1784 = vadd.f32 %v1651, %v1783
          %v1785 = vpop.f32.mrb[0].mxu0
          %1786 = vdwg.mxu0
          %v1787 = vmax.f32 %v1725, 0.0
          %v1788 = vmax.f32 %v1728, 0.0
          %v1789 = vmax.f32 %v1733, 0.0
          %v1790 = vmax.f32 %v1736, 0.0
          %v1791 = vmax.f32 %v1741, 0.0
          %v1792 = vmax.f32 %v1744, 0.0
          %v1793 = vmax.f32 %v1749, 0.0
          %v1794 = vmax.f32 %v1752, 0.0
          %v1795 = vmax.f32 %v1757, 0.0
          %v1796 = vmax.f32 %v1760, 0.0
          %v1797 = vmax.f32 %v1765, 0.0
          %v1798 = vmax.f32 %v1768, 0.0
          %v1799 = vmax.f32 %v1773, 0.0
          %v1800 = vmax.f32 %v1776, 0.0
          %v1801 = vmax.f32 %v1781, 0.0
          %v1802 = vmax.f32 %v1784, 0.0
          %v1803 = vpack.c.bf16 %v1788, %v1787
          %v1804 = vpack.c.bf16 %v1790, %v1789
          %v1805 = vpack.c.bf16 %v1792, %v1791
          %v1806 = vpack.c.bf16 %v1794, %v1793
          %v1807 = vpack.c.bf16 %v1796, %v1795
          %v1808 = vpack.c.bf16 %v1798, %v1797
          %v1809 = vpack.c.bf16 %v1800, %v1799
          %v1810 = vpack.c.bf16 %v1802, %v1801
          %v1811 = vld [vmem:[#allocation14] sm:$0xf]
          %v1812 = vld [vmem:[#allocation14 + $0x4] sm:$0xf]
          %v1813 = vld [vmem:[#allocation14 + $0x8] sm:$0xf]
          %v1814 = vld [vmem:[#allocation14 + $0xc] sm:$0xf]
          %v1815 = vld [vmem:[#allocation15] sm:$0x1]
          %v1817 = vlaneseq
          %v1818 = vshrl.u32 %v1817, 7
          %v1819 = vsub.s32 0, %v1818
          %v1820 = vrot.slane %v1815, %v1819
          %v1826 = vunpack.c.l.b16 %v1811
          %v1827 = vunpack.c.l.b16 %v1812
          %v1828 = vunpack.c.l.b16 %v1813
          %v1829 = vunpack.c.l.b16 %v1814
          %v1830 = vpack.c.b16 %v1827, %v1826
          %v1831 = vpack.c.b16 %v1829, %v1828
          %v1835 = vsel %vm1665, %v1803, 0
          %v1838 = vsel %vm1665, %v1804, 0
          %v1841 = vsel %vm1665, %v1805, 0
          %v1844 = vsel %vm1665, %v1806, 0
          %v1847 = vsel %vm1665, %v1807, 0
          %v1850 = vsel %vm1665, %v1808, 0
          %v1853 = vsel %vm1665, %v1809, 0
          %v1856 = vsel %vm1665, %v1810, 0
          %1858 = vmatprep.subr.bf16.mxu0 0
          %1859 = vmatpush1.bf16.msra.mxu0 %v1830
          %1860 = vmatprep.subr.bf16.mxu0 0
          %1861 = vmatpush1.bf16.msra.mxu0 %v1831
          %1862 = vmatprep.subr.bf16.mxu0 0
          %1863 = vmatpush1.bf16.msra.mxu0 0
          %1864 = vmatprep.subr.bf16.mxu0 0
          %1865 = vmatpush1.bf16.msra.mxu0 0
          %1866 = vmatprep.subr.bf16.mxu0 0
          %1867 = vmatpush1.bf16.msra.mxu0 0
          %1868 = vmatprep.subr.bf16.mxu0 0
          %1869 = vmatpush1.bf16.msra.mxu0 0
          %1870 = vmatprep.subr.bf16.mxu0 0
          %1871 = vmatpush1.bf16.msra.mxu0 0
          %1872 = vmatprep.subr.bf16.mxu0 0
          %1873 = vmatpush1.bf16.msra.mxu0 0
          %1874 = vmatprep.subr.bf16.mxu0 0
          %1875 = vmatpush1.bf16.msra.mxu0 0
          %1876 = vmatprep.subr.bf16.mxu0 0
          %1877 = vmatpush1.bf16.msra.mxu0 0
          %1878 = vmatprep.subr.bf16.mxu0 0
          %1879 = vmatpush1.bf16.msra.mxu0 0
          %1880 = vmatprep.subr.bf16.mxu0 0
          %1881 = vmatpush1.bf16.msra.mxu0 0
          %1882 = vmatprep.subr.bf16.mxu0 0
          %1883 = vmatpush1.bf16.msra.mxu0 0
          %1884 = vmatprep.subr.bf16.mxu0 0
          %1885 = vmatpush1.bf16.msra.mxu0 0
          %1886 = vmatprep.subr.bf16.mxu0 0
          %1887 = vmatpush1.bf16.msra.mxu0 0
          %1888 = vmatprep.subr.bf16.mxu0 0
          %1889 = vmatpush1.bf16.msra.mxu0 0
          %1890 = vmatprep.mubr.bf16.mxu0 0
          %1891 = vmatmul.mubr.bf16.gmra.mrb[0].mxu0 %v1835
          %v1892 = vpop.f32.mrb[0].mxu0
          %v1893 = vadd.f32 %v1820, %v1892
          %v1894 = vpop.f32.mrb[0].mxu0
          %v1895 = vpop.f32.mrb[0].mxu0
          %v1896 = vadd.f32 %v1820, %v1895
          %v1897 = vpop.f32.mrb[0].mxu0
          %1898 = vmatprep.mubr.bf16.mxu0 0
          %1899 = vmatmul.mubr.bf16.gmra.mrb[0].mxu0 %v1838
          %v1900 = vpop.f32.mrb[0].mxu0
          %v1901 = vadd.f32 %v1820, %v1900
          %v1902 = vpop.f32.mrb[0].mxu0
          %v1903 = vpop.f32.mrb[0].mxu0
          %v1904 = vadd.f32 %v1820, %v1903
          %v1905 = vpop.f32.mrb[0].mxu0
          %1906 = vmatprep.mubr.bf16.mxu0 0
          %1907 = vmatmul.mubr.bf16.gmra.mrb[0].mxu0 %v1841
          %v1908 = vpop.f32.mrb[0].mxu0
          %v1909 = vadd.f32 %v1820, %v1908
          %v1910 = vpop.f32.mrb[0].mxu0
          %v1911 = vpop.f32.mrb[0].mxu0
          %v1912 = vadd.f32 %v1820, %v1911
          %v1913 = vpop.f32.mrb[0].mxu0
          %1914 = vmatprep.mubr.bf16.mxu0 0
          %1915 = vmatmul.mubr.bf16.gmra.mrb[0].mxu0 %v1844
          %v1916 = vpop.f32.mrb[0].mxu0
          %v1917 = vadd.f32 %v1820, %v1916
          %v1918 = vpop.f32.mrb[0].mxu0
          %v1919 = vpop.f32.mrb[0].mxu0
          %v1920 = vadd.f32 %v1820, %v1919
          %v1921 = vpop.f32.mrb[0].mxu0
          %1922 = vmatprep.mubr.bf16.mxu0 0
          %1923 = vmatmul.mubr.bf16.gmra.mrb[0].mxu0 %v1847
          %v1924 = vpop.f32.mrb[0].mxu0
          %v1925 = vadd.f32 %v1820, %v1924
          %v1926 = vpop.f32.mrb[0].mxu0
          %v1927 = vpop.f32.mrb[0].mxu0
          %v1928 = vadd.f32 %v1820, %v1927
          %v1929 = vpop.f32.mrb[0].mxu0
          %1930 = vmatprep.mubr.bf16.mxu0 0
          %1931 = vmatmul.mubr.bf16.gmra.mrb[0].mxu0 %v1850
          %v1932 = vpop.f32.mrb[0].mxu0
          %v1933 = vadd.f32 %v1820, %v1932
          %v1934 = vpop.f32.mrb[0].mxu0
          %v1935 = vpop.f32.mrb[0].mxu0
          %v1936 = vadd.f32 %v1820, %v1935
          %v1937 = vpop.f32.mrb[0].mxu0
          %1938 = vmatprep.mubr.bf16.mxu0 0
          %1939 = vmatmul.mubr.bf16.gmra.mrb[0].mxu0 %v1853
          %v1940 = vpop.f32.mrb[0].mxu0
          %v1941 = vadd.f32 %v1820, %v1940
          %v1942 = vpop.f32.mrb[0].mxu0
          %v1943 = vpop.f32.mrb[0].mxu0
          %v1944 = vadd.f32 %v1820, %v1943
          %v1945 = vpop.f32.mrb[0].mxu0
          %1946 = vmatprep.mubr.bf16.mxu0 0
          %1947 = vmatmul.mubr.bf16.gmra.mrb[0].mxu0 %v1856
          %v1948 = vpop.f32.mrb[0].mxu0
          %v1949 = vadd.f32 %v1820, %v1948
          %v1950 = vpop.f32.mrb[0].mxu0
          %v1951 = vpop.f32.mrb[0].mxu0
          %v1952 = vadd.f32 %v1820, %v1951
          %v1953 = vpop.f32.mrb[0].mxu0
          %1954 = vdwg.mxu0
          %v1955 = vpack.c.bf16 %v1896, %v1893
          %v1956 = vpack.c.bf16 %v1904, %v1901
          %v1957 = vpack.c.bf16 %v1912, %v1909
          %v1958 = vpack.c.bf16 %v1920, %v1917
          %v1959 = vpack.c.bf16 %v1928, %v1925
          %v1960 = vpack.c.bf16 %v1936, %v1933
          %v1961 = vpack.c.bf16 %v1944, %v1941
          %v1962 = vpack.c.bf16 %v1952, %v1949
          %v1971 = vunpack.c.l.b16 %v1955
          %v1972 = vunpack.c.h.b16 %v1955
          %v1973 = vunpack.c.l.b16 %v1956
          %v1974 = vunpack.c.h.b16 %v1956
          %v1975 = vunpack.c.l.b16 %v1957
          %v1976 = vunpack.c.h.b16 %v1957
          %v1977 = vunpack.c.l.b16 %v1958
          %v1978 = vunpack.c.h.b16 %v1958
          %v1979 = vunpack.c.l.b16 %v1959
          %v1980 = vunpack.c.h.b16 %v1959
          %v1981 = vunpack.c.l.b16 %v1960
          %v1982 = vunpack.c.h.b16 %v1960
          %v1983 = vunpack.c.l.b16 %v1961
          %v1984 = vunpack.c.h.b16 %v1961
          %v1985 = vunpack.c.l.b16 %v1962
          %v1986 = vunpack.c.h.b16 %v1962
          %v1987 = vpack.c.b16 %v1971, %v1971
          %v1988 = vpack.c.b16 %v1972, %v1972
          %v1989 = vpack.c.b16 %v1973, %v1973
          %v1990 = vpack.c.b16 %v1974, %v1974
          %v1991 = vpack.c.b16 %v1975, %v1975
          %v1992 = vpack.c.b16 %v1976, %v1976
          %v1993 = vpack.c.b16 %v1977, %v1977
          %v1994 = vpack.c.b16 %v1978, %v1978
          %v1995 = vpack.c.b16 %v1979, %v1979
          %v1996 = vpack.c.b16 %v1980, %v1980
          %v1997 = vpack.c.b16 %v1981, %v1981
          %v1998 = vpack.c.b16 %v1982, %v1982
          %v1999 = vpack.c.b16 %v1983, %v1983
          %v2000 = vpack.c.b16 %v1984, %v1984
          %v2001 = vpack.c.b16 %v1985, %v1985
          %v2002 = vpack.c.b16 %v1986, %v1986
          %2019 = vst [vmem:[%s446] sm:$0xf] %v1987
          %2020 = vst [vmem:[%s446 + $0x4] sm:$0xf] %v1988
          %2021 = vst [vmem:[%s446 + $0x8] sm:$0xf] %v1989
          %2022 = vst [vmem:[%s446 + $0xc] sm:$0xf] %v1990
          %2023 = vst [vmem:[%s446 + $0x10] sm:$0xf] %v1991
          %2024 = vst [vmem:[%s446 + $0x14] sm:$0xf] %v1992
          %2025 = vst [vmem:[%s446 + $0x18] sm:$0xf] %v1993
          %2026 = vst [vmem:[%s446 + $0x1c] sm:$0xf] %v1994
          %2027 = vst [vmem:[%s446 + $0x20] sm:$0xf] %v1995
          %2028 = vst [vmem:[%s446 + $0x24] sm:$0xf] %v1996
          %2029 = vst [vmem:[%s446 + $0x28] sm:$0xf] %v1997
          %2030 = vst [vmem:[%s446 + $0x2c] sm:$0xf] %v1998
          %2031 = vst [vmem:[%s446 + $0x30] sm:$0xf] %v1999
          %2032 = vst [vmem:[%s446 + $0x34] sm:$0xf] %v2000
          %2033 = vst [vmem:[%s446 + $0x38] sm:$0xf] %v2001
          %2034 = vst [vmem:[%s446 + $0x3c] sm:$0xf] %v2002
          %v2035 = vld [vmem:[#allocation8] sm:$0xf]
          %2036 = vmatprep.subr.bf16.mxu0 0
          %2037 = vmatpush1.bf16.msra.mxu0 %v1634
          %2038 = vmatprep.subr.bf16.mxu0 0
          %2039 = vmatpush1.bf16.msra.mxu0 %v1635
          %2040 = vmatprep.subr.bf16.mxu0 0
          %2041 = vmatpush1.bf16.msra.mxu0 %v1636
          %2042 = vmatprep.subr.bf16.mxu0 0
          %2043 = vmatpush1.bf16.msra.mxu0 %v1637
          %2044 = vmatprep.subr.bf16.mxu0 0
          %2045 = vmatpush1.bf16.msra.mxu0 %v1638
          %2046 = vmatprep.subr.bf16.mxu0 0
          %2047 = vmatpush1.bf16.msra.mxu0 %v1639
          %2048 = vmatprep.subr.bf16.mxu0 0
          %2049 = vmatpush1.bf16.msra.mxu0 %v1640
          %2050 = vmatprep.subr.bf16.mxu0 0
          %2051 = vmatpush1.bf16.msra.mxu0 %v1641
          %2052 = vmatprep.subr.bf16.mxu0 0
          %2053 = vmatpush1.bf16.msra.mxu0 0
          %2054 = vmatprep.subr.bf16.mxu0 0
          %2055 = vmatpush1.bf16.msra.mxu0 0
          %2056 = vmatprep.subr.bf16.mxu0 0
          %2057 = vmatpush1.bf16.msra.mxu0 0
          %2058 = vmatprep.subr.bf16.mxu0 0
          %2059 = vmatpush1.bf16.msra.mxu0 0
          %2060 = vmatprep.subr.bf16.mxu0 0
          %2061 = vmatpush1.bf16.msra.mxu0 0
          %2062 = vmatprep.subr.bf16.mxu0 0
          %2063 = vmatpush1.bf16.msra.mxu0 0
          %2064 = vmatprep.subr.bf16.mxu0 0
          %2065 = vmatpush1.bf16.msra.mxu0 0
          %2066 = vmatprep.subr.bf16.mxu0 0
          %2067 = vmatpush1.bf16.msra.mxu0 0
          %2068 = vmatprep.mubr.bf16.mxu0 0
          %2069 = vmatmul.mubr.bf16.gmra.mrb[0].mxu0 %v2035
          %v2070 = vpop.f32.mrb[0].mxu0
          %v2071 = vadd.f32 0.0, %v2070
          %v2072 = vpop.f32.mrb[0].mxu0
          %v2073 = vpop.f32.mrb[0].mxu0
          %v2074 = vpop.f32.mrb[0].mxu0
          %2075 = vdwg.mxu0
          %2076 = vst.msk [vmem:[%s453] sm:$0xff] %vm1665, %v2071
        $region92: #{tpu_custom_call.1} parent=51 // pred_fallthru
          _
        %s2077 = sand.u32 %s227, 1
        %s2078 = scalar_lea.sflag [#allocation5], %s2077
        %s2079 = sand.u32 %s227, 1
        %s2080 = smul.addr %s2079, 64
        %s2081 = scalar_lea.vmem [#allocation17], %s2080
        %s2082 = sand.u32 %s255, 1
        %s2083 = scalar_lea.sflag [#allocation19], %s2082
        %s2084 = sand.u32 %s255, 1
        %s2085 = smul.addr %s2084, 8
        %s2086 = scalar_lea.vmem [#allocation18], %s2085
        // Predicated region
        $region93: #{tpu_custom_call.1} parent=51 // pred_check
          %p2087 = pneg %p237
        $region94: #{tpu_custom_call.1} parent=51 // pred_check_branch
          %2089 = sbr.rel (%p2087) target = $region96
        $region95: #{tpu_custom_call.1} parent=51 // pred_region
          %s2090 = smul.u32 16, %s36
          %s2092 = ssub.s32 1024, 1024
          %2093 = vsyncadd %s2078, %s2092
          %s2094 = smul.addr %s37, 16
          %s2095 = sadd.s32 %s2090, %s2094
          %s2096 = smul.addr %s2095, 64
          %s2097 = scalar_lea.hbm %s8, %s2096
          %s2098 = sshll.u32 %s2081, 4
          %s2099 = int_to_ptr.vmem [resolvable:$true] %s2098
          %2104 = dma.vmem_to_hbm [thread:$0]  %s2099, 1024, %s2097, %s2078, 64, 64, 4
        $region96: #{tpu_custom_call.1} parent=51 // pred_fallthru
          _
        // Predicated region
        $region97: #{tpu_custom_call.1} parent=51 // pred_check
          %p2105 = pneg %p265
        $region98: #{tpu_custom_call.1} parent=51 // pred_check_branch
          %2107 = sbr.rel (%p2105) target = $region100
        $region99: #{tpu_custom_call.1} parent=51 // pred_region
          %s2109 = ssub.s32 128, 128
          %2110 = vsyncadd %s2083, %s2109
          %s2111 = smul.addr %s36, 4
          %s2112 = sadd.s32 %s37, %s2111
          %s2113 = smul.addr %s2112, 128
          %s2114 = scalar_lea.hbm %s9, %s2113
          %s2116 = sshll.u32 %s2086, 4
          %s2117 = int_to_ptr.vmem [resolvable:$true] %s2116
          %2119 = dma.vmem_to_hbm [thread:$0]  %s2117, 128, %s2114, %s2083
        $region100: #{tpu_custom_call.1} parent=51 // pred_fallthru
          _
      $region52: #{tpu_custom_call.1} parent=5 // pred_fallthru
        _
      %p2120 = scmp.le.s32.totalorder 2, %s27
      // Predicated region
      $region101: #{tpu_custom_call.1} parent=5 // pred_check
        %p2121 = pneg %p2120
      $region102: #{tpu_custom_call.1} parent=5 // pred_check_branch
        %2123 = sbr.rel (%p2121) target = $region104
      $region103: #{tpu_custom_call.1} parent=5 // pred_region
        %s2124 = ssub.s32 %s27, 2
        // Predicated region
        $region105: #{tpu_custom_call.1} parent=103 // pred_check
          %p2125 = pneg %p243
        $region106: #{tpu_custom_call.1} parent=103 // pred_check_branch
          %2127 = sbr.rel (%p2125) target = $region108
        $region107: #{tpu_custom_call.1} parent=103 // pred_region
          %s2128 = sand.u32 %s228, 1
          %s2129 = scalar_lea.sflag [#allocation5], %s2128
          %s2130 = sand.u32 %s228, 1
          %s2131 = smul.addr %s2130, 64
          %s2132 = scalar_lea.vmem [#allocation17], %s2131
          %2133 = dma.done %s2129, 1024
        $region108: #{tpu_custom_call.1} parent=103 // pred_fallthru
          _
        // Predicated region
        $region109: #{tpu_custom_call.1} parent=103 // pred_check
          %p2134 = pneg %p271
        $region110: #{tpu_custom_call.1} parent=103 // pred_check_branch
          %2136 = sbr.rel (%p2134) target = $region112
        $region111: #{tpu_custom_call.1} parent=103 // pred_region
          %s2137 = sand.u32 %s256, 1
          %s2138 = scalar_lea.sflag [#allocation19], %s2137
          %s2139 = sand.u32 %s256, 1
          %s2140 = smul.addr %s2139, 8
          %s2141 = scalar_lea.vmem [#allocation18], %s2140
          %2142 = dma.done %s2138, 128
        $region112: #{tpu_custom_call.1} parent=103 // pred_fallthru
          _
      $region104: #{tpu_custom_call.1} parent=5 // pred_fallthru
        _
    $region6: #{tpu_custom_call.1} parent=1 // loop_footer
      %s31 = sadd.s32 1, %s27
    $region7: #{tpu_custom_call.1} parent=1 // loop_footer_branch
      %26 = sbr.rel target = $region3
    $region8: #{tpu_custom_call.1} parent=1 // loop_exit
      _
    %2143 = vsyncpa [#allocation4], 1
    %s2144 = scalar_lea.sflag [#allocation4], 1
    %2145 = vsyncpa %s2144, 1
    %2146 = vsyncpa [#allocation7], 1
    %2147 = vsyncpa [#allocation10], 1
    %2148 = vsyncpa [#allocation13], 1
    %2149 = vsyncpa [#allocation16], 1
    %2150 = vsyncpa [#allocation5], 1
    %s2151 = scalar_lea.sflag [#allocation5], 1
    %2152 = vsyncpa %s2151, 1
    %2153 = vsyncpa [#allocation19], 1
    %s2154 = scalar_lea.sflag [#allocation19], 1
    %2155 = vsyncpa %s2154, 1

</llo_original>
